<compile_context>
chip_gen: v7x
topology: tpu7x:2x2x1
jax: 0.10.0
libtpu: 0.0.40
codegen_flags: <defaults>
</compile_context>

<pallas_src>
import functools
import math

import jax
import jax.numpy as jnp
from jax import lax
from jax.experimental import pallas as pl
from jax.experimental.pallas import tpu as pltpu

# ------------------------------ configuration -------------------------------
IMAGE_SIZE = 16      # stands in for int(os.getenv('image_size'))
CHANNELS = 4         # `channels` of the reference module
BATCH = 2
SEQ_LEN = 8          # tokens fed to the language model
VOCAB = 128
EMBED_DIM = 32       # token-embedding width
LM_DIM = 32          # language_model_output_dim
HID = 32             # hidden channels of the stand-in denoiser
TIMESTEPS = 64       # TODO(synk): reference uses ddpm_model.num_timesteps (e.g. 1000)

ROWS = IMAGE_SIZE * BATCH      # kernel image layout: row = h*BATCH + b
WC = IMAGE_SIZE * CHANNELS     # col = w*CHANNELS + c
WH = IMAGE_SIZE * HID          # hidden col = w*HID + o


# ------------------------------ fused kernel ---------------------------------

def _fused_forward_kernel(sched_ref,                                  # SMEM (3, T)
                          pooled_ref, w_lm_ref, b_lm_ref,             # language-model stub
                          w_map_ref, b_map_ref,                       # mapping_layer
                          w1_ref, b1_ref, temb_ref, w2_ref, b2_ref,   # denoiser
                          noise_ref,                                  # (T, H*B, W*C) noise
                          out_ref,                                    # generated image
                          x_ref, h_ref,                               # guard-row VMEM scratch
                          *, T, B, H):
    HB = H * B

    # Zero the scratches once: the first/last B rows stay zero forever, providing
    # the 'same'-conv zero padding in the H direction via free static slicing.
    x_ref[...] = jnp.zeros_like(x_ref)
    h_ref[...] = jnp.zeros_like(h_ref)

    # --- language_model stub + mapping_layer -> initial image state (one time) ---
    feats = jnp.dot(pooled_ref[...].astype(jnp.bfloat16), w_lm_ref[...],
                    preferred_element_type=jnp.float32) + b_lm_ref[...]
    feats = jnp.tanh(feats).astype(jnp.bfloat16)                      # (B, LM_DIM)
    for h in range(H):   # one-time cold path; writes straight into the scratch slices
        x_ref[pl.ds(B + h * B, B), :] = (
            jnp.dot(feats, w_map_ref[h], preferred_element_type=jnp.float32)
            + b_map_ref[h])

    def tri_conv(src_ref, w_ref, bias):
        """3x3 'same' conv on the (H*B, W*Cin) layout.

        dy handled by three static guard-row slices of src_ref; dx folded into
        tri-banded block-diagonal weights (pre-summed host-side) -> 3 back-to-back
        accumulating MXU matmuls, bf16 operands, f32 accumulation.
        """
        acc = jnp.dot(src_ref[pl.ds(0, HB), :].astype(jnp.bfloat16), w_ref[0],
                      preferred_element_type=jnp.float32)
        acc = acc + jnp.dot(src_ref[pl.ds(B, HB), :].astype(jnp.bfloat16), w_ref[1],
                            preferred_element_type=jnp.float32)
        acc = acc + jnp.dot(src_ref[pl.ds(2 * B, HB), :].astype(jnp.bfloat16), w_ref[2],
                            preferred_element_type=jnp.float32)
        return acc + bias

    # ------------------ p_sample_loop: all T reverse-diffusion steps ------------------
    def body(step, carry):
        t = (T - 1) - step                                            # reverse time index
        x = x_ref[pl.ds(B, HB), :]                                    # (HB, WC) f32
        h1 = tri_conv(x_ref, w1_ref, b1_ref[...])                     # (HB, WH)
        h1 = h1 * jax.nn.sigmoid(h1)                                  # SiLU (f32)
        h1 = h1 + temb_ref[t]                                         # (1, WH) time cond.
        h_ref[pl.ds(B, HB), :] = h1                                   # stage for dy slices
        eps = tri_conv(h_ref, w2_ref, b2_ref[...])                    # (HB, WC)

        c_ra = sched_ref[0, t]        # 1/sqrt(alpha_t)
        c_eps = sched_ref[1, t]       # beta_t / sqrt(1 - alphabar_t)
        c_sig = sched_ref[2, t]       # posterior sigma_t (0 at t == 0)
        z = noise_ref[step]           # precomputed standard-normal draw
        x_ref[pl.ds(B, HB), :] = c_ra * (x - c_eps * eps) + c_sig * z
        return carry

    lax.fori_loop(0, T, body, 0)

    img = jnp.clip(x_ref[pl.ds(B, HB), :], -1.0, 1.0)                 # clamp + unnormalize
    out_ref[...] = (img + 1.0) * 0.5


# ------------------------- host-side (one-time) prep -------------------------

def _tri_banded_conv_weight(w, width):
    """(3,3,Cin,Cout) -> (3, width*Cin, width*Cout): one tri-banded block matrix per dy.

    Tap (dy,dx): blk[wi*Cin+c, v*Cout+o] = W[dy,dx+1,c,o] iff wi == v+dx, folding the
    W-direction shift + zero padding of a 'same' conv into the weight.  The three dx
    taps are pre-summed (exact: the dy-shifted activation is shared across dx), so the
    kernel does 3 matmuls per conv instead of 9.
    """
    cin, cout = w.shape[2], w.shape[3]
    per_dy = []
    for dy in range(3):
        acc = jnp.zeros((width * cin, width * cout), w.dtype)
        for dx in (-1, 0, 1):
            tap = w[dy, dx + 1]                           # (Cin, Cout)
            band = jnp.eye(width, k=-dx, dtype=w.dtype)   # [wi, v] = 1 iff wi == v+dx
            acc = acc + jnp.einsum("wv,co->wcvo", band, tap).reshape(width * cin,
                                                                     width * cout)
        per_dy.append(acc)
    return jnp.stack(per_dy, axis=0)


def _time_embedding_table(T, dim, wt, bt, width):
    """Per-timestep SiLU-MLP of a sinusoidal embedding, pre-tiled over W: (T,1,width*dim)."""
    half = dim // 2
    freqs = jnp.exp(-math.log(10000.0) * jnp.arange(half, dtype=jnp.float32) / (half - 1))
    args = jnp.arange(T, dtype=jnp.float32)[:, None] * freqs[None, :]
    emb = jnp.concatenate([jnp.sin(args), jnp.cos(args)], axis=-1)     # (T, dim)
    emb = emb @ wt + bt
    emb = emb * jax.nn.sigmoid(emb)
    return jnp.tile(emb, (1, width)).reshape(T, 1, width * dim)


def _ddpm_schedule(T):
    """Linear-beta DDPM constants, stacked (3, T) for SMEM."""
    # TODO(synk): the reference library default may be a cosine/sigmoid beta schedule.
    betas = jnp.linspace(1e-4, 0.02, T, dtype=jnp.float32)
    alphas = 1.0 - betas
    ac = jnp.cumprod(alphas)
    ac_prev = jnp.concatenate([jnp.ones((1,), jnp.float32), ac[:-1]])
    recip_sqrt_alpha = 1.0 / jnp.sqrt(alphas)
    eps_coef = betas / jnp.sqrt(1.0 - ac)
    sigma = jnp.sqrt(jnp.maximum(betas * (1.0 - ac_prev) / (1.0 - ac), 0.0))
    sigma = sigma.at[0].set(0.0)                 # no noise on the final (t == 0) step
    return jnp.stack([recip_sqrt_alpha, eps_coef, sigma], axis=0)


def init_params(key):
    ks = jax.random.split(key, 6)

    def uniform(k, shape, fan_in):
        s = 1.0 / math.sqrt(fan_in)
        return jax.random.uniform(k, shape, jnp.float32, -s, s)

    return {
        # language-model stand-in: token embedding -> mean pool -> Linear -> tanh
        "emb":  0.02 * jax.random.normal(ks[0], (VOCAB, EMBED_DIM), jnp.float32),
        "w_lm": uniform(ks[1], (EMBED_DIM, LM_DIM), EMBED_DIM),
        "b_lm": jnp.zeros((1, LM_DIM), jnp.float32),
        # mapping_layer: nn.Linear(LM_DIM, H*W*C), stored directly in the kernel's
        # (H, LM_DIM, W*C) layout (a fixed column permutation of the nn.Linear weight).
        "w_map": uniform(ks[2], (IMAGE_SIZE, LM_DIM, WC), LM_DIM),
        "b_map": jnp.zeros((IMAGE_SIZE, 1, WC), jnp.float32),
        # stand-in denoiser.  TODO(synk): full UNet of ddpm_model not replicated;
        # a 2x(3x3 conv) + time-embedding backbone stands in for it.
        "w1": uniform(ks[3], (3, 3, CHANNELS, HID), 9 * CHANNELS),
        "b1": jnp.zeros((HID,), jnp.float32),
        "w2": uniform(ks[4], (3, 3, HID, CHANNELS), 9 * HID),
        "b2": jnp.zeros((CHANNELS,), jnp.float32),
        "wt": uniform(ks[5], (HID, HID), HID),
        "bt": jnp.zeros((HID,), jnp.float32),
    }


# ------------------------------- forward pass --------------------------------

@jax.jit
def language_model_to_ddpm_forward(text_tokens, params, noise):
    B = text_tokens.shape[0]
    H = W = IMAGE_SIZE
    C = CHANNELS
    T = TIMESTEPS

    # TODO(synk): embedding gather (and the arbitrary language_model backbone) kept
    # as tiny one-time XLA glue; everything downstream runs in the fused kernel.
    pooled = jnp.mean(params["emb"][text_tokens], axis=1)                # (B, EMBED_DIM)

    sched = _ddpm_schedule(T)                                            # (3, T) -> SMEM
    temb = _time_embedding_table(T, HID, params["wt"], params["bt"], W)  # (T, 1, W*HID)
    w_lm = params["w_lm"].astype(jnp.bfloat16)
    w_map = params["w_map"].astype(jnp.bfloat16)
    w1_tri = _tri_banded_conv_weight(params["w1"], W).astype(jnp.bfloat16)  # (3, WC, WH)
    w2_tri = _tri_banded_conv_weight(params["w2"], W).astype(jnp.bfloat16)  # (3, WH, WC)
    b1_t = jnp.tile(params["b1"][None, :], (1, W))                       # (1, W*HID)
    b2_t = jnp.tile(params["b2"][None, :], (1, W))                       # (1, W*C)

    kernel = functools.partial(_fused_forward_kernel, T=T, B=B, H=H)
    smem = pl.BlockSpec(memory_space=pltpu.MemorySpace.SMEM)
    vmem = pl.BlockSpec(memory_space=pltpu.MemorySpace.VMEM)

    out = pl.pallas_call(
        kernel,
        out_shape=jax.ShapeDtypeStruct((H * B, W * C), jnp.float32),
        in_specs=[smem] + [vmem] * 11,
        out_specs=vmem,
        scratch_shapes=[pltpu.VMEM(((H + 2) * B, W * C), jnp.float32),   # guard-row state
                        pltpu.VMEM(((H + 2) * B, W * HID), jnp.float32)],  # guard-row hidden
    )(sched, pooled, w_lm, params["b_lm"], w_map, params["b_map"],
      w1_tri, b1_t, temb, w2_tri, b2_t, noise)

    # (H*B, W*C) with row = h*B + b, col = w*C + c  ->  (B, C, H, W)
    return out.reshape(H, B, W, C).transpose(1, 3, 0, 2)


if __name__ == "__main__":
    root = jax.random.PRNGKey(0)
    k_text, k_params, k_noise = jax.random.split(root, 3)

    text_tokens = jax.random.randint(k_text, (BATCH, SEQ_LEN), 0, VOCAB,
                                     dtype=jnp.int32)
    params = init_params(k_params)
    # TODO(synk): on-chip PRNG (pltpu.prng_seed/prng_random_bits) would avoid this HBM
    # noise table but has no interpret/CPU lowering, so noise is precomputed here.
    noise = jax.random.normal(k_noise, (TIMESTEPS, ROWS, WC), jnp.float32)

    images = language_model_to_ddpm_forward(text_tokens, params, noise)
    jax.block_until_ready(images)

    assert images.shape == (BATCH, CHANNELS, IMAGE_SIZE, IMAGE_SIZE)
    assert bool(jnp.all(jnp.isfinite(images)))
    print("KERNEL_OK")
</pallas_src>

<mosaic_0001>
module attributes {stable_mosaic.version = 11 : i64} {
  func.func @_fused_forward_kernel(%arg0: memref<3x64xf32, #tpu.memory_space<smem>>, %arg1: memref<2x32xf32, #tpu.memory_space<vmem>>, %arg2: memref<32x32xbf16, #tpu.memory_space<vmem>>, %arg3: memref<1x32xf32, #tpu.memory_space<vmem>>, %arg4: memref<16x32x64xbf16, #tpu.memory_space<vmem>>, %arg5: memref<16x1x64xf32, #tpu.memory_space<vmem>>, %arg6: memref<3x64x512xbf16, #tpu.memory_space<vmem>>, %arg7: memref<1x512xf32, #tpu.memory_space<vmem>>, %arg8: memref<64x1x512xf32, #tpu.memory_space<vmem>>, %arg9: memref<3x512x64xbf16, #tpu.memory_space<vmem>>, %arg10: memref<1x64xf32, #tpu.memory_space<vmem>>, %arg11: memref<64x32x64xf32, #tpu.memory_space<vmem>>, %arg12: memref<32x64xf32, #tpu.memory_space<vmem>>, %arg13: memref<36x64xf32, #tpu.memory_space<vmem>>, %arg14: memref<36x512xf32, #tpu.memory_space<vmem>>) attributes {dimension_semantics = [], scalar_prefetch = 0 : i64, scratch_operands = 2 : i64, tpu.core_type = #tpu.core_type<tc>} {
    %cst = arith.constant 0.000000e+00 : f32
    %0 = vector.broadcast %cst : f32 to vector<36x64xf32>
    %c0 = arith.constant 0 : index
    %c0_0 = arith.constant 0 : index
    %1 = vector.load %arg13[%c0, %c0_0] : memref<36x64xf32, #tpu.memory_space<vmem>>, vector<36x64xf32>
    tpu.vector_store %arg13[%c0, %c0_0], %0 {strides = array<i32>} : memref<36x64xf32, #tpu.memory_space<vmem>>, vector<36x64xf32>,
    %cst_1 = arith.constant 0.000000e+00 : f32
    %2 = vector.broadcast %cst_1 : f32 to vector<36x512xf32>
    %c0_2 = arith.constant 0 : index
    %c0_3 = arith.constant 0 : index
    %3 = vector.load %arg14[%c0_2, %c0_3] : memref<36x512xf32, #tpu.memory_space<vmem>>, vector<36x512xf32>
    tpu.vector_store %arg14[%c0_2, %c0_3], %2 {strides = array<i32>} : memref<36x512xf32, #tpu.memory_space<vmem>>, vector<36x512xf32>,
    %c0_4 = arith.constant 0 : index
    %c0_5 = arith.constant 0 : index
    %4 = vector.load %arg1[%c0_4, %c0_5] : memref<2x32xf32, #tpu.memory_space<vmem>>, vector<2x32xf32>
    %5 = arith.truncf %4 : vector<2x32xf32> to vector<2x32xbf16>
    %c0_6 = arith.constant 0 : index
    %c0_7 = arith.constant 0 : index
    %6 = vector.load %arg2[%c0_6, %c0_7] : memref<32x32xbf16, #tpu.memory_space<vmem>>, vector<32x32xbf16>
    %cst_8 = arith.constant dense<0.000000e+00> : vector<2x32xf32>
    %7 = tpu.matmul %5, %6, %cst_8 {dimension_numbers = #tpu.dot_dimension_numbers<[1], [0], [0], [1], [0, 0, 1, 1], [], []>} : vector<2x32xbf16>, vector<32x32xbf16>, vector<2x32xf32> -> vector<2x32xf32>
    %c0_9 = arith.constant 0 : index
    %c0_10 = arith.constant 0 : index
    %8 = vector.load %arg3[%c0_9, %c0_10] : memref<1x32xf32, #tpu.memory_space<vmem>>, vector<1x32xf32>
    %9 = vector.broadcast %8 : vector<1x32xf32> to vector<2x32xf32>
    %10 = arith.addf %7, %9 : vector<2x32xf32>
    %11 = math.tanh %10 : vector<2x32xf32>
    %12 = arith.truncf %11 : vector<2x32xf32> to vector<2x32xbf16>
    %c0_11 = arith.constant 0 : index
    %c0_12 = arith.constant 0 : index
    %c0_13 = arith.constant 0 : index
    %13 = vector.load %arg4[%c0_11, %c0_12, %c0_13] : memref<16x32x64xbf16, #tpu.memory_space<vmem>>, vector<1x32x64xbf16>
    %14 = vector.shape_cast %13 : vector<1x32x64xbf16> to vector<32x64xbf16>
    %cst_14 = arith.constant dense<0.000000e+00> : vector<2x64xf32>
    %15 = tpu.matmul %12, %14, %cst_14 {dimension_numbers = #tpu.dot_dimension_numbers<[1], [0], [0], [1], [0, 0, 1, 1], [], []>} : vector<2x32xbf16>, vector<32x64xbf16>, vector<2x64xf32> -> vector<2x64xf32>
    %c0_15 = arith.constant 0 : index
    %c0_16 = arith.constant 0 : index
    %c0_17 = arith.constant 0 : index
    %16 = vector.load %arg5[%c0_15, %c0_16, %c0_17] : memref<16x1x64xf32, #tpu.memory_space<vmem>>, vector<1x1x64xf32>
    %17 = vector.shape_cast %16 : vector<1x1x64xf32> to vector<1x64xf32>
    %18 = vector.broadcast %17 : vector<1x64xf32> to vector<2x64xf32>
    %19 = arith.addf %15, %18 : vector<2x64xf32>
    %c2 = arith.constant 2 : index
    %c0_18 = arith.constant 0 : index
    %20 = vector.load %arg13[%c2, %c0_18] : memref<36x64xf32, #tpu.memory_space<vmem>>, vector<2x64xf32>
    tpu.vector_store %arg13[%c2, %c0_18], %19 {strides = array<i32>} : memref<36x64xf32, #tpu.memory_space<vmem>>, vector<2x64xf32>,
    %c1 = arith.constant 1 : index
    %c0_19 = arith.constant 0 : index
    %c0_20 = arith.constant 0 : index
    %21 = vector.load %arg4[%c1, %c0_19, %c0_20] : memref<16x32x64xbf16, #tpu.memory_space<vmem>>, vector<1x32x64xbf16>
    %22 = vector.shape_cast %21 : vector<1x32x64xbf16> to vector<32x64xbf16>
    %cst_21 = arith.constant dense<0.000000e+00> : vector<2x64xf32>
    %23 = tpu.matmul %12, %22, %cst_21 {dimension_numbers = #tpu.dot_dimension_numbers<[1], [0], [0], [1], [0, 0, 1, 1], [], []>} : vector<2x32xbf16>, vector<32x64xbf16>, vector<2x64xf32> -> vector<2x64xf32>
    %c1_22 = arith.constant 1 : index
    %c0_23 = arith.constant 0 : index
    %c0_24 = arith.constant 0 : index
    %24 = vector.load %arg5[%c1_22, %c0_23, %c0_24] : memref<16x1x64xf32, #tpu.memory_space<vmem>>, vector<1x1x64xf32>
    %25 = vector.shape_cast %24 : vector<1x1x64xf32> to vector<1x64xf32>
    %26 = vector.broadcast %25 : vector<1x64xf32> to vector<2x64xf32>
    %27 = arith.addf %23, %26 : vector<2x64xf32>
    %c4 = arith.constant 4 : index
    %c0_25 = arith.constant 0 : index
    %28 = vector.load %arg13[%c4, %c0_25] : memref<36x64xf32, #tpu.memory_space<vmem>>, vector<2x64xf32>
    tpu.vector_store %arg13[%c4, %c0_25], %27 {strides = array<i32>} : memref<36x64xf32, #tpu.memory_space<vmem>>, vector<2x64xf32>,
    %c2_26 = arith.constant 2 : index
    %c0_27 = arith.constant 0 : index
    %c0_28 = arith.constant 0 : index
    %29 = vector.load %arg4[%c2_26, %c0_27, %c0_28] : memref<16x32x64xbf16, #tpu.memory_space<vmem>>, vector<1x32x64xbf16>
    %30 = vector.shape_cast %29 : vector<1x32x64xbf16> to vector<32x64xbf16>
    %cst_29 = arith.constant dense<0.000000e+00> : vector<2x64xf32>
    %31 = tpu.matmul %12, %30, %cst_29 {dimension_numbers = #tpu.dot_dimension_numbers<[1], [0], [0], [1], [0, 0, 1, 1], [], []>} : vector<2x32xbf16>, vector<32x64xbf16>, vector<2x64xf32> -> vector<2x64xf32>
    %c2_30 = arith.constant 2 : index
    %c0_31 = arith.constant 0 : index
    %c0_32 = arith.constant 0 : index
    %32 = vector.load %arg5[%c2_30, %c0_31, %c0_32] : memref<16x1x64xf32, #tpu.memory_space<vmem>>, vector<1x1x64xf32>
    %33 = vector.shape_cast %32 : vector<1x1x64xf32> to vector<1x64xf32>
    %34 = vector.broadcast %33 : vector<1x64xf32> to vector<2x64xf32>
    %35 = arith.addf %31, %34 : vector<2x64xf32>
    %c6 = arith.constant 6 : index
    %c0_33 = arith.constant 0 : index
    %36 = vector.load %arg13[%c6, %c0_33] : memref<36x64xf32, #tpu.memory_space<vmem>>, vector<2x64xf32>
    tpu.vector_store %arg13[%c6, %c0_33], %35 {strides = array<i32>} : memref<36x64xf32, #tpu.memory_space<vmem>>, vector<2x64xf32>,
    %c3 = arith.constant 3 : index
    %c0_34 = arith.constant 0 : index
    %c0_35 = arith.constant 0 : index
    %37 = vector.load %arg4[%c3, %c0_34, %c0_35] : memref<16x32x64xbf16, #tpu.memory_space<vmem>>, vector<1x32x64xbf16>
    %38 = vector.shape_cast %37 : vector<1x32x64xbf16> to vector<32x64xbf16>
    %cst_36 = arith.constant dense<0.000000e+00> : vector<2x64xf32>
    %39 = tpu.matmul %12, %38, %cst_36 {dimension_numbers = #tpu.dot_dimension_numbers<[1], [0], [0], [1], [0, 0, 1, 1], [], []>} : vector<2x32xbf16>, vector<32x64xbf16>, vector<2x64xf32> -> vector<2x64xf32>
    %c3_37 = arith.constant 3 : index
    %c0_38 = arith.constant 0 : index
    %c0_39 = arith.constant 0 : index
    %40 = vector.load %arg5[%c3_37, %c0_38, %c0_39] : memref<16x1x64xf32, #tpu.memory_space<vmem>>, vector<1x1x64xf32>
    %41 = vector.shape_cast %40 : vector<1x1x64xf32> to vector<1x64xf32>
    %42 = vector.broadcast %41 : vector<1x64xf32> to vector<2x64xf32>
    %43 = arith.addf %39, %42 : vector<2x64xf32>
    %c8 = arith.constant 8 : index
    %c0_40 = arith.constant 0 : index
    %44 = vector.load %arg13[%c8, %c0_40] : memref<36x64xf32, #tpu.memory_space<vmem>>, vector<2x64xf32>
    tpu.vector_store %arg13[%c8, %c0_40], %43 {strides = array<i32>} : memref<36x64xf32, #tpu.memory_space<vmem>>, vector<2x64xf32>,
    %c4_41 = arith.constant 4 : index
    %c0_42 = arith.constant 0 : index
    %c0_43 = arith.constant 0 : index
    %45 = vector.load %arg4[%c4_41, %c0_42, %c0_43] : memref<16x32x64xbf16, #tpu.memory_space<vmem>>, vector<1x32x64xbf16>
    %46 = vector.shape_cast %45 : vector<1x32x64xbf16> to vector<32x64xbf16>
    %cst_44 = arith.constant dense<0.000000e+00> : vector<2x64xf32>
    %47 = tpu.matmul %12, %46, %cst_44 {dimension_numbers = #tpu.dot_dimension_numbers<[1], [0], [0], [1], [0, 0, 1, 1], [], []>} : vector<2x32xbf16>, vector<32x64xbf16>, vector<2x64xf32> -> vector<2x64xf32>
    %c4_45 = arith.constant 4 : index
    %c0_46 = arith.constant 0 : index
    %c0_47 = arith.constant 0 : index
    %48 = vector.load %arg5[%c4_45, %c0_46, %c0_47] : memref<16x1x64xf32, #tpu.memory_space<vmem>>, vector<1x1x64xf32>
    %49 = vector.shape_cast %48 : vector<1x1x64xf32> to vector<1x64xf32>
    %50 = vector.broadcast %49 : vector<1x64xf32> to vector<2x64xf32>
    %51 = arith.addf %47, %50 : vector<2x64xf32>
    %c10 = arith.constant 10 : index
    %c0_48 = arith.constant 0 : index
    %52 = vector.load %arg13[%c10, %c0_48] : memref<36x64xf32, #tpu.memory_space<vmem>>, vector<2x64xf32>
    tpu.vector_store %arg13[%c10, %c0_48], %51 {strides = array<i32>} : memref<36x64xf32, #tpu.memory_space<vmem>>, vector<2x64xf32>,
    %c5 = arith.constant 5 : index
    %c0_49 = arith.constant 0 : index
    %c0_50 = arith.constant 0 : index
    %53 = vector.load %arg4[%c5, %c0_49, %c0_50] : memref<16x32x64xbf16, #tpu.memory_space<vmem>>, vector<1x32x64xbf16>
    %54 = vector.shape_cast %53 : vector<1x32x64xbf16> to vector<32x64xbf16>
    %cst_51 = arith.constant dense<0.000000e+00> : vector<2x64xf32>
    %55 = tpu.matmul %12, %54, %cst_51 {dimension_numbers = #tpu.dot_dimension_numbers<[1], [0], [0], [1], [0, 0, 1, 1], [], []>} : vector<2x32xbf16>, vector<32x64xbf16>, vector<2x64xf32> -> vector<2x64xf32>
    %c5_52 = arith.constant 5 : index
    %c0_53 = arith.constant 0 : index
    %c0_54 = arith.constant 0 : index
    %56 = vector.load %arg5[%c5_52, %c0_53, %c0_54] : memref<16x1x64xf32, #tpu.memory_space<vmem>>, vector<1x1x64xf32>
    %57 = vector.shape_cast %56 : vector<1x1x64xf32> to vector<1x64xf32>
    %58 = vector.broadcast %57 : vector<1x64xf32> to vector<2x64xf32>
    %59 = arith.addf %55, %58 : vector<2x64xf32>
    %c12 = arith.constant 12 : index
    %c0_55 = arith.constant 0 : index
    %60 = vector.load %arg13[%c12, %c0_55] : memref<36x64xf32, #tpu.memory_space<vmem>>, vector<2x64xf32>
    tpu.vector_store %arg13[%c12, %c0_55], %59 {strides = array<i32>} : memref<36x64xf32, #tpu.memory_space<vmem>>, vector<2x64xf32>,
    %c6_56 = arith.constant 6 : index
    %c0_57 = arith.constant 0 : index
    %c0_58 = arith.constant 0 : index
    %61 = vector.load %arg4[%c6_56, %c0_57, %c0_58] : memref<16x32x64xbf16, #tpu.memory_space<vmem>>, vector<1x32x64xbf16>
    %62 = vector.shape_cast %61 : vector<1x32x64xbf16> to vector<32x64xbf16>
    %cst_59 = arith.constant dense<0.000000e+00> : vector<2x64xf32>
    %63 = tpu.matmul %12, %62, %cst_59 {dimension_numbers = #tpu.dot_dimension_numbers<[1], [0], [0], [1], [0, 0, 1, 1], [], []>} : vector<2x32xbf16>, vector<32x64xbf16>, vector<2x64xf32> -> vector<2x64xf32>
    %c6_60 = arith.constant 6 : index
    %c0_61 = arith.constant 0 : index
    %c0_62 = arith.constant 0 : index
    %64 = vector.load %arg5[%c6_60, %c0_61, %c0_62] : memref<16x1x64xf32, #tpu.memory_space<vmem>>, vector<1x1x64xf32>
    %65 = vector.shape_cast %64 : vector<1x1x64xf32> to vector<1x64xf32>
    %66 = vector.broadcast %65 : vector<1x64xf32> to vector<2x64xf32>
    %67 = arith.addf %63, %66 : vector<2x64xf32>
    %c14 = arith.constant 14 : index
    %c0_63 = arith.constant 0 : index
    %68 = vector.load %arg13[%c14, %c0_63] : memref<36x64xf32, #tpu.memory_space<vmem>>, vector<2x64xf32>
    tpu.vector_store %arg13[%c14, %c0_63], %67 {strides = array<i32>} : memref<36x64xf32, #tpu.memory_space<vmem>>, vector<2x64xf32>,
    %c7 = arith.constant 7 : index
    %c0_64 = arith.constant 0 : index
    %c0_65 = arith.constant 0 : index
    %69 = vector.load %arg4[%c7, %c0_64, %c0_65] : memref<16x32x64xbf16, #tpu.memory_space<vmem>>, vector<1x32x64xbf16>
    %70 = vector.shape_cast %69 : vector<1x32x64xbf16> to vector<32x64xbf16>
    %cst_66 = arith.constant dense<0.000000e+00> : vector<2x64xf32>
    %71 = tpu.matmul %12, %70, %cst_66 {dimension_numbers = #tpu.dot_dimension_numbers<[1], [0], [0], [1], [0, 0, 1, 1], [], []>} : vector<2x32xbf16>, vector<32x64xbf16>, vector<2x64xf32> -> vector<2x64xf32>
    %c7_67 = arith.constant 7 : index
    %c0_68 = arith.constant 0 : index
    %c0_69 = arith.constant 0 : index
    %72 = vector.load %arg5[%c7_67, %c0_68, %c0_69] : memref<16x1x64xf32, #tpu.memory_space<vmem>>, vector<1x1x64xf32>
    %73 = vector.shape_cast %72 : vector<1x1x64xf32> to vector<1x64xf32>
    %74 = vector.broadcast %73 : vector<1x64xf32> to vector<2x64xf32>
    %75 = arith.addf %71, %74 : vector<2x64xf32>
    %c16 = arith.constant 16 : index
    %c0_70 = arith.constant 0 : index
    %76 = vector.load %arg13[%c16, %c0_70] : memref<36x64xf32, #tpu.memory_space<vmem>>, vector<2x64xf32>
    tpu.vector_store %arg13[%c16, %c0_70], %75 {strides = array<i32>} : memref<36x64xf32, #tpu.memory_space<vmem>>, vector<2x64xf32>,
    %c8_71 = arith.constant 8 : index
    %c0_72 = arith.constant 0 : index
    %c0_73 = arith.constant 0 : index
    %77 = vector.load %arg4[%c8_71, %c0_72, %c0_73] : memref<16x32x64xbf16, #tpu.memory_space<vmem>>, vector<1x32x64xbf16>
    %78 = vector.shape_cast %77 : vector<1x32x64xbf16> to vector<32x64xbf16>
    %cst_74 = arith.constant dense<0.000000e+00> : vector<2x64xf32>
    %79 = tpu.matmul %12, %78, %cst_74 {dimension_numbers = #tpu.dot_dimension_numbers<[1], [0], [0], [1], [0, 0, 1, 1], [], []>} : vector<2x32xbf16>, vector<32x64xbf16>, vector<2x64xf32> -> vector<2x64xf32>
    %c8_75 = arith.constant 8 : index
    %c0_76 = arith.constant 0 : index
    %c0_77 = arith.constant 0 : index
    %80 = vector.load %arg5[%c8_75, %c0_76, %c0_77] : memref<16x1x64xf32, #tpu.memory_space<vmem>>, vector<1x1x64xf32>
    %81 = vector.shape_cast %80 : vector<1x1x64xf32> to vector<1x64xf32>
    %82 = vector.broadcast %81 : vector<1x64xf32> to vector<2x64xf32>
    %83 = arith.addf %79, %82 : vector<2x64xf32>
    %c18 = arith.constant 18 : index
    %c0_78 = arith.constant 0 : index
    %84 = vector.load %arg13[%c18, %c0_78] : memref<36x64xf32, #tpu.memory_space<vmem>>, vector<2x64xf32>
    tpu.vector_store %arg13[%c18, %c0_78], %83 {strides = array<i32>} : memref<36x64xf32, #tpu.memory_space<vmem>>, vector<2x64xf32>,
    %c9 = arith.constant 9 : index
    %c0_79 = arith.constant 0 : index
    %c0_80 = arith.constant 0 : index
    %85 = vector.load %arg4[%c9, %c0_79, %c0_80] : memref<16x32x64xbf16, #tpu.memory_space<vmem>>, vector<1x32x64xbf16>
    %86 = vector.shape_cast %85 : vector<1x32x64xbf16> to vector<32x64xbf16>
    %cst_81 = arith.constant dense<0.000000e+00> : vector<2x64xf32>
    %87 = tpu.matmul %12, %86, %cst_81 {dimension_numbers = #tpu.dot_dimension_numbers<[1], [0], [0], [1], [0, 0, 1, 1], [], []>} : vector<2x32xbf16>, vector<32x64xbf16>, vector<2x64xf32> -> vector<2x64xf32>
    %c9_82 = arith.constant 9 : index
    %c0_83 = arith.constant 0 : index
    %c0_84 = arith.constant 0 : index
    %88 = vector.load %arg5[%c9_82, %c0_83, %c0_84] : memref<16x1x64xf32, #tpu.memory_space<vmem>>, vector<1x1x64xf32>
    %89 = vector.shape_cast %88 : vector<1x1x64xf32> to vector<1x64xf32>
    %90 = vector.broadcast %89 : vector<1x64xf32> to vector<2x64xf32>
    %91 = arith.addf %87, %90 : vector<2x64xf32>
    %c20 = arith.constant 20 : index
    %c0_85 = arith.constant 0 : index
    %92 = vector.load %arg13[%c20, %c0_85] : memref<36x64xf32, #tpu.memory_space<vmem>>, vector<2x64xf32>
    tpu.vector_store %arg13[%c20, %c0_85], %91 {strides = array<i32>} : memref<36x64xf32, #tpu.memory_space<vmem>>, vector<2x64xf32>,
    %c10_86 = arith.constant 10 : index
    %c0_87 = arith.constant 0 : index
    %c0_88 = arith.constant 0 : index
    %93 = vector.load %arg4[%c10_86, %c0_87, %c0_88] : memref<16x32x64xbf16, #tpu.memory_space<vmem>>, vector<1x32x64xbf16>
    %94 = vector.shape_cast %93 : vector<1x32x64xbf16> to vector<32x64xbf16>
    %cst_89 = arith.constant dense<0.000000e+00> : vector<2x64xf32>
    %95 = tpu.matmul %12, %94, %cst_89 {dimension_numbers = #tpu.dot_dimension_numbers<[1], [0], [0], [1], [0, 0, 1, 1], [], []>} : vector<2x32xbf16>, vector<32x64xbf16>, vector<2x64xf32> -> vector<2x64xf32>
    %c10_90 = arith.constant 10 : index
    %c0_91 = arith.constant 0 : index
    %c0_92 = arith.constant 0 : index
    %96 = vector.load %arg5[%c10_90, %c0_91, %c0_92] : memref<16x1x64xf32, #tpu.memory_space<vmem>>, vector<1x1x64xf32>
    %97 = vector.shape_cast %96 : vector<1x1x64xf32> to vector<1x64xf32>
    %98 = vector.broadcast %97 : vector<1x64xf32> to vector<2x64xf32>
    %99 = arith.addf %95, %98 : vector<2x64xf32>
    %c22 = arith.constant 22 : index
    %c0_93 = arith.constant 0 : index
    %100 = vector.load %arg13[%c22, %c0_93] : memref<36x64xf32, #tpu.memory_space<vmem>>, vector<2x64xf32>
    tpu.vector_store %arg13[%c22, %c0_93], %99 {strides = array<i32>} : memref<36x64xf32, #tpu.memory_space<vmem>>, vector<2x64xf32>,
    %c11 = arith.constant 11 : index
    %c0_94 = arith.constant 0 : index
    %c0_95 = arith.constant 0 : index
    %101 = vector.load %arg4[%c11, %c0_94, %c0_95] : memref<16x32x64xbf16, #tpu.memory_space<vmem>>, vector<1x32x64xbf16>
    %102 = vector.shape_cast %101 : vector<1x32x64xbf16> to vector<32x64xbf16>
    %cst_96 = arith.constant dense<0.000000e+00> : vector<2x64xf32>
    %103 = tpu.matmul %12, %102, %cst_96 {dimension_numbers = #tpu.dot_dimension_numbers<[1], [0], [0], [1], [0, 0, 1, 1], [], []>} : vector<2x32xbf16>, vector<32x64xbf16>, vector<2x64xf32> -> vector<2x64xf32>
    %c11_97 = arith.constant 11 : index
    %c0_98 = arith.constant 0 : index
    %c0_99 = arith.constant 0 : index
    %104 = vector.load %arg5[%c11_97, %c0_98, %c0_99] : memref<16x1x64xf32, #tpu.memory_space<vmem>>, vector<1x1x64xf32>
    %105 = vector.shape_cast %104 : vector<1x1x64xf32> to vector<1x64xf32>
    %106 = vector.broadcast %105 : vector<1x64xf32> to vector<2x64xf32>
    %107 = arith.addf %103, %106 : vector<2x64xf32>
    %c24 = arith.constant 24 : index
    %c0_100 = arith.constant 0 : index
    %108 = vector.load %arg13[%c24, %c0_100] : memref<36x64xf32, #tpu.memory_space<vmem>>, vector<2x64xf32>
    tpu.vector_store %arg13[%c24, %c0_100], %107 {strides = array<i32>} : memref<36x64xf32, #tpu.memory_space<vmem>>, vector<2x64xf32>,
    %c12_101 = arith.constant 12 : index
    %c0_102 = arith.constant 0 : index
    %c0_103 = arith.constant 0 : index
    %109 = vector.load %arg4[%c12_101, %c0_102, %c0_103] : memref<16x32x64xbf16, #tpu.memory_space<vmem>>, vector<1x32x64xbf16>
    %110 = vector.shape_cast %109 : vector<1x32x64xbf16> to vector<32x64xbf16>
    %cst_104 = arith.constant dense<0.000000e+00> : vector<2x64xf32>
    %111 = tpu.matmul %12, %110, %cst_104 {dimension_numbers = #tpu.dot_dimension_numbers<[1], [0], [0], [1], [0, 0, 1, 1], [], []>} : vector<2x32xbf16>, vector<32x64xbf16>, vector<2x64xf32> -> vector<2x64xf32>
    %c12_105 = arith.constant 12 : index
    %c0_106 = arith.constant 0 : index
    %c0_107 = arith.constant 0 : index
    %112 = vector.load %arg5[%c12_105, %c0_106, %c0_107] : memref<16x1x64xf32, #tpu.memory_space<vmem>>, vector<1x1x64xf32>
    %113 = vector.shape_cast %112 : vector<1x1x64xf32> to vector<1x64xf32>
    %114 = vector.broadcast %113 : vector<1x64xf32> to vector<2x64xf32>
    %115 = arith.addf %111, %114 : vector<2x64xf32>
    %c26 = arith.constant 26 : index
    %c0_108 = arith.constant 0 : index
    %116 = vector.load %arg13[%c26, %c0_108] : memref<36x64xf32, #tpu.memory_space<vmem>>, vector<2x64xf32>
    tpu.vector_store %arg13[%c26, %c0_108], %115 {strides = array<i32>} : memref<36x64xf32, #tpu.memory_space<vmem>>, vector<2x64xf32>,
    %c13 = arith.constant 13 : index
    %c0_109 = arith.constant 0 : index
    %c0_110 = arith.constant 0 : index
    %117 = vector.load %arg4[%c13, %c0_109, %c0_110] : memref<16x32x64xbf16, #tpu.memory_space<vmem>>, vector<1x32x64xbf16>
    %118 = vector.shape_cast %117 : vector<1x32x64xbf16> to vector<32x64xbf16>
    %cst_111 = arith.constant dense<0.000000e+00> : vector<2x64xf32>
    %119 = tpu.matmul %12, %118, %cst_111 {dimension_numbers = #tpu.dot_dimension_numbers<[1], [0], [0], [1], [0, 0, 1, 1], [], []>} : vector<2x32xbf16>, vector<32x64xbf16>, vector<2x64xf32> -> vector<2x64xf32>
    %c13_112 = arith.constant 13 : index
    %c0_113 = arith.constant 0 : index
    %c0_114 = arith.constant 0 : index
    %120 = vector.load %arg5[%c13_112, %c0_113, %c0_114] : memref<16x1x64xf32, #tpu.memory_space<vmem>>, vector<1x1x64xf32>
    %121 = vector.shape_cast %120 : vector<1x1x64xf32> to vector<1x64xf32>
    %122 = vector.broadcast %121 : vector<1x64xf32> to vector<2x64xf32>
    %123 = arith.addf %119, %122 : vector<2x64xf32>
    %c28 = arith.constant 28 : index
    %c0_115 = arith.constant 0 : index
    %124 = vector.load %arg13[%c28, %c0_115] : memref<36x64xf32, #tpu.memory_space<vmem>>, vector<2x64xf32>
    tpu.vector_store %arg13[%c28, %c0_115], %123 {strides = array<i32>} : memref<36x64xf32, #tpu.memory_space<vmem>>, vector<2x64xf32>,
    %c14_116 = arith.constant 14 : index
    %c0_117 = arith.constant 0 : index
    %c0_118 = arith.constant 0 : index
    %125 = vector.load %arg4[%c14_116, %c0_117, %c0_118] : memref<16x32x64xbf16, #tpu.memory_space<vmem>>, vector<1x32x64xbf16>
    %126 = vector.shape_cast %125 : vector<1x32x64xbf16> to vector<32x64xbf16>
    %cst_119 = arith.constant dense<0.000000e+00> : vector<2x64xf32>
    %127 = tpu.matmul %12, %126, %cst_119 {dimension_numbers = #tpu.dot_dimension_numbers<[1], [0], [0], [1], [0, 0, 1, 1], [], []>} : vector<2x32xbf16>, vector<32x64xbf16>, vector<2x64xf32> -> vector<2x64xf32>
    %c14_120 = arith.constant 14 : index
    %c0_121 = arith.constant 0 : index
    %c0_122 = arith.constant 0 : index
    %128 = vector.load %arg5[%c14_120, %c0_121, %c0_122] : memref<16x1x64xf32, #tpu.memory_space<vmem>>, vector<1x1x64xf32>
    %129 = vector.shape_cast %128 : vector<1x1x64xf32> to vector<1x64xf32>
    %130 = vector.broadcast %129 : vector<1x64xf32> to vector<2x64xf32>
    %131 = arith.addf %127, %130 : vector<2x64xf32>
    %c30 = arith.constant 30 : index
    %c0_123 = arith.constant 0 : index
    %132 = vector.load %arg13[%c30, %c0_123] : memref<36x64xf32, #tpu.memory_space<vmem>>, vector<2x64xf32>
    tpu.vector_store %arg13[%c30, %c0_123], %131 {strides = array<i32>} : memref<36x64xf32, #tpu.memory_space<vmem>>, vector<2x64xf32>,
    %c15 = arith.constant 15 : index
    %c0_124 = arith.constant 0 : index
    %c0_125 = arith.constant 0 : index
    %133 = vector.load %arg4[%c15, %c0_124, %c0_125] : memref<16x32x64xbf16, #tpu.memory_space<vmem>>, vector<1x32x64xbf16>
    %134 = vector.shape_cast %133 : vector<1x32x64xbf16> to vector<32x64xbf16>
    %cst_126 = arith.constant dense<0.000000e+00> : vector<2x64xf32>
    %135 = tpu.matmul %12, %134, %cst_126 {dimension_numbers = #tpu.dot_dimension_numbers<[1], [0], [0], [1], [0, 0, 1, 1], [], []>} : vector<2x32xbf16>, vector<32x64xbf16>, vector<2x64xf32> -> vector<2x64xf32>
    %c15_127 = arith.constant 15 : index
    %c0_128 = arith.constant 0 : index
    %c0_129 = arith.constant 0 : index
    %136 = vector.load %arg5[%c15_127, %c0_128, %c0_129] : memref<16x1x64xf32, #tpu.memory_space<vmem>>, vector<1x1x64xf32>
    %137 = vector.shape_cast %136 : vector<1x1x64xf32> to vector<1x64xf32>
    %138 = vector.broadcast %137 : vector<1x64xf32> to vector<2x64xf32>
    %139 = arith.addf %135, %138 : vector<2x64xf32>
    %c32 = arith.constant 32 : index
    %c0_130 = arith.constant 0 : index
    %140 = vector.load %arg13[%c32, %c0_130] : memref<36x64xf32, #tpu.memory_space<vmem>>, vector<2x64xf32>
    tpu.vector_store %arg13[%c32, %c0_130], %139 {strides = array<i32>} : memref<36x64xf32, #tpu.memory_space<vmem>>, vector<2x64xf32>,
    %c0_i32 = arith.constant 0 : i32
    %c64_i32 = arith.constant 64 : i32
    %141 = arith.addi %c0_i32, %c64_i32 : i32
    %c1_i32 = arith.constant 1 : i32
    scf.for %arg15 = %c0_i32 to %141 step %c1_i32  : i32 {
      %c63_i32 = arith.constant 63 : i32
      %152 = arith.subi %c63_i32, %arg15 : i32
      %c2_140 = arith.constant 2 : index
      %c0_141 = arith.constant 0 : index
      %153 = vector.load %arg13[%c2_140, %c0_141] : memref<36x64xf32, #tpu.memory_space<vmem>>, vector<32x64xf32>
      %c0_142 = arith.constant 0 : index
      %c0_143 = arith.constant 0 : index
      %154 = vector.load %arg7[%c0_142, %c0_143] : memref<1x512xf32, #tpu.memory_space<vmem>>, vector<1x512xf32>
      %c0_144 = arith.constant 0 : index
      %c0_145 = arith.constant 0 : index
      %155 = vector.load %arg13[%c0_144, %c0_145] : memref<36x64xf32, #tpu.memory_space<vmem>>, vector<32x64xf32>
      %156 = arith.truncf %155 : vector<32x64xf32> to vector<32x64xbf16>
      %c0_146 = arith.constant 0 : index
      %c0_147 = arith.constant 0 : index
      %c0_148 = arith.constant 0 : index
      %157 = vector.load %arg6[%c0_146, %c0_147, %c0_148] : memref<3x64x512xbf16, #tpu.memory_space<vmem>>, vector<1x64x512xbf16>
      %158 = vector.shape_cast %157 : vector<1x64x512xbf16> to vector<64x512xbf16>
      %cst_149 = arith.constant dense<0.000000e+00> : vector<32x512xf32>
      %159 = tpu.matmul %156, %158, %cst_149 {dimension_numbers = #tpu.dot_dimension_numbers<[1], [0], [0], [1], [0, 0, 1, 1], [], []>} : vector<32x64xbf16>, vector<64x512xbf16>, vector<32x512xf32> -> vector<32x512xf32>
      %c2_150 = arith.constant 2 : index
      %c0_151 = arith.constant 0 : index
      %160 = vector.load %arg13[%c2_150, %c0_151] : memref<36x64xf32, #tpu.memory_space<vmem>>, vector<32x64xf32>
      %161 = arith.truncf %160 : vector<32x64xf32> to vector<32x64xbf16>
      %c1_152 = arith.constant 1 : index
      %c0_153 = arith.constant 0 : index
      %c0_154 = arith.constant 0 : index
      %162 = vector.load %arg6[%c1_152, %c0_153, %c0_154] : memref<3x64x512xbf16, #tpu.memory_space<vmem>>, vector<1x64x512xbf16>
      %163 = vector.shape_cast %162 : vector<1x64x512xbf16> to vector<64x512xbf16>
      %cst_155 = arith.constant dense<0.000000e+00> : vector<32x512xf32>
      %164 = tpu.matmul %161, %163, %cst_155 {dimension_numbers = #tpu.dot_dimension_numbers<[1], [0], [0], [1], [0, 0, 1, 1], [], []>} : vector<32x64xbf16>, vector<64x512xbf16>, vector<32x512xf32> -> vector<32x512xf32>
      %165 = arith.addf %159, %164 : vector<32x512xf32>
      %c4_156 = arith.constant 4 : index
      %c0_157 = arith.constant 0 : index
      %166 = vector.load %arg13[%c4_156, %c0_157] : memref<36x64xf32, #tpu.memory_space<vmem>>, vector<32x64xf32>
      %167 = arith.truncf %166 : vector<32x64xf32> to vector<32x64xbf16>
      %c2_158 = arith.constant 2 : index
      %c0_159 = arith.constant 0 : index
      %c0_160 = arith.constant 0 : index
      %168 = vector.load %arg6[%c2_158, %c0_159, %c0_160] : memref<3x64x512xbf16, #tpu.memory_space<vmem>>, vector<1x64x512xbf16>
      %169 = vector.shape_cast %168 : vector<1x64x512xbf16> to vector<64x512xbf16>
      %cst_161 = arith.constant dense<0.000000e+00> : vector<32x512xf32>
      %170 = tpu.matmul %167, %169, %cst_161 {dimension_numbers = #tpu.dot_dimension_numbers<[1], [0], [0], [1], [0, 0, 1, 1], [], []>} : vector<32x64xbf16>, vector<64x512xbf16>, vector<32x512xf32> -> vector<32x512xf32>
      %171 = arith.addf %165, %170 : vector<32x512xf32>
      %172 = vector.broadcast %154 : vector<1x512xf32> to vector<32x512xf32>
      %173 = arith.addf %171, %172 : vector<32x512xf32>
      %174 = arith.negf %173 : vector<32x512xf32>
      %175 = math.exp %174 : vector<32x512xf32>
      %cst_162 = arith.constant 1.000000e+00 : f32
      %176 = vector.broadcast %cst_162 : f32 to vector<32x512xf32>
      %177 = arith.addf %176, %175 : vector<32x512xf32>
      %178 = arith.divf %176, %177 : vector<32x512xf32>
      %179 = arith.mulf %173, %178 : vector<32x512xf32>
      %180 = arith.index_cast %152 : i32 to index
      %c0_163 = arith.constant 0 : index
      %c0_164 = arith.constant 0 : index
      %181 = vector.load %arg8[%180, %c0_163, %c0_164] : memref<64x1x512xf32, #tpu.memory_space<vmem>>, vector<1x1x512xf32>
      %182 = vector.shape_cast %181 : vector<1x1x512xf32> to vector<1x512xf32>
      %183 = vector.broadcast %182 : vector<1x512xf32> to vector<32x512xf32>
      %184 = arith.addf %179, %183 : vector<32x512xf32>
      %c2_165 = arith.constant 2 : index
      %c0_166 = arith.constant 0 : index
      %185 = vector.load %arg14[%c2_165, %c0_166] : memref<36x512xf32, #tpu.memory_space<vmem>>, vector<32x512xf32>
      tpu.vector_store %arg14[%c2_165, %c0_166], %184 {strides = array<i32>} : memref<36x512xf32, #tpu.memory_space<vmem>>, vector<32x512xf32>,
      %c0_167 = arith.constant 0 : index
      %c0_168 = arith.constant 0 : index
      %186 = vector.load %arg10[%c0_167, %c0_168] : memref<1x64xf32, #tpu.memory_space<vmem>>, vector<1x64xf32>
      %c0_169 = arith.constant 0 : index
      %c0_170 = arith.constant 0 : index
      %187 = vector.load %arg14[%c0_169, %c0_170] : memref<36x512xf32, #tpu.memory_space<vmem>>, vector<32x512xf32>
      %188 = arith.truncf %187 : vector<32x512xf32> to vector<32x512xbf16>
      %c0_171 = arith.constant 0 : index
      %c0_172 = arith.constant 0 : index
      %c0_173 = arith.constant 0 : index
      %189 = vector.load %arg9[%c0_171, %c0_172, %c0_173] : memref<3x512x64xbf16, #tpu.memory_space<vmem>>, vector<1x512x64xbf16>
      %190 = vector.shape_cast %189 : vector<1x512x64xbf16> to vector<512x64xbf16>
      %cst_174 = arith.constant dense<0.000000e+00> : vector<32x64xf32>
      %191 = tpu.matmul %188, %190, %cst_174 {dimension_numbers = #tpu.dot_dimension_numbers<[1], [0], [0], [1], [0, 0, 1, 1], [], []>} : vector<32x512xbf16>, vector<512x64xbf16>, vector<32x64xf32> -> vector<32x64xf32>
      %c2_175 = arith.constant 2 : index
      %c0_176 = arith.constant 0 : index
      %192 = vector.load %arg14[%c2_175, %c0_176] : memref<36x512xf32, #tpu.memory_space<vmem>>, vector<32x512xf32>
      %193 = arith.truncf %192 : vector<32x512xf32> to vector<32x512xbf16>
      %c1_177 = arith.constant 1 : index
      %c0_178 = arith.constant 0 : index
      %c0_179 = arith.constant 0 : index
      %194 = vector.load %arg9[%c1_177, %c0_178, %c0_179] : memref<3x512x64xbf16, #tpu.memory_space<vmem>>, vector<1x512x64xbf16>
      %195 = vector.shape_cast %194 : vector<1x512x64xbf16> to vector<512x64xbf16>
      %cst_180 = arith.constant dense<0.000000e+00> : vector<32x64xf32>
      %196 = tpu.matmul %193, %195, %cst_180 {dimension_numbers = #tpu.dot_dimension_numbers<[1], [0], [0], [1], [0, 0, 1, 1], [], []>} : vector<32x512xbf16>, vector<512x64xbf16>, vector<32x64xf32> -> vector<32x64xf32>
      %197 = arith.addf %191, %196 : vector<32x64xf32>
      %c4_181 = arith.constant 4 : index
      %c0_182 = arith.constant 0 : index
      %198 = vector.load %arg14[%c4_181, %c0_182] : memref<36x512xf32, #tpu.memory_space<vmem>>, vector<32x512xf32>
      %199 = arith.truncf %198 : vector<32x512xf32> to vector<32x512xbf16>
      %c2_183 = arith.constant 2 : index
      %c0_184 = arith.constant 0 : index
      %c0_185 = arith.constant 0 : index
      %200 = vector.load %arg9[%c2_183, %c0_184, %c0_185] : memref<3x512x64xbf16, #tpu.memory_space<vmem>>, vector<1x512x64xbf16>
      %201 = vector.shape_cast %200 : vector<1x512x64xbf16> to vector<512x64xbf16>
      %cst_186 = arith.constant dense<0.000000e+00> : vector<32x64xf32>
      %202 = tpu.matmul %199, %201, %cst_186 {dimension_numbers = #tpu.dot_dimension_numbers<[1], [0], [0], [1], [0, 0, 1, 1], [], []>} : vector<32x512xbf16>, vector<512x64xbf16>, vector<32x64xf32> -> vector<32x64xf32>
      %203 = arith.addf %197, %202 : vector<32x64xf32>
      %204 = vector.broadcast %186 : vector<1x64xf32> to vector<32x64xf32>
      %205 = arith.addf %203, %204 : vector<32x64xf32>
      %c0_187 = arith.constant 0 : index
      %206 = arith.index_cast %152 : i32 to index
      %207 = memref.load %arg0[%c0_187, %206] : memref<3x64xf32, #tpu.memory_space<smem>>
      %c1_188 = arith.constant 1 : index
      %208 = arith.index_cast %152 : i32 to index
      %209 = memref.load %arg0[%c1_188, %208] : memref<3x64xf32, #tpu.memory_space<smem>>
      %c2_189 = arith.constant 2 : index
      %210 = arith.index_cast %152 : i32 to index
      %211 = memref.load %arg0[%c2_189, %210] : memref<3x64xf32, #tpu.memory_space<smem>>
      %212 = arith.index_cast %arg15 : i32 to index
      %c0_190 = arith.constant 0 : index
      %c0_191 = arith.constant 0 : index
      %213 = vector.load %arg11[%212, %c0_190, %c0_191] : memref<64x32x64xf32, #tpu.memory_space<vmem>>, vector<1x32x64xf32>
      %214 = vector.shape_cast %213 : vector<1x32x64xf32> to vector<32x64xf32>
      %215 = vector.broadcast %209 : f32 to vector<32x64xf32>
      %216 = arith.mulf %215, %205 : vector<32x64xf32>
      %217 = arith.subf %153, %216 : vector<32x64xf32>
      %218 = vector.broadcast %207 : f32 to vector<32x64xf32>
      %219 = arith.mulf %218, %217 : vector<32x64xf32>
      %220 = vector.broadcast %211 : f32 to vector<32x64xf32>
      %221 = arith.mulf %220, %214 : vector<32x64xf32>
      %222 = arith.addf %219, %221 : vector<32x64xf32>
      %c2_192 = arith.constant 2 : index
      %c0_193 = arith.constant 0 : index
      %223 = vector.load %arg13[%c2_192, %c0_193] : memref<36x64xf32, #tpu.memory_space<vmem>>, vector<32x64xf32>
      tpu.vector_store %arg13[%c2_192, %c0_193], %222 {strides = array<i32>} : memref<36x64xf32, #tpu.memory_space<vmem>>, vector<32x64xf32>,
    }
    %c64_i32_131 = arith.constant 64 : i32
    %c2_132 = arith.constant 2 : index
    %c0_133 = arith.constant 0 : index
    %142 = vector.load %arg13[%c2_132, %c0_133] : memref<36x64xf32, #tpu.memory_space<vmem>>, vector<32x64xf32>
    %cst_134 = arith.constant -1.000000e+00 : f32
    %cst_135 = arith.constant 1.000000e+00 : f32
    %143 = vector.broadcast %cst_134 : f32 to vector<32x64xf32>
    %144 = arith.maximumf %143, %142 : vector<32x64xf32>
    %145 = vector.broadcast %cst_135 : f32 to vector<32x64xf32>
    %146 = arith.minimumf %145, %144 : vector<32x64xf32>
    %cst_136 = arith.constant 1.000000e+00 : f32
    %147 = vector.broadcast %cst_136 : f32 to vector<32x64xf32>
    %148 = arith.addf %146, %147 : vector<32x64xf32>
    %cst_137 = arith.constant 5.000000e-01 : f32
    %149 = vector.broadcast %cst_137 : f32 to vector<32x64xf32>
    %150 = arith.mulf %148, %149 : vector<32x64xf32>
    %c0_138 = arith.constant 0 : index
    %c0_139 = arith.constant 0 : index
    %151 = vector.load %arg12[%c0_138, %c0_139] : memref<32x64xf32, #tpu.memory_space<vmem>>, vector<32x64xf32>
    tpu.vector_store %arg12[%c0_138, %c0_139], %150 {strides = array<i32>} : memref<32x64xf32, #tpu.memory_space<vmem>>, vector<32x64xf32>,
    return
  }
}

</mosaic_0001>

<llo_original>
// kernel: language_model_to_ddpm_forward.1
$region0: #{language_model_to_ddpm_forward.1}
  #allocation0 [shape = 'u32[]', space=smem, size = 0x4, offset = 0x4, fixed_abs, tag = 'smem constant byte address 0x4 - core index']
  #allocation1 [shape = 'u32[144,128]{1,0:T(1,128)}', space=vmem, size = 0x12000, scoped, tag = 'internal scratch']
  #allocation2 [shape = 'f32[36,64]{1,0:T(8,128)}', space=vmem, size = 0x5000, scoped, tag = 'scratch operand']
  #allocation3 [shape = 'f32[36,512]{1,0:T(8,128)}', space=vmem, size = 0x14000, scoped, tag = 'scratch operand']
  %s0 = inlined_call_operand.vmem [shape: f32[3,64], index: 0, kind: input, shape index: {}]
  %s1 = inlined_call_operand.vmem [shape: f32[2,32], index: 1, kind: input, shape index: {}]
  %s2 = inlined_call_operand.vmem [shape: bf16[32,32], index: 2, kind: input, shape index: {}]
  %s3 = inlined_call_operand.vmem [shape: f32[1,32], index: 3, kind: input, shape index: {}]
  %s4 = inlined_call_operand.vmem [shape: bf16[16,32,64], index: 4, kind: input, shape index: {}]
  %s5 = inlined_call_operand.vmem [shape: f32[16,1,64], index: 5, kind: input, shape index: {}]
  %s6 = inlined_call_operand.vmem [shape: bf16[3,64,512], index: 6, kind: input, shape index: {}]
  %s7 = inlined_call_operand.vmem [shape: f32[1,512], index: 7, kind: input, shape index: {}]
  %s8 = inlined_call_operand.vmem [shape: f32[64,1,512], index: 8, kind: input, shape index: {}]
  %s9 = inlined_call_operand.vmem [shape: bf16[3,512,64], index: 9, kind: input, shape index: {}]
  %s10 = inlined_call_operand.vmem [shape: f32[1,64], index: 10, kind: input, shape index: {}]
  %s11 = inlined_call_operand.vmem [shape: f32[64,32,64], index: 11, kind: input, shape index: {}]
  %s12 = inlined_call_operand.vmem [shape: f32[32,64], index: 12, kind: output, shape index: {}]
  %s13 = sld [smem:[#allocation0]]
  $region69: #{language_model_to_ddpm_forward.1} parent=0
    _
  %s15 = ssub.s32 1, %s13
  %s16 = scalar_select 0, %s15, %s13
  $region1: #{language_model_to_ddpm_forward.1} parent=0
    #allocation4 [shape = 'u8[2048]{0}', space=smem, size = 0x800, scoped, tag = 'input window, operand 0, single buffered']
    #allocation5 [shape = 's32[1]{0}', space=sflag, size = 0x4, scoped, tag = 'scoped memory for language_model_to_ddpm_forward.1']
    %17 = vsyncpa [#allocation5], 0
    // Predicated region
    $region2: #{language_model_to_ddpm_forward.1} parent=1 // pred_check
      _
    $region3: #{language_model_to_ddpm_forward.1} parent=1 // pred_check_branch
      %19 = sbr.rel (0) target = $region5
    $region4: #{language_model_to_ddpm_forward.1} parent=1 // pred_region
      %s21 = ssub.s32 64, 64
      %22 = vsyncadd [#allocation5], %s21
      %s24 = sshll.u32 %s0, 4
      %s25 = int_to_ptr.vmem [resolvable:$true] %s24
      %27 = dma.vmem_to_smem %s25, 64, [#allocation4], [#allocation5]
    $region5: #{language_model_to_ddpm_forward.1} parent=1 // pred_fallthru
      _
    // Predicated region
    $region6: #{language_model_to_ddpm_forward.1} parent=1 // pred_check
      _
    $region7: #{language_model_to_ddpm_forward.1} parent=1 // pred_check_branch
      %29 = sbr.rel (0) target = $region9
    $region8: #{language_model_to_ddpm_forward.1} parent=1 // pred_region
      _
    $region9: #{language_model_to_ddpm_forward.1} parent=1 // pred_fallthru
      _
    // Predicated region
    $region10: #{language_model_to_ddpm_forward.1} parent=1 // pred_check
      _
    $region11: #{language_model_to_ddpm_forward.1} parent=1 // pred_check_branch
      %31 = sbr.rel (0) target = $region13
    $region12: #{language_model_to_ddpm_forward.1} parent=1 // pred_region
      _
    $region13: #{language_model_to_ddpm_forward.1} parent=1 // pred_fallthru
      _
    // Predicated region
    $region14: #{language_model_to_ddpm_forward.1} parent=1 // pred_check
      _
    $region15: #{language_model_to_ddpm_forward.1} parent=1 // pred_check_branch
      %33 = sbr.rel (0) target = $region17
    $region16: #{language_model_to_ddpm_forward.1} parent=1 // pred_region
      _
    $region17: #{language_model_to_ddpm_forward.1} parent=1 // pred_fallthru
      _
    // Predicated region
    $region18: #{language_model_to_ddpm_forward.1} parent=1 // pred_check
      _
    $region19: #{language_model_to_ddpm_forward.1} parent=1 // pred_check_branch
      %35 = sbr.rel (0) target = $region21
    $region20: #{language_model_to_ddpm_forward.1} parent=1 // pred_region
      _
    $region21: #{language_model_to_ddpm_forward.1} parent=1 // pred_fallthru
      _
    // Predicated region
    $region22: #{language_model_to_ddpm_forward.1} parent=1 // pred_check
      _
    $region23: #{language_model_to_ddpm_forward.1} parent=1 // pred_check_branch
      %37 = sbr.rel (0) target = $region25
    $region24: #{language_model_to_ddpm_forward.1} parent=1 // pred_region
      _
    $region25: #{language_model_to_ddpm_forward.1} parent=1 // pred_fallthru
      _
    // Predicated region
    $region26: #{language_model_to_ddpm_forward.1} parent=1 // pred_check
      _
    $region27: #{language_model_to_ddpm_forward.1} parent=1 // pred_check_branch
      %39 = sbr.rel (0) target = $region29
    $region28: #{language_model_to_ddpm_forward.1} parent=1 // pred_region
      _
    $region29: #{language_model_to_ddpm_forward.1} parent=1 // pred_fallthru
      _
    // Predicated region
    $region30: #{language_model_to_ddpm_forward.1} parent=1 // pred_check
      _
    $region31: #{language_model_to_ddpm_forward.1} parent=1 // pred_check_branch
      %41 = sbr.rel (0) target = $region33
    $region32: #{language_model_to_ddpm_forward.1} parent=1 // pred_region
      _
    $region33: #{language_model_to_ddpm_forward.1} parent=1 // pred_fallthru
      _
    // Predicated region
    $region34: #{language_model_to_ddpm_forward.1} parent=1 // pred_check
      _
    $region35: #{language_model_to_ddpm_forward.1} parent=1 // pred_check_branch
      %43 = sbr.rel (0) target = $region37
    $region36: #{language_model_to_ddpm_forward.1} parent=1 // pred_region
      _
    $region37: #{language_model_to_ddpm_forward.1} parent=1 // pred_fallthru
      _
    // Predicated region
    $region38: #{language_model_to_ddpm_forward.1} parent=1 // pred_check
      _
    $region39: #{language_model_to_ddpm_forward.1} parent=1 // pred_check_branch
      %45 = sbr.rel (0) target = $region41
    $region40: #{language_model_to_ddpm_forward.1} parent=1 // pred_region
      _
    $region41: #{language_model_to_ddpm_forward.1} parent=1 // pred_fallthru
      _
    // Predicated region
    $region42: #{language_model_to_ddpm_forward.1} parent=1 // pred_check
      _
    $region43: #{language_model_to_ddpm_forward.1} parent=1 // pred_check_branch
      %47 = sbr.rel (0) target = $region45
    $region44: #{language_model_to_ddpm_forward.1} parent=1 // pred_region
      _
    $region45: #{language_model_to_ddpm_forward.1} parent=1 // pred_fallthru
      _
    // Predicated region
    $region46: #{language_model_to_ddpm_forward.1} parent=1 // pred_check
      _
    $region47: #{language_model_to_ddpm_forward.1} parent=1 // pred_check_branch
      %49 = sbr.rel (0) target = $region49
    $region48: #{language_model_to_ddpm_forward.1} parent=1 // pred_region
      _
    $region49: #{language_model_to_ddpm_forward.1} parent=1 // pred_fallthru
      _
    // Predicated region
    $region50: #{language_model_to_ddpm_forward.1} parent=1 // pred_check
      _
    $region51: #{language_model_to_ddpm_forward.1} parent=1 // pred_check_branch
      %51 = sbr.rel (0) target = $region53
    $region52: #{language_model_to_ddpm_forward.1} parent=1 // pred_region
      %52 = dma.done [#allocation5], 64
    $region53: #{language_model_to_ddpm_forward.1} parent=1 // pred_fallthru
      _
    %53 = sfence
    %vm55 = vcmask 523264
    %56 = vst.msk [vmem:[#allocation2] sm:$0xff] %vm55, 0.0
    %57 = vst.msk [vmem:[#allocation2 + $0x8] sm:$0xff] %vm55, 0.0
    %58 = vst.msk [vmem:[#allocation2 + $0x10] sm:$0xff] %vm55, 0.0
    %59 = vst.msk [vmem:[#allocation2 + $0x18] sm:$0xff] %vm55, 0.0
    %vm60 = vcmask 519168
    %61 = vst.msk [vmem:[#allocation2 + $0x20] sm:$0xf] %vm60, 0.0
    %62 = vst [vmem:[#allocation3] sm:$0xff] 0.0
    %63 = vst [vmem:[#allocation3 + $0x8] sm:$0xff] 0.0
    %64 = vst [vmem:[#allocation3 + $0x10] sm:$0xff] 0.0
    %65 = vst [vmem:[#allocation3 + $0x18] sm:$0xff] 0.0
    %66 = vst [vmem:[#allocation3 + $0x20] sm:$0xff] 0.0
    %67 = vst [vmem:[#allocation3 + $0x28] sm:$0xff] 0.0
    %68 = vst [vmem:[#allocation3 + $0x30] sm:$0xff] 0.0
    %69 = vst [vmem:[#allocation3 + $0x38] sm:$0xff] 0.0
    %70 = vst [vmem:[#allocation3 + $0x40] sm:$0xff] 0.0
    %71 = vst [vmem:[#allocation3 + $0x48] sm:$0xff] 0.0
    %72 = vst [vmem:[#allocation3 + $0x50] sm:$0xff] 0.0
    %73 = vst [vmem:[#allocation3 + $0x58] sm:$0xff] 0.0
    %74 = vst [vmem:[#allocation3 + $0x60] sm:$0xff] 0.0
    %75 = vst [vmem:[#allocation3 + $0x68] sm:$0xff] 0.0
    %76 = vst [vmem:[#allocation3 + $0x70] sm:$0xff] 0.0
    %77 = vst [vmem:[#allocation3 + $0x78] sm:$0xff] 0.0
    %78 = vst [vmem:[#allocation3 + $0x80] sm:$0xf] 0.0
    %79 = vst [vmem:[#allocation3 + $0x88] sm:$0xf] 0.0
    %80 = vst [vmem:[#allocation3 + $0x90] sm:$0xf] 0.0
    %81 = vst [vmem:[#allocation3 + $0x98] sm:$0xf] 0.0
    %v82 = vld [vmem:[%s1] sm:$0x3]
    %v83 = vpack.c.bf16 %v82, %v82
    %v84 = vld [vmem:[%s2] sm:$0xf]
    %v85 = vld [vmem:[%s2 + $0x4] sm:$0xf]
    %v86 = vld [vmem:[%s2 + $0x8] sm:$0xf]
    %v87 = vld [vmem:[%s2 + $0xc] sm:$0xf]
    %v88 = vld [vmem:[%s3] sm:$0x1]
    %v90 = vlaneseq
    %v91 = vshrl.u32 %v90, 7
    %v92 = vsub.s32 0, %v91
    %v93 = vrot.slane %v88, %v92
    %v99 = vunpack.c.l.b16 %v84
    %v100 = vunpack.c.l.b16 %v85
    %v101 = vunpack.c.l.b16 %v86
    %v102 = vunpack.c.l.b16 %v87
    %v103 = vpack.c.b16 %v100, %v99
    %v104 = vpack.c.b16 %v102, %v101
    %vm107 = vcmask 261120
    %v109 = vsel %vm107, %v83, 0
    %111 = vmatprep.subr.bf16.mxu0 0
    %112 = vmatpush1.bf16.msra.mxu0 %v103
    %113 = vmatprep.subr.bf16.mxu0 0
    %114 = vmatpush1.bf16.msra.mxu0 %v104
    %115 = vmatprep.subr.bf16.mxu0 0
    %116 = vmatpush1.bf16.msra.mxu0 0
    %117 = vmatprep.subr.bf16.mxu0 0
    %118 = vmatpush1.bf16.msra.mxu0 0
    %119 = vmatprep.subr.bf16.mxu0 0
    %120 = vmatpush1.bf16.msra.mxu0 0
    %121 = vmatprep.subr.bf16.mxu0 0
    %122 = vmatpush1.bf16.msra.mxu0 0
    %123 = vmatprep.subr.bf16.mxu0 0
    %124 = vmatpush1.bf16.msra.mxu0 0
    %125 = vmatprep.subr.bf16.mxu0 0
    %126 = vmatpush1.bf16.msra.mxu0 0
    %127 = vmatprep.subr.bf16.mxu0 0
    %128 = vmatpush1.bf16.msra.mxu0 0
    %129 = vmatprep.subr.bf16.mxu0 0
    %130 = vmatpush1.bf16.msra.mxu0 0
    %131 = vmatprep.subr.bf16.mxu0 0
    %132 = vmatpush1.bf16.msra.mxu0 0
    %133 = vmatprep.subr.bf16.mxu0 0
    %134 = vmatpush1.bf16.msra.mxu0 0
    %135 = vmatprep.subr.bf16.mxu0 0
    %136 = vmatpush1.bf16.msra.mxu0 0
    %137 = vmatprep.subr.bf16.mxu0 0
    %138 = vmatpush1.bf16.msra.mxu0 0
    %139 = vmatprep.subr.bf16.mxu0 0
    %140 = vmatpush1.bf16.msra.mxu0 0
    %141 = vmatprep.subr.bf16.mxu0 0
    %142 = vmatpush1.bf16.msra.mxu0 0
    %143 = vmatprep.mubr.bf16.mxu0 0
    %144 = vmatmul.mubr.bf16.gmra.mrb[0].mxu0 %v109
    %v145 = vpop.f32.mrb[0].mxu0
    %v146 = vadd.f32 %v93, %v145
    %v147 = vpop.f32.mrb[0].mxu0
    %v148 = vpop.f32.mrb[0].mxu0
    %v149 = vpop.f32.mrb[0].mxu0
    %150 = vdwg.mxu0
    %v151 = vtanh.pop %v146
    %v152 = vpack.c.bf16 %v151, %v151
    %v153 = vld [vmem:[%s4] sm:$0xf]
    %v154 = vld [vmem:[%s4 + $0x4] sm:$0xf]
    %v155 = vld [vmem:[%s4 + $0x8] sm:$0xf]
    %v156 = vld [vmem:[%s4 + $0xc] sm:$0xf]
    %v157 = vld [vmem:[%s5] sm:$0x1]
    %v159 = vlaneseq
    %v160 = vshrl.u32 %v159, 7
    %v161 = vsub.s32 0, %v160
    %v162 = vrot.slane %v157, %v161
    %v168 = vunpack.c.l.b16 %v153
    %v169 = vunpack.c.l.b16 %v154
    %v170 = vunpack.c.l.b16 %v155
    %v171 = vunpack.c.l.b16 %v156
    %v172 = vpack.c.b16 %v169, %v168
    %v173 = vpack.c.b16 %v171, %v170
    %v177 = vsel %vm107, %v152, 0
    %179 = vmatprep.subr.bf16.mxu0 0
    %180 = vmatpush1.bf16.msra.mxu0 %v172
    %181 = vmatprep.subr.bf16.mxu0 0
    %182 = vmatpush1.bf16.msra.mxu0 %v173
    %183 = vmatprep.subr.bf16.mxu0 0
    %184 = vmatpush1.bf16.msra.mxu0 0
    %185 = vmatprep.subr.bf16.mxu0 0
    %186 = vmatpush1.bf16.msra.mxu0 0
    %187 = vmatprep.subr.bf16.mxu0 0
    %188 = vmatpush1.bf16.msra.mxu0 0
    %189 = vmatprep.subr.bf16.mxu0 0
    %190 = vmatpush1.bf16.msra.mxu0 0
    %191 = vmatprep.subr.bf16.mxu0 0
    %192 = vmatpush1.bf16.msra.mxu0 0
    %193 = vmatprep.subr.bf16.mxu0 0
    %194 = vmatpush1.bf16.msra.mxu0 0
    %195 = vmatprep.subr.bf16.mxu0 0
    %196 = vmatpush1.bf16.msra.mxu0 0
    %197 = vmatprep.subr.bf16.mxu0 0
    %198 = vmatpush1.bf16.msra.mxu0 0
    %199 = vmatprep.subr.bf16.mxu0 0
    %200 = vmatpush1.bf16.msra.mxu0 0
    %201 = vmatprep.subr.bf16.mxu0 0
    %202 = vmatpush1.bf16.msra.mxu0 0
    %203 = vmatprep.subr.bf16.mxu0 0
    %204 = vmatpush1.bf16.msra.mxu0 0
    %205 = vmatprep.subr.bf16.mxu0 0
    %206 = vmatpush1.bf16.msra.mxu0 0
    %207 = vmatprep.subr.bf16.mxu0 0
    %208 = vmatpush1.bf16.msra.mxu0 0
    %209 = vmatprep.subr.bf16.mxu0 0
    %210 = vmatpush1.bf16.msra.mxu0 0
    %211 = vmatprep.mubr.bf16.mxu0 0
    %212 = vmatmul.mubr.bf16.gmra.mrb[0].mxu0 %v177
    %v213 = vpop.f32.mrb[0].mxu0
    %v214 = vadd.f32 %v162, %v213
    %v215 = vpop.f32.mrb[0].mxu0
    %v216 = vpop.f32.mrb[0].mxu0
    %v217 = vpop.f32.mrb[0].mxu0
    %218 = vdwg.mxu0
    %vm219 = vcmask 517120
    %220 = vst.msk [vmem:[#allocation2 + $0x2] sm:$0x3] %vm219, %v214
    %s221 = scalar_lea.vmem %s4, 16
    %v222 = vld [vmem:[%s221] sm:$0xf]
    %v223 = vld [vmem:[%s221 + $0x4] sm:$0xf]
    %v224 = vld [vmem:[%s221 + $0x8] sm:$0xf]
    %v225 = vld [vmem:[%s221 + $0xc] sm:$0xf]
    %s226 = scalar_lea.vmem %s5, 1
    %v227 = vld [vmem:[%s226] sm:$0x1]
    %v229 = vlaneseq
    %v230 = vshrl.u32 %v229, 7
    %v231 = vsub.s32 0, %v230
    %v232 = vrot.slane %v227, %v231
    %v238 = vunpack.c.l.b16 %v222
    %v239 = vunpack.c.l.b16 %v223
    %v240 = vunpack.c.l.b16 %v224
    %v241 = vunpack.c.l.b16 %v225
    %v242 = vpack.c.b16 %v239, %v238
    %v243 = vpack.c.b16 %v241, %v240
    %246 = vmatprep.subr.bf16.mxu0 0
    %247 = vmatpush1.bf16.msra.mxu0 %v242
    %248 = vmatprep.subr.bf16.mxu0 0
    %249 = vmatpush1.bf16.msra.mxu0 %v243
    %250 = vmatprep.subr.bf16.mxu0 0
    %251 = vmatpush1.bf16.msra.mxu0 0
    %252 = vmatprep.subr.bf16.mxu0 0
    %253 = vmatpush1.bf16.msra.mxu0 0
    %254 = vmatprep.subr.bf16.mxu0 0
    %255 = vmatpush1.bf16.msra.mxu0 0
    %256 = vmatprep.subr.bf16.mxu0 0
    %257 = vmatpush1.bf16.msra.mxu0 0
    %258 = vmatprep.subr.bf16.mxu0 0
    %259 = vmatpush1.bf16.msra.mxu0 0
    %260 = vmatprep.subr.bf16.mxu0 0
    %261 = vmatpush1.bf16.msra.mxu0 0
    %262 = vmatprep.subr.bf16.mxu0 0
    %263 = vmatpush1.bf16.msra.mxu0 0
    %264 = vmatprep.subr.bf16.mxu0 0
    %265 = vmatpush1.bf16.msra.mxu0 0
    %266 = vmatprep.subr.bf16.mxu0 0
    %267 = vmatpush1.bf16.msra.mxu0 0
    %268 = vmatprep.subr.bf16.mxu0 0
    %269 = vmatpush1.bf16.msra.mxu0 0
    %270 = vmatprep.subr.bf16.mxu0 0
    %271 = vmatpush1.bf16.msra.mxu0 0
    %272 = vmatprep.subr.bf16.mxu0 0
    %273 = vmatpush1.bf16.msra.mxu0 0
    %274 = vmatprep.subr.bf16.mxu0 0
    %275 = vmatpush1.bf16.msra.mxu0 0
    %276 = vmatprep.subr.bf16.mxu0 0
    %277 = vmatpush1.bf16.msra.mxu0 0
    %278 = vmatprep.mubr.bf16.mxu0 0
    %279 = vmatmul.mubr.bf16.gmra.mrb[0].mxu0 %v177
    %v280 = vpop.f32.mrb[0].mxu0
    %v281 = vadd.f32 %v232, %v280
    %v282 = vpop.f32.mrb[0].mxu0
    %v283 = vpop.f32.mrb[0].mxu0
    %v284 = vpop.f32.mrb[0].mxu0
    %285 = vdwg.mxu0
    %286 = vst.msk [vmem:[#allocation2 + $0x4] sm:$0x3] %vm219, %v281
    %s287 = scalar_lea.vmem %s4, 32
    %v288 = vld [vmem:[%s287] sm:$0xf]
    %v289 = vld [vmem:[%s287 + $0x4] sm:$0xf]
    %v290 = vld [vmem:[%s287 + $0x8] sm:$0xf]
    %v291 = vld [vmem:[%s287 + $0xc] sm:$0xf]
    %s292 = scalar_lea.vmem %s5, 2
    %v293 = vld [vmem:[%s292] sm:$0x1]
    %v295 = vlaneseq
    %v296 = vshrl.u32 %v295, 7
    %v297 = vsub.s32 0, %v296
    %v298 = vrot.slane %v293, %v297
    %v304 = vunpack.c.l.b16 %v288
    %v305 = vunpack.c.l.b16 %v289
    %v306 = vunpack.c.l.b16 %v290
    %v307 = vunpack.c.l.b16 %v291
    %v308 = vpack.c.b16 %v305, %v304
    %v309 = vpack.c.b16 %v307, %v306
    %312 = vmatprep.subr.bf16.mxu0 0
    %313 = vmatpush1.bf16.msra.mxu0 %v308
    %314 = vmatprep.subr.bf16.mxu0 0
    %315 = vmatpush1.bf16.msra.mxu0 %v309
    %316 = vmatprep.subr.bf16.mxu0 0
    %317 = vmatpush1.bf16.msra.mxu0 0
    %318 = vmatprep.subr.bf16.mxu0 0
    %319 = vmatpush1.bf16.msra.mxu0 0
    %320 = vmatprep.subr.bf16.mxu0 0
    %321 = vmatpush1.bf16.msra.mxu0 0
    %322 = vmatprep.subr.bf16.mxu0 0
    %323 = vmatpush1.bf16.msra.mxu0 0
    %324 = vmatprep.subr.bf16.mxu0 0
    %325 = vmatpush1.bf16.msra.mxu0 0
    %326 = vmatprep.subr.bf16.mxu0 0
    %327 = vmatpush1.bf16.msra.mxu0 0
    %328 = vmatprep.subr.bf16.mxu0 0
    %329 = vmatpush1.bf16.msra.mxu0 0
    %330 = vmatprep.subr.bf16.mxu0 0
    %331 = vmatpush1.bf16.msra.mxu0 0
    %332 = vmatprep.subr.bf16.mxu0 0
    %333 = vmatpush1.bf16.msra.mxu0 0
    %334 = vmatprep.subr.bf16.mxu0 0
    %335 = vmatpush1.bf16.msra.mxu0 0
    %336 = vmatprep.subr.bf16.mxu0 0
    %337 = vmatpush1.bf16.msra.mxu0 0
    %338 = vmatprep.subr.bf16.mxu0 0
    %339 = vmatpush1.bf16.msra.mxu0 0
    %340 = vmatprep.subr.bf16.mxu0 0
    %341 = vmatpush1.bf16.msra.mxu0 0
    %342 = vmatprep.subr.bf16.mxu0 0
    %343 = vmatpush1.bf16.msra.mxu0 0
    %344 = vmatprep.mubr.bf16.mxu0 0
    %345 = vmatmul.mubr.bf16.gmra.mrb[0].mxu0 %v177
    %v346 = vpop.f32.mrb[0].mxu0
    %v347 = vadd.f32 %v298, %v346
    %v348 = vpop.f32.mrb[0].mxu0
    %v349 = vpop.f32.mrb[0].mxu0
    %v350 = vpop.f32.mrb[0].mxu0
    %351 = vdwg.mxu0
    %352 = vst.msk [vmem:[#allocation2 + $0x6] sm:$0x3] %vm219, %v347
    %s353 = scalar_lea.vmem %s4, 48
    %v354 = vld [vmem:[%s353] sm:$0xf]
    %v355 = vld [vmem:[%s353 + $0x4] sm:$0xf]
    %v356 = vld [vmem:[%s353 + $0x8] sm:$0xf]
    %v357 = vld [vmem:[%s353 + $0xc] sm:$0xf]
    %s358 = scalar_lea.vmem %s5, 3
    %v359 = vld [vmem:[%s358] sm:$0x1]
    %v361 = vlaneseq
    %v362 = vshrl.u32 %v361, 7
    %v363 = vsub.s32 0, %v362
    %v364 = vrot.slane %v359, %v363
    %v370 = vunpack.c.l.b16 %v354
    %v371 = vunpack.c.l.b16 %v355
    %v372 = vunpack.c.l.b16 %v356
    %v373 = vunpack.c.l.b16 %v357
    %v374 = vpack.c.b16 %v371, %v370
    %v375 = vpack.c.b16 %v373, %v372
    %378 = vmatprep.subr.bf16.mxu0 0
    %379 = vmatpush1.bf16.msra.mxu0 %v374
    %380 = vmatprep.subr.bf16.mxu0 0
    %381 = vmatpush1.bf16.msra.mxu0 %v375
    %382 = vmatprep.subr.bf16.mxu0 0
    %383 = vmatpush1.bf16.msra.mxu0 0
    %384 = vmatprep.subr.bf16.mxu0 0
    %385 = vmatpush1.bf16.msra.mxu0 0
    %386 = vmatprep.subr.bf16.mxu0 0
    %387 = vmatpush1.bf16.msra.mxu0 0
    %388 = vmatprep.subr.bf16.mxu0 0
    %389 = vmatpush1.bf16.msra.mxu0 0
    %390 = vmatprep.subr.bf16.mxu0 0
    %391 = vmatpush1.bf16.msra.mxu0 0
    %392 = vmatprep.subr.bf16.mxu0 0
    %393 = vmatpush1.bf16.msra.mxu0 0
    %394 = vmatprep.subr.bf16.mxu0 0
    %395 = vmatpush1.bf16.msra.mxu0 0
    %396 = vmatprep.subr.bf16.mxu0 0
    %397 = vmatpush1.bf16.msra.mxu0 0
    %398 = vmatprep.subr.bf16.mxu0 0
    %399 = vmatpush1.bf16.msra.mxu0 0
    %400 = vmatprep.subr.bf16.mxu0 0
    %401 = vmatpush1.bf16.msra.mxu0 0
    %402 = vmatprep.subr.bf16.mxu0 0
    %403 = vmatpush1.bf16.msra.mxu0 0
    %404 = vmatprep.subr.bf16.mxu0 0
    %405 = vmatpush1.bf16.msra.mxu0 0
    %406 = vmatprep.subr.bf16.mxu0 0
    %407 = vmatpush1.bf16.msra.mxu0 0
    %408 = vmatprep.subr.bf16.mxu0 0
    %409 = vmatpush1.bf16.msra.mxu0 0
    %410 = vmatprep.mubr.bf16.mxu0 0
    %411 = vmatmul.mubr.bf16.gmra.mrb[0].mxu0 %v177
    %v412 = vpop.f32.mrb[0].mxu0
    %v413 = vadd.f32 %v364, %v412
    %v414 = vpop.f32.mrb[0].mxu0
    %v415 = vpop.f32.mrb[0].mxu0
    %v416 = vpop.f32.mrb[0].mxu0
    %417 = vdwg.mxu0
    %418 = vst.msk [vmem:[#allocation2 + $0x8] sm:$0x3] %vm219, %v413
    %s419 = scalar_lea.vmem %s4, 64
    %v420 = vld [vmem:[%s419] sm:$0xf]
    %v421 = vld [vmem:[%s419 + $0x4] sm:$0xf]
    %v422 = vld [vmem:[%s419 + $0x8] sm:$0xf]
    %v423 = vld [vmem:[%s419 + $0xc] sm:$0xf]
    %s424 = scalar_lea.vmem %s5, 4
    %v425 = vld [vmem:[%s424] sm:$0x1]
    %v427 = vlaneseq
    %v428 = vshrl.u32 %v427, 7
    %v429 = vsub.s32 0, %v428
    %v430 = vrot.slane %v425, %v429
    %v436 = vunpack.c.l.b16 %v420
    %v437 = vunpack.c.l.b16 %v421
    %v438 = vunpack.c.l.b16 %v422
    %v439 = vunpack.c.l.b16 %v423
    %v440 = vpack.c.b16 %v437, %v436
    %v441 = vpack.c.b16 %v439, %v438
    %444 = vmatprep.subr.bf16.mxu0 0
    %445 = vmatpush1.bf16.msra.mxu0 %v440
    %446 = vmatprep.subr.bf16.mxu0 0
    %447 = vmatpush1.bf16.msra.mxu0 %v441
    %448 = vmatprep.subr.bf16.mxu0 0
    %449 = vmatpush1.bf16.msra.mxu0 0
    %450 = vmatprep.subr.bf16.mxu0 0
    %451 = vmatpush1.bf16.msra.mxu0 0
    %452 = vmatprep.subr.bf16.mxu0 0
    %453 = vmatpush1.bf16.msra.mxu0 0
    %454 = vmatprep.subr.bf16.mxu0 0
    %455 = vmatpush1.bf16.msra.mxu0 0
    %456 = vmatprep.subr.bf16.mxu0 0
    %457 = vmatpush1.bf16.msra.mxu0 0
    %458 = vmatprep.subr.bf16.mxu0 0
    %459 = vmatpush1.bf16.msra.mxu0 0
    %460 = vmatprep.subr.bf16.mxu0 0
    %461 = vmatpush1.bf16.msra.mxu0 0
    %462 = vmatprep.subr.bf16.mxu0 0
    %463 = vmatpush1.bf16.msra.mxu0 0
    %464 = vmatprep.subr.bf16.mxu0 0
    %465 = vmatpush1.bf16.msra.mxu0 0
    %466 = vmatprep.subr.bf16.mxu0 0
    %467 = vmatpush1.bf16.msra.mxu0 0
    %468 = vmatprep.subr.bf16.mxu0 0
    %469 = vmatpush1.bf16.msra.mxu0 0
    %470 = vmatprep.subr.bf16.mxu0 0
    %471 = vmatpush1.bf16.msra.mxu0 0
    %472 = vmatprep.subr.bf16.mxu0 0
    %473 = vmatpush1.bf16.msra.mxu0 0
    %474 = vmatprep.subr.bf16.mxu0 0
    %475 = vmatpush1.bf16.msra.mxu0 0
    %476 = vmatprep.mubr.bf16.mxu0 0
    %477 = vmatmul.mubr.bf16.gmra.mrb[0].mxu0 %v177
    %v478 = vpop.f32.mrb[0].mxu0
    %v479 = vadd.f32 %v430, %v478
    %v480 = vpop.f32.mrb[0].mxu0
    %v481 = vpop.f32.mrb[0].mxu0
    %v482 = vpop.f32.mrb[0].mxu0
    %483 = vdwg.mxu0
    %484 = vst.msk [vmem:[#allocation2 + $0xa] sm:$0x3] %vm219, %v479
    %s485 = scalar_lea.vmem %s4, 80
    %v486 = vld [vmem:[%s485] sm:$0xf]
    %v487 = vld [vmem:[%s485 + $0x4] sm:$0xf]
    %v488 = vld [vmem:[%s485 + $0x8] sm:$0xf]
    %v489 = vld [vmem:[%s485 + $0xc] sm:$0xf]
    %s490 = scalar_lea.vmem %s5, 5
    %v491 = vld [vmem:[%s490] sm:$0x1]
    %v493 = vlaneseq
    %v494 = vshrl.u32 %v493, 7
    %v495 = vsub.s32 0, %v494
    %v496 = vrot.slane %v491, %v495
    %v502 = vunpack.c.l.b16 %v486
    %v503 = vunpack.c.l.b16 %v487
    %v504 = vunpack.c.l.b16 %v488
    %v505 = vunpack.c.l.b16 %v489
    %v506 = vpack.c.b16 %v503, %v502
    %v507 = vpack.c.b16 %v505, %v504
    %510 = vmatprep.subr.bf16.mxu0 0
    %511 = vmatpush1.bf16.msra.mxu0 %v506
    %512 = vmatprep.subr.bf16.mxu0 0
    %513 = vmatpush1.bf16.msra.mxu0 %v507
    %514 = vmatprep.subr.bf16.mxu0 0
    %515 = vmatpush1.bf16.msra.mxu0 0
    %516 = vmatprep.subr.bf16.mxu0 0
    %517 = vmatpush1.bf16.msra.mxu0 0
    %518 = vmatprep.subr.bf16.mxu0 0
    %519 = vmatpush1.bf16.msra.mxu0 0
    %520 = vmatprep.subr.bf16.mxu0 0
    %521 = vmatpush1.bf16.msra.mxu0 0
    %522 = vmatprep.subr.bf16.mxu0 0
    %523 = vmatpush1.bf16.msra.mxu0 0
    %524 = vmatprep.subr.bf16.mxu0 0
    %525 = vmatpush1.bf16.msra.mxu0 0
    %526 = vmatprep.subr.bf16.mxu0 0
    %527 = vmatpush1.bf16.msra.mxu0 0
    %528 = vmatprep.subr.bf16.mxu0 0
    %529 = vmatpush1.bf16.msra.mxu0 0
    %530 = vmatprep.subr.bf16.mxu0 0
    %531 = vmatpush1.bf16.msra.mxu0 0
    %532 = vmatprep.subr.bf16.mxu0 0
    %533 = vmatpush1.bf16.msra.mxu0 0
    %534 = vmatprep.subr.bf16.mxu0 0
    %535 = vmatpush1.bf16.msra.mxu0 0
    %536 = vmatprep.subr.bf16.mxu0 0
    %537 = vmatpush1.bf16.msra.mxu0 0
    %538 = vmatprep.subr.bf16.mxu0 0
    %539 = vmatpush1.bf16.msra.mxu0 0
    %540 = vmatprep.subr.bf16.mxu0 0
    %541 = vmatpush1.bf16.msra.mxu0 0
    %542 = vmatprep.mubr.bf16.mxu0 0
    %543 = vmatmul.mubr.bf16.gmra.mrb[0].mxu0 %v177
    %v544 = vpop.f32.mrb[0].mxu0
    %v545 = vadd.f32 %v496, %v544
    %v546 = vpop.f32.mrb[0].mxu0
    %v547 = vpop.f32.mrb[0].mxu0
    %v548 = vpop.f32.mrb[0].mxu0
    %549 = vdwg.mxu0
    %550 = vst.msk [vmem:[#allocation2 + $0xc] sm:$0x3] %vm219, %v545
    %s551 = scalar_lea.vmem %s4, 96
    %v552 = vld [vmem:[%s551] sm:$0xf]
    %v553 = vld [vmem:[%s551 + $0x4] sm:$0xf]
    %v554 = vld [vmem:[%s551 + $0x8] sm:$0xf]
    %v555 = vld [vmem:[%s551 + $0xc] sm:$0xf]
    %s556 = scalar_lea.vmem %s5, 6
    %v557 = vld [vmem:[%s556] sm:$0x1]
    %v559 = vlaneseq
    %v560 = vshrl.u32 %v559, 7
    %v561 = vsub.s32 0, %v560
    %v562 = vrot.slane %v557, %v561
    %v568 = vunpack.c.l.b16 %v552
    %v569 = vunpack.c.l.b16 %v553
    %v570 = vunpack.c.l.b16 %v554
    %v571 = vunpack.c.l.b16 %v555
    %v572 = vpack.c.b16 %v569, %v568
    %v573 = vpack.c.b16 %v571, %v570
    %576 = vmatprep.subr.bf16.mxu0 0
    %577 = vmatpush1.bf16.msra.mxu0 %v572
    %578 = vmatprep.subr.bf16.mxu0 0
    %579 = vmatpush1.bf16.msra.mxu0 %v573
    %580 = vmatprep.subr.bf16.mxu0 0
    %581 = vmatpush1.bf16.msra.mxu0 0
    %582 = vmatprep.subr.bf16.mxu0 0
    %583 = vmatpush1.bf16.msra.mxu0 0
    %584 = vmatprep.subr.bf16.mxu0 0
    %585 = vmatpush1.bf16.msra.mxu0 0
    %586 = vmatprep.subr.bf16.mxu0 0
    %587 = vmatpush1.bf16.msra.mxu0 0
    %588 = vmatprep.subr.bf16.mxu0 0
    %589 = vmatpush1.bf16.msra.mxu0 0
    %590 = vmatprep.subr.bf16.mxu0 0
    %591 = vmatpush1.bf16.msra.mxu0 0
    %592 = vmatprep.subr.bf16.mxu0 0
    %593 = vmatpush1.bf16.msra.mxu0 0
    %594 = vmatprep.subr.bf16.mxu0 0
    %595 = vmatpush1.bf16.msra.mxu0 0
    %596 = vmatprep.subr.bf16.mxu0 0
    %597 = vmatpush1.bf16.msra.mxu0 0
    %598 = vmatprep.subr.bf16.mxu0 0
    %599 = vmatpush1.bf16.msra.mxu0 0
    %600 = vmatprep.subr.bf16.mxu0 0
    %601 = vmatpush1.bf16.msra.mxu0 0
    %602 = vmatprep.subr.bf16.mxu0 0
    %603 = vmatpush1.bf16.msra.mxu0 0
    %604 = vmatprep.subr.bf16.mxu0 0
    %605 = vmatpush1.bf16.msra.mxu0 0
    %606 = vmatprep.subr.bf16.mxu0 0
    %607 = vmatpush1.bf16.msra.mxu0 0
    %608 = vmatprep.mubr.bf16.mxu0 0
    %609 = vmatmul.mubr.bf16.gmra.mrb[0].mxu0 %v177
    %v610 = vpop.f32.mrb[0].mxu0
    %v611 = vadd.f32 %v562, %v610
    %v612 = vpop.f32.mrb[0].mxu0
    %v613 = vpop.f32.mrb[0].mxu0
    %v614 = vpop.f32.mrb[0].mxu0
    %615 = vdwg.mxu0
    %616 = vst.msk [vmem:[#allocation2 + $0xe] sm:$0x3] %vm219, %v611
    %s617 = scalar_lea.vmem %s4, 112
    %v618 = vld [vmem:[%s617] sm:$0xf]
    %v619 = vld [vmem:[%s617 + $0x4] sm:$0xf]
    %v620 = vld [vmem:[%s617 + $0x8] sm:$0xf]
    %v621 = vld [vmem:[%s617 + $0xc] sm:$0xf]
    %s622 = scalar_lea.vmem %s5, 7
    %v623 = vld [vmem:[%s622] sm:$0x1]
    %v625 = vlaneseq
    %v626 = vshrl.u32 %v625, 7
    %v627 = vsub.s32 0, %v626
    %v628 = vrot.slane %v623, %v627
    %v634 = vunpack.c.l.b16 %v618
    %v635 = vunpack.c.l.b16 %v619
    %v636 = vunpack.c.l.b16 %v620
    %v637 = vunpack.c.l.b16 %v621
    %v638 = vpack.c.b16 %v635, %v634
    %v639 = vpack.c.b16 %v637, %v636
    %642 = vmatprep.subr.bf16.mxu0 0
    %643 = vmatpush1.bf16.msra.mxu0 %v638
    %644 = vmatprep.subr.bf16.mxu0 0
    %645 = vmatpush1.bf16.msra.mxu0 %v639
    %646 = vmatprep.subr.bf16.mxu0 0
    %647 = vmatpush1.bf16.msra.mxu0 0
    %648 = vmatprep.subr.bf16.mxu0 0
    %649 = vmatpush1.bf16.msra.mxu0 0
    %650 = vmatprep.subr.bf16.mxu0 0
    %651 = vmatpush1.bf16.msra.mxu0 0
    %652 = vmatprep.subr.bf16.mxu0 0
    %653 = vmatpush1.bf16.msra.mxu0 0
    %654 = vmatprep.subr.bf16.mxu0 0
    %655 = vmatpush1.bf16.msra.mxu0 0
    %656 = vmatprep.subr.bf16.mxu0 0
    %657 = vmatpush1.bf16.msra.mxu0 0
    %658 = vmatprep.subr.bf16.mxu0 0
    %659 = vmatpush1.bf16.msra.mxu0 0
    %660 = vmatprep.subr.bf16.mxu0 0
    %661 = vmatpush1.bf16.msra.mxu0 0
    %662 = vmatprep.subr.bf16.mxu0 0
    %663 = vmatpush1.bf16.msra.mxu0 0
    %664 = vmatprep.subr.bf16.mxu0 0
    %665 = vmatpush1.bf16.msra.mxu0 0
    %666 = vmatprep.subr.bf16.mxu0 0
    %667 = vmatpush1.bf16.msra.mxu0 0
    %668 = vmatprep.subr.bf16.mxu0 0
    %669 = vmatpush1.bf16.msra.mxu0 0
    %670 = vmatprep.subr.bf16.mxu0 0
    %671 = vmatpush1.bf16.msra.mxu0 0
    %672 = vmatprep.subr.bf16.mxu0 0
    %673 = vmatpush1.bf16.msra.mxu0 0
    %674 = vmatprep.mubr.bf16.mxu0 0
    %675 = vmatmul.mubr.bf16.gmra.mrb[0].mxu0 %v177
    %v676 = vpop.f32.mrb[0].mxu0
    %v677 = vadd.f32 %v628, %v676
    %v678 = vpop.f32.mrb[0].mxu0
    %v679 = vpop.f32.mrb[0].mxu0
    %v680 = vpop.f32.mrb[0].mxu0
    %681 = vdwg.mxu0
    %682 = vst.msk [vmem:[#allocation2 + $0x10] sm:$0x3] %vm219, %v677
    %s683 = scalar_lea.vmem %s4, 128
    %v684 = vld [vmem:[%s683] sm:$0xf]
    %v685 = vld [vmem:[%s683 + $0x4] sm:$0xf]
    %v686 = vld [vmem:[%s683 + $0x8] sm:$0xf]
    %v687 = vld [vmem:[%s683 + $0xc] sm:$0xf]
    %s688 = scalar_lea.vmem %s5, 8
    %v689 = vld [vmem:[%s688] sm:$0x1]
    %v691 = vlaneseq
    %v692 = vshrl.u32 %v691, 7
    %v693 = vsub.s32 0, %v692
    %v694 = vrot.slane %v689, %v693
    %v700 = vunpack.c.l.b16 %v684
    %v701 = vunpack.c.l.b16 %v685
    %v702 = vunpack.c.l.b16 %v686
    %v703 = vunpack.c.l.b16 %v687
    %v704 = vpack.c.b16 %v701, %v700
    %v705 = vpack.c.b16 %v703, %v702
    %708 = vmatprep.subr.bf16.mxu0 0
    %709 = vmatpush1.bf16.msra.mxu0 %v704
    %710 = vmatprep.subr.bf16.mxu0 0
    %711 = vmatpush1.bf16.msra.mxu0 %v705
    %712 = vmatprep.subr.bf16.mxu0 0
    %713 = vmatpush1.bf16.msra.mxu0 0
    %714 = vmatprep.subr.bf16.mxu0 0
    %715 = vmatpush1.bf16.msra.mxu0 0
    %716 = vmatprep.subr.bf16.mxu0 0
    %717 = vmatpush1.bf16.msra.mxu0 0
    %718 = vmatprep.subr.bf16.mxu0 0
    %719 = vmatpush1.bf16.msra.mxu0 0
    %720 = vmatprep.subr.bf16.mxu0 0
    %721 = vmatpush1.bf16.msra.mxu0 0
    %722 = vmatprep.subr.bf16.mxu0 0
    %723 = vmatpush1.bf16.msra.mxu0 0
    %724 = vmatprep.subr.bf16.mxu0 0
    %725 = vmatpush1.bf16.msra.mxu0 0
    %726 = vmatprep.subr.bf16.mxu0 0
    %727 = vmatpush1.bf16.msra.mxu0 0
    %728 = vmatprep.subr.bf16.mxu0 0
    %729 = vmatpush1.bf16.msra.mxu0 0
    %730 = vmatprep.subr.bf16.mxu0 0
    %731 = vmatpush1.bf16.msra.mxu0 0
    %732 = vmatprep.subr.bf16.mxu0 0
    %733 = vmatpush1.bf16.msra.mxu0 0
    %734 = vmatprep.subr.bf16.mxu0 0
    %735 = vmatpush1.bf16.msra.mxu0 0
    %736 = vmatprep.subr.bf16.mxu0 0
    %737 = vmatpush1.bf16.msra.mxu0 0
    %738 = vmatprep.subr.bf16.mxu0 0
    %739 = vmatpush1.bf16.msra.mxu0 0
    %740 = vmatprep.mubr.bf16.mxu0 0
    %741 = vmatmul.mubr.bf16.gmra.mrb[0].mxu0 %v177
    %v742 = vpop.f32.mrb[0].mxu0
    %v743 = vadd.f32 %v694, %v742
    %v744 = vpop.f32.mrb[0].mxu0
    %v745 = vpop.f32.mrb[0].mxu0
    %v746 = vpop.f32.mrb[0].mxu0
    %747 = vdwg.mxu0
    %748 = vst.msk [vmem:[#allocation2 + $0x12] sm:$0x3] %vm219, %v743
    %s749 = scalar_lea.vmem %s4, 144
    %v750 = vld [vmem:[%s749] sm:$0xf]
    %v751 = vld [vmem:[%s749 + $0x4] sm:$0xf]
    %v752 = vld [vmem:[%s749 + $0x8] sm:$0xf]
    %v753 = vld [vmem:[%s749 + $0xc] sm:$0xf]
    %s754 = scalar_lea.vmem %s5, 9
    %v755 = vld [vmem:[%s754] sm:$0x1]
    %v757 = vlaneseq
    %v758 = vshrl.u32 %v757, 7
    %v759 = vsub.s32 0, %v758
    %v760 = vrot.slane %v755, %v759
    %v766 = vunpack.c.l.b16 %v750
    %v767 = vunpack.c.l.b16 %v751
    %v768 = vunpack.c.l.b16 %v752
    %v769 = vunpack.c.l.b16 %v753
    %v770 = vpack.c.b16 %v767, %v766
    %v771 = vpack.c.b16 %v769, %v768
    %774 = vmatprep.subr.bf16.mxu0 0
    %775 = vmatpush1.bf16.msra.mxu0 %v770
    %776 = vmatprep.subr.bf16.mxu0 0
    %777 = vmatpush1.bf16.msra.mxu0 %v771
    %778 = vmatprep.subr.bf16.mxu0 0
    %779 = vmatpush1.bf16.msra.mxu0 0
    %780 = vmatprep.subr.bf16.mxu0 0
    %781 = vmatpush1.bf16.msra.mxu0 0
    %782 = vmatprep.subr.bf16.mxu0 0
    %783 = vmatpush1.bf16.msra.mxu0 0
    %784 = vmatprep.subr.bf16.mxu0 0
    %785 = vmatpush1.bf16.msra.mxu0 0
    %786 = vmatprep.subr.bf16.mxu0 0
    %787 = vmatpush1.bf16.msra.mxu0 0
    %788 = vmatprep.subr.bf16.mxu0 0
    %789 = vmatpush1.bf16.msra.mxu0 0
    %790 = vmatprep.subr.bf16.mxu0 0
    %791 = vmatpush1.bf16.msra.mxu0 0
    %792 = vmatprep.subr.bf16.mxu0 0
    %793 = vmatpush1.bf16.msra.mxu0 0
    %794 = vmatprep.subr.bf16.mxu0 0
    %795 = vmatpush1.bf16.msra.mxu0 0
    %796 = vmatprep.subr.bf16.mxu0 0
    %797 = vmatpush1.bf16.msra.mxu0 0
    %798 = vmatprep.subr.bf16.mxu0 0
    %799 = vmatpush1.bf16.msra.mxu0 0
    %800 = vmatprep.subr.bf16.mxu0 0
    %801 = vmatpush1.bf16.msra.mxu0 0
    %802 = vmatprep.subr.bf16.mxu0 0
    %803 = vmatpush1.bf16.msra.mxu0 0
    %804 = vmatprep.subr.bf16.mxu0 0
    %805 = vmatpush1.bf16.msra.mxu0 0
    %806 = vmatprep.mubr.bf16.mxu0 0
    %807 = vmatmul.mubr.bf16.gmra.mrb[0].mxu0 %v177
    %v808 = vpop.f32.mrb[0].mxu0
    %v809 = vadd.f32 %v760, %v808
    %v810 = vpop.f32.mrb[0].mxu0
    %v811 = vpop.f32.mrb[0].mxu0
    %v812 = vpop.f32.mrb[0].mxu0
    %813 = vdwg.mxu0
    %814 = vst.msk [vmem:[#allocation2 + $0x14] sm:$0x3] %vm219, %v809
    %s815 = scalar_lea.vmem %s4, 160
    %v816 = vld [vmem:[%s815] sm:$0xf]
    %v817 = vld [vmem:[%s815 + $0x4] sm:$0xf]
    %v818 = vld [vmem:[%s815 + $0x8] sm:$0xf]
    %v819 = vld [vmem:[%s815 + $0xc] sm:$0xf]
    %s820 = scalar_lea.vmem %s5, 10
    %v821 = vld [vmem:[%s820] sm:$0x1]
    %v823 = vlaneseq
    %v824 = vshrl.u32 %v823, 7
    %v825 = vsub.s32 0, %v824
    %v826 = vrot.slane %v821, %v825
    %v832 = vunpack.c.l.b16 %v816
    %v833 = vunpack.c.l.b16 %v817
    %v834 = vunpack.c.l.b16 %v818
    %v835 = vunpack.c.l.b16 %v819
    %v836 = vpack.c.b16 %v833, %v832
    %v837 = vpack.c.b16 %v835, %v834
    %840 = vmatprep.subr.bf16.mxu0 0
    %841 = vmatpush1.bf16.msra.mxu0 %v836
    %842 = vmatprep.subr.bf16.mxu0 0
    %843 = vmatpush1.bf16.msra.mxu0 %v837
    %844 = vmatprep.subr.bf16.mxu0 0
    %845 = vmatpush1.bf16.msra.mxu0 0
    %846 = vmatprep.subr.bf16.mxu0 0
    %847 = vmatpush1.bf16.msra.mxu0 0
    %848 = vmatprep.subr.bf16.mxu0 0
    %849 = vmatpush1.bf16.msra.mxu0 0
    %850 = vmatprep.subr.bf16.mxu0 0
    %851 = vmatpush1.bf16.msra.mxu0 0
    %852 = vmatprep.subr.bf16.mxu0 0
    %853 = vmatpush1.bf16.msra.mxu0 0
    %854 = vmatprep.subr.bf16.mxu0 0
    %855 = vmatpush1.bf16.msra.mxu0 0
    %856 = vmatprep.subr.bf16.mxu0 0
    %857 = vmatpush1.bf16.msra.mxu0 0
    %858 = vmatprep.subr.bf16.mxu0 0
    %859 = vmatpush1.bf16.msra.mxu0 0
    %860 = vmatprep.subr.bf16.mxu0 0
    %861 = vmatpush1.bf16.msra.mxu0 0
    %862 = vmatprep.subr.bf16.mxu0 0
    %863 = vmatpush1.bf16.msra.mxu0 0
    %864 = vmatprep.subr.bf16.mxu0 0
    %865 = vmatpush1.bf16.msra.mxu0 0
    %866 = vmatprep.subr.bf16.mxu0 0
    %867 = vmatpush1.bf16.msra.mxu0 0
    %868 = vmatprep.subr.bf16.mxu0 0
    %869 = vmatpush1.bf16.msra.mxu0 0
    %870 = vmatprep.subr.bf16.mxu0 0
    %871 = vmatpush1.bf16.msra.mxu0 0
    %872 = vmatprep.mubr.bf16.mxu0 0
    %873 = vmatmul.mubr.bf16.gmra.mrb[0].mxu0 %v177
    %v874 = vpop.f32.mrb[0].mxu0
    %v875 = vadd.f32 %v826, %v874
    %v876 = vpop.f32.mrb[0].mxu0
    %v877 = vpop.f32.mrb[0].mxu0
    %v878 = vpop.f32.mrb[0].mxu0
    %879 = vdwg.mxu0
    %880 = vst.msk [vmem:[#allocation2 + $0x16] sm:$0x3] %vm219, %v875
    %s881 = scalar_lea.vmem %s4, 176
    %v882 = vld [vmem:[%s881] sm:$0xf]
    %v883 = vld [vmem:[%s881 + $0x4] sm:$0xf]
    %v884 = vld [vmem:[%s881 + $0x8] sm:$0xf]
    %v885 = vld [vmem:[%s881 + $0xc] sm:$0xf]
    %s886 = scalar_lea.vmem %s5, 11
    %v887 = vld [vmem:[%s886] sm:$0x1]
    %v889 = vlaneseq
    %v890 = vshrl.u32 %v889, 7
    %v891 = vsub.s32 0, %v890
    %v892 = vrot.slane %v887, %v891
    %v898 = vunpack.c.l.b16 %v882
    %v899 = vunpack.c.l.b16 %v883
    %v900 = vunpack.c.l.b16 %v884
    %v901 = vunpack.c.l.b16 %v885
    %v902 = vpack.c.b16 %v899, %v898
    %v903 = vpack.c.b16 %v901, %v900
    %906 = vmatprep.subr.bf16.mxu0 0
    %907 = vmatpush1.bf16.msra.mxu0 %v902
    %908 = vmatprep.subr.bf16.mxu0 0
    %909 = vmatpush1.bf16.msra.mxu0 %v903
    %910 = vmatprep.subr.bf16.mxu0 0
    %911 = vmatpush1.bf16.msra.mxu0 0
    %912 = vmatprep.subr.bf16.mxu0 0
    %913 = vmatpush1.bf16.msra.mxu0 0
    %914 = vmatprep.subr.bf16.mxu0 0
    %915 = vmatpush1.bf16.msra.mxu0 0
    %916 = vmatprep.subr.bf16.mxu0 0
    %917 = vmatpush1.bf16.msra.mxu0 0
    %918 = vmatprep.subr.bf16.mxu0 0
    %919 = vmatpush1.bf16.msra.mxu0 0
    %920 = vmatprep.subr.bf16.mxu0 0
    %921 = vmatpush1.bf16.msra.mxu0 0
    %922 = vmatprep.subr.bf16.mxu0 0
    %923 = vmatpush1.bf16.msra.mxu0 0
    %924 = vmatprep.subr.bf16.mxu0 0
    %925 = vmatpush1.bf16.msra.mxu0 0
    %926 = vmatprep.subr.bf16.mxu0 0
    %927 = vmatpush1.bf16.msra.mxu0 0
    %928 = vmatprep.subr.bf16.mxu0 0
    %929 = vmatpush1.bf16.msra.mxu0 0
    %930 = vmatprep.subr.bf16.mxu0 0
    %931 = vmatpush1.bf16.msra.mxu0 0
    %932 = vmatprep.subr.bf16.mxu0 0
    %933 = vmatpush1.bf16.msra.mxu0 0
    %934 = vmatprep.subr.bf16.mxu0 0
    %935 = vmatpush1.bf16.msra.mxu0 0
    %936 = vmatprep.subr.bf16.mxu0 0
    %937 = vmatpush1.bf16.msra.mxu0 0
    %938 = vmatprep.mubr.bf16.mxu0 0
    %939 = vmatmul.mubr.bf16.gmra.mrb[0].mxu0 %v177
    %v940 = vpop.f32.mrb[0].mxu0
    %v941 = vadd.f32 %v892, %v940
    %v942 = vpop.f32.mrb[0].mxu0
    %v943 = vpop.f32.mrb[0].mxu0
    %v944 = vpop.f32.mrb[0].mxu0
    %945 = vdwg.mxu0
    %946 = vst.msk [vmem:[#allocation2 + $0x18] sm:$0x3] %vm219, %v941
    %s947 = scalar_lea.vmem %s4, 192
    %v948 = vld [vmem:[%s947] sm:$0xf]
    %v949 = vld [vmem:[%s947 + $0x4] sm:$0xf]
    %v950 = vld [vmem:[%s947 + $0x8] sm:$0xf]
    %v951 = vld [vmem:[%s947 + $0xc] sm:$0xf]
    %s952 = scalar_lea.vmem %s5, 12
    %v953 = vld [vmem:[%s952] sm:$0x1]
    %v955 = vlaneseq
    %v956 = vshrl.u32 %v955, 7
    %v957 = vsub.s32 0, %v956
    %v958 = vrot.slane %v953, %v957
    %v964 = vunpack.c.l.b16 %v948
    %v965 = vunpack.c.l.b16 %v949
    %v966 = vunpack.c.l.b16 %v950
    %v967 = vunpack.c.l.b16 %v951
    %v968 = vpack.c.b16 %v965, %v964
    %v969 = vpack.c.b16 %v967, %v966
    %972 = vmatprep.subr.bf16.mxu0 0
    %973 = vmatpush1.bf16.msra.mxu0 %v968
    %974 = vmatprep.subr.bf16.mxu0 0
    %975 = vmatpush1.bf16.msra.mxu0 %v969
    %976 = vmatprep.subr.bf16.mxu0 0
    %977 = vmatpush1.bf16.msra.mxu0 0
    %978 = vmatprep.subr.bf16.mxu0 0
    %979 = vmatpush1.bf16.msra.mxu0 0
    %980 = vmatprep.subr.bf16.mxu0 0
    %981 = vmatpush1.bf16.msra.mxu0 0
    %982 = vmatprep.subr.bf16.mxu0 0
    %983 = vmatpush1.bf16.msra.mxu0 0
    %984 = vmatprep.subr.bf16.mxu0 0
    %985 = vmatpush1.bf16.msra.mxu0 0
    %986 = vmatprep.subr.bf16.mxu0 0
    %987 = vmatpush1.bf16.msra.mxu0 0
    %988 = vmatprep.subr.bf16.mxu0 0
    %989 = vmatpush1.bf16.msra.mxu0 0
    %990 = vmatprep.subr.bf16.mxu0 0
    %991 = vmatpush1.bf16.msra.mxu0 0
    %992 = vmatprep.subr.bf16.mxu0 0
    %993 = vmatpush1.bf16.msra.mxu0 0
    %994 = vmatprep.subr.bf16.mxu0 0
    %995 = vmatpush1.bf16.msra.mxu0 0
    %996 = vmatprep.subr.bf16.mxu0 0
    %997 = vmatpush1.bf16.msra.mxu0 0
    %998 = vmatprep.subr.bf16.mxu0 0
    %999 = vmatpush1.bf16.msra.mxu0 0
    %1000 = vmatprep.subr.bf16.mxu0 0
    %1001 = vmatpush1.bf16.msra.mxu0 0
    %1002 = vmatprep.subr.bf16.mxu0 0
    %1003 = vmatpush1.bf16.msra.mxu0 0
    %1004 = vmatprep.mubr.bf16.mxu0 0
    %1005 = vmatmul.mubr.bf16.gmra.mrb[0].mxu0 %v177
    %v1006 = vpop.f32.mrb[0].mxu0
    %v1007 = vadd.f32 %v958, %v1006
    %v1008 = vpop.f32.mrb[0].mxu0
    %v1009 = vpop.f32.mrb[0].mxu0
    %v1010 = vpop.f32.mrb[0].mxu0
    %1011 = vdwg.mxu0
    %1012 = vst.msk [vmem:[#allocation2 + $0x1a] sm:$0x3] %vm219, %v1007
    %s1013 = scalar_lea.vmem %s4, 208
    %v1014 = vld [vmem:[%s1013] sm:$0xf]
    %v1015 = vld [vmem:[%s1013 + $0x4] sm:$0xf]
    %v1016 = vld [vmem:[%s1013 + $0x8] sm:$0xf]
    %v1017 = vld [vmem:[%s1013 + $0xc] sm:$0xf]
    %s1018 = scalar_lea.vmem %s5, 13
    %v1019 = vld [vmem:[%s1018] sm:$0x1]
    %v1021 = vlaneseq
    %v1022 = vshrl.u32 %v1021, 7
    %v1023 = vsub.s32 0, %v1022
    %v1024 = vrot.slane %v1019, %v1023
    %v1030 = vunpack.c.l.b16 %v1014
    %v1031 = vunpack.c.l.b16 %v1015
    %v1032 = vunpack.c.l.b16 %v1016
    %v1033 = vunpack.c.l.b16 %v1017
    %v1034 = vpack.c.b16 %v1031, %v1030
    %v1035 = vpack.c.b16 %v1033, %v1032
    %1038 = vmatprep.subr.bf16.mxu0 0
    %1039 = vmatpush1.bf16.msra.mxu0 %v1034
    %1040 = vmatprep.subr.bf16.mxu0 0
    %1041 = vmatpush1.bf16.msra.mxu0 %v1035
    %1042 = vmatprep.subr.bf16.mxu0 0
    %1043 = vmatpush1.bf16.msra.mxu0 0
    %1044 = vmatprep.subr.bf16.mxu0 0
    %1045 = vmatpush1.bf16.msra.mxu0 0
    %1046 = vmatprep.subr.bf16.mxu0 0
    %1047 = vmatpush1.bf16.msra.mxu0 0
    %1048 = vmatprep.subr.bf16.mxu0 0
    %1049 = vmatpush1.bf16.msra.mxu0 0
    %1050 = vmatprep.subr.bf16.mxu0 0
    %1051 = vmatpush1.bf16.msra.mxu0 0
    %1052 = vmatprep.subr.bf16.mxu0 0
    %1053 = vmatpush1.bf16.msra.mxu0 0
    %1054 = vmatprep.subr.bf16.mxu0 0
    %1055 = vmatpush1.bf16.msra.mxu0 0
    %1056 = vmatprep.subr.bf16.mxu0 0
    %1057 = vmatpush1.bf16.msra.mxu0 0
    %1058 = vmatprep.subr.bf16.mxu0 0
    %1059 = vmatpush1.bf16.msra.mxu0 0
    %1060 = vmatprep.subr.bf16.mxu0 0
    %1061 = vmatpush1.bf16.msra.mxu0 0
    %1062 = vmatprep.subr.bf16.mxu0 0
    %1063 = vmatpush1.bf16.msra.mxu0 0
    %1064 = vmatprep.subr.bf16.mxu0 0
    %1065 = vmatpush1.bf16.msra.mxu0 0
    %1066 = vmatprep.subr.bf16.mxu0 0
    %1067 = vmatpush1.bf16.msra.mxu0 0
    %1068 = vmatprep.subr.bf16.mxu0 0
    %1069 = vmatpush1.bf16.msra.mxu0 0
    %1070 = vmatprep.mubr.bf16.mxu0 0
    %1071 = vmatmul.mubr.bf16.gmra.mrb[0].mxu0 %v177
    %v1072 = vpop.f32.mrb[0].mxu0
    %v1073 = vadd.f32 %v1024, %v1072
    %v1074 = vpop.f32.mrb[0].mxu0
    %v1075 = vpop.f32.mrb[0].mxu0
    %v1076 = vpop.f32.mrb[0].mxu0
    %1077 = vdwg.mxu0
    %1078 = vst.msk [vmem:[#allocation2 + $0x1c] sm:$0x3] %vm219, %v1073
    %s1079 = scalar_lea.vmem %s4, 224
    %v1080 = vld [vmem:[%s1079] sm:$0xf]
    %v1081 = vld [vmem:[%s1079 + $0x4] sm:$0xf]
    %v1082 = vld [vmem:[%s1079 + $0x8] sm:$0xf]
    %v1083 = vld [vmem:[%s1079 + $0xc] sm:$0xf]
    %s1084 = scalar_lea.vmem %s5, 14
    %v1085 = vld [vmem:[%s1084] sm:$0x1]
    %v1087 = vlaneseq
    %v1088 = vshrl.u32 %v1087, 7
    %v1089 = vsub.s32 0, %v1088
    %v1090 = vrot.slane %v1085, %v1089
    %v1096 = vunpack.c.l.b16 %v1080
    %v1097 = vunpack.c.l.b16 %v1081
    %v1098 = vunpack.c.l.b16 %v1082
    %v1099 = vunpack.c.l.b16 %v1083
    %v1100 = vpack.c.b16 %v1097, %v1096
    %v1101 = vpack.c.b16 %v1099, %v1098
    %1104 = vmatprep.subr.bf16.mxu0 0
    %1105 = vmatpush1.bf16.msra.mxu0 %v1100
    %1106 = vmatprep.subr.bf16.mxu0 0
    %1107 = vmatpush1.bf16.msra.mxu0 %v1101
    %1108 = vmatprep.subr.bf16.mxu0 0
    %1109 = vmatpush1.bf16.msra.mxu0 0
    %1110 = vmatprep.subr.bf16.mxu0 0
    %1111 = vmatpush1.bf16.msra.mxu0 0
    %1112 = vmatprep.subr.bf16.mxu0 0
    %1113 = vmatpush1.bf16.msra.mxu0 0
    %1114 = vmatprep.subr.bf16.mxu0 0
    %1115 = vmatpush1.bf16.msra.mxu0 0
    %1116 = vmatprep.subr.bf16.mxu0 0
    %1117 = vmatpush1.bf16.msra.mxu0 0
    %1118 = vmatprep.subr.bf16.mxu0 0
    %1119 = vmatpush1.bf16.msra.mxu0 0
    %1120 = vmatprep.subr.bf16.mxu0 0
    %1121 = vmatpush1.bf16.msra.mxu0 0
    %1122 = vmatprep.subr.bf16.mxu0 0
    %1123 = vmatpush1.bf16.msra.mxu0 0
    %1124 = vmatprep.subr.bf16.mxu0 0
    %1125 = vmatpush1.bf16.msra.mxu0 0
    %1126 = vmatprep.subr.bf16.mxu0 0
    %1127 = vmatpush1.bf16.msra.mxu0 0
    %1128 = vmatprep.subr.bf16.mxu0 0
    %1129 = vmatpush1.bf16.msra.mxu0 0
    %1130 = vmatprep.subr.bf16.mxu0 0
    %1131 = vmatpush1.bf16.msra.mxu0 0
    %1132 = vmatprep.subr.bf16.mxu0 0
    %1133 = vmatpush1.bf16.msra.mxu0 0
    %1134 = vmatprep.subr.bf16.mxu0 0
    %1135 = vmatpush1.bf16.msra.mxu0 0
    %1136 = vmatprep.mubr.bf16.mxu0 0
    %1137 = vmatmul.mubr.bf16.gmra.mrb[0].mxu0 %v177
    %v1138 = vpop.f32.mrb[0].mxu0
    %v1139 = vadd.f32 %v1090, %v1138
    %v1140 = vpop.f32.mrb[0].mxu0
    %v1141 = vpop.f32.mrb[0].mxu0
    %v1142 = vpop.f32.mrb[0].mxu0
    %1143 = vdwg.mxu0
    %1144 = vst.msk [vmem:[#allocation2 + $0x1e] sm:$0x3] %vm219, %v1139
    %s1145 = scalar_lea.vmem %s4, 240
    %v1146 = vld [vmem:[%s1145] sm:$0xf]
    %v1147 = vld [vmem:[%s1145 + $0x4] sm:$0xf]
    %v1148 = vld [vmem:[%s1145 + $0x8] sm:$0xf]
    %v1149 = vld [vmem:[%s1145 + $0xc] sm:$0xf]
    %s1150 = scalar_lea.vmem %s5, 15
    %v1151 = vld [vmem:[%s1150] sm:$0x1]
    %v1153 = vlaneseq
    %v1154 = vshrl.u32 %v1153, 7
    %v1155 = vsub.s32 0, %v1154
    %v1156 = vrot.slane %v1151, %v1155
    %v1162 = vunpack.c.l.b16 %v1146
    %v1163 = vunpack.c.l.b16 %v1147
    %v1164 = vunpack.c.l.b16 %v1148
    %v1165 = vunpack.c.l.b16 %v1149
    %v1166 = vpack.c.b16 %v1163, %v1162
    %v1167 = vpack.c.b16 %v1165, %v1164
    %1170 = vmatprep.subr.bf16.mxu0 0
    %1171 = vmatpush1.bf16.msra.mxu0 %v1166
    %1172 = vmatprep.subr.bf16.mxu0 0
    %1173 = vmatpush1.bf16.msra.mxu0 %v1167
    %1174 = vmatprep.subr.bf16.mxu0 0
    %1175 = vmatpush1.bf16.msra.mxu0 0
    %1176 = vmatprep.subr.bf16.mxu0 0
    %1177 = vmatpush1.bf16.msra.mxu0 0
    %1178 = vmatprep.subr.bf16.mxu0 0
    %1179 = vmatpush1.bf16.msra.mxu0 0
    %1180 = vmatprep.subr.bf16.mxu0 0
    %1181 = vmatpush1.bf16.msra.mxu0 0
    %1182 = vmatprep.subr.bf16.mxu0 0
    %1183 = vmatpush1.bf16.msra.mxu0 0
    %1184 = vmatprep.subr.bf16.mxu0 0
    %1185 = vmatpush1.bf16.msra.mxu0 0
    %1186 = vmatprep.subr.bf16.mxu0 0
    %1187 = vmatpush1.bf16.msra.mxu0 0
    %1188 = vmatprep.subr.bf16.mxu0 0
    %1189 = vmatpush1.bf16.msra.mxu0 0
    %1190 = vmatprep.subr.bf16.mxu0 0
    %1191 = vmatpush1.bf16.msra.mxu0 0
    %1192 = vmatprep.subr.bf16.mxu0 0
    %1193 = vmatpush1.bf16.msra.mxu0 0
    %1194 = vmatprep.subr.bf16.mxu0 0
    %1195 = vmatpush1.bf16.msra.mxu0 0
    %1196 = vmatprep.subr.bf16.mxu0 0
    %1197 = vmatpush1.bf16.msra.mxu0 0
    %1198 = vmatprep.subr.bf16.mxu0 0
    %1199 = vmatpush1.bf16.msra.mxu0 0
    %1200 = vmatprep.subr.bf16.mxu0 0
    %1201 = vmatpush1.bf16.msra.mxu0 0
    %1202 = vmatprep.mubr.bf16.mxu0 0
    %1203 = vmatmul.mubr.bf16.gmra.mrb[0].mxu0 %v177
    %v1204 = vpop.f32.mrb[0].mxu0
    %v1205 = vadd.f32 %v1156, %v1204
    %v1206 = vpop.f32.mrb[0].mxu0
    %v1207 = vpop.f32.mrb[0].mxu0
    %v1208 = vpop.f32.mrb[0].mxu0
    %1209 = vdwg.mxu0
    %1210 = vst.msk [vmem:[#allocation2 + $0x20] sm:$0x3] %vm219, %v1205
    loop: start=0, step=1, limit=64
    $region54: #{language_model_to_ddpm_forward.1} parent=1 // loop_pre_header
      _
    $region55: #{language_model_to_ddpm_forward.1} parent=1 // loop_header
      %s1212 = sphi 0, %s1216
      %p1213 = scmp.ge.s32.totalorder %s1212, 64
    $region56: #{language_model_to_ddpm_forward.1} parent=1 // loop_header_branch
      %1215 = sbr.rel (%p1213) target = $region60
    $region57: #{language_model_to_ddpm_forward.1} parent=1 // loop_body
      %s1217 = ssub.s32 63, %s1212
      %v1218 = vld [vmem:[#allocation2 + $0x2] sm:$0xff]
      %v1219 = vld [vmem:[#allocation2 + $0xa] sm:$0xff]
      %v1220 = vld [vmem:[#allocation2 + $0x12] sm:$0xff]
      %v1221 = vld [vmem:[#allocation2 + $0x1a] sm:$0xff]
      %v1222 = vld [vmem:[%s7] sm:$0xf]
      %v1223 = vld [vmem:[#allocation2] sm:$0xff]
      %v1224 = vld [vmem:[#allocation2 + $0x8] sm:$0xff]
      %v1225 = vld [vmem:[#allocation2 + $0x10] sm:$0xff]
      %v1226 = vld [vmem:[#allocation2 + $0x18] sm:$0xff]
      %v1227 = vpack.c.bf16 %v1224, %v1223
      %v1228 = vpack.c.bf16 %v1226, %v1225
      %v1229 = vld [vmem:[%s6] sm:$0xff]
      %v1230 = vld [vmem:[%s6 + $0x8] sm:$0xff]
      %v1231 = vld [vmem:[%s6 + $0x10] sm:$0xff]
      %v1232 = vld [vmem:[%s6 + $0x18] sm:$0xff]
      %v1233 = vld [vmem:[%s6 + $0x20] sm:$0xff]
      %v1234 = vld [vmem:[%s6 + $0x28] sm:$0xff]
      %v1235 = vld [vmem:[%s6 + $0x30] sm:$0xff]
      %v1236 = vld [vmem:[%s6 + $0x38] sm:$0xff]
      %v1237 = vld [vmem:[%s6 + $0x40] sm:$0xff]
      %v1238 = vld [vmem:[%s6 + $0x48] sm:$0xff]
      %v1239 = vld [vmem:[%s6 + $0x50] sm:$0xff]
      %v1240 = vld [vmem:[%s6 + $0x58] sm:$0xff]
      %v1241 = vld [vmem:[%s6 + $0x60] sm:$0xff]
      %v1242 = vld [vmem:[%s6 + $0x68] sm:$0xff]
      %v1243 = vld [vmem:[%s6 + $0x70] sm:$0xff]
      %v1244 = vld [vmem:[%s6 + $0x78] sm:$0xff]
      %v1245 = vpack.c.bf16 %v1219, %v1218
      %v1246 = vpack.c.bf16 %v1221, %v1220
      %s1247 = scalar_lea.vmem %s6, 128
      %v1248 = vld [vmem:[%s1247] sm:$0xff]
      %v1249 = vld [vmem:[%s1247 + $0x8] sm:$0xff]
      %v1250 = vld [vmem:[%s1247 + $0x10] sm:$0xff]
      %v1251 = vld [vmem:[%s1247 + $0x18] sm:$0xff]
      %v1252 = vld [vmem:[%s1247 + $0x20] sm:$0xff]
      %v1253 = vld [vmem:[%s1247 + $0x28] sm:$0xff]
      %v1254 = vld [vmem:[%s1247 + $0x30] sm:$0xff]
      %v1255 = vld [vmem:[%s1247 + $0x38] sm:$0xff]
      %v1256 = vld [vmem:[%s1247 + $0x40] sm:$0xff]
      %v1257 = vld [vmem:[%s1247 + $0x48] sm:$0xff]
      %v1258 = vld [vmem:[%s1247 + $0x50] sm:$0xff]
      %v1259 = vld [vmem:[%s1247 + $0x58] sm:$0xff]
      %v1260 = vld [vmem:[%s1247 + $0x60] sm:$0xff]
      %v1261 = vld [vmem:[%s1247 + $0x68] sm:$0xff]
      %v1262 = vld [vmem:[%s1247 + $0x70] sm:$0xff]
      %v1263 = vld [vmem:[%s1247 + $0x78] sm:$0xff]
      %v1280 = vunpack.c.l.b16 %v1248
      %v1281 = vunpack.c.h.b16 %v1248
      %v1282 = vunpack.c.l.b16 %v1249
      %v1283 = vunpack.c.h.b16 %v1249
      %v1284 = vunpack.c.l.b16 %v1250
      %v1285 = vunpack.c.h.b16 %v1250
      %v1286 = vunpack.c.l.b16 %v1251
      %v1287 = vunpack.c.h.b16 %v1251
      %v1288 = vunpack.c.l.b16 %v1252
      %v1289 = vunpack.c.h.b16 %v1252
      %v1290 = vunpack.c.l.b16 %v1253
      %v1291 = vunpack.c.h.b16 %v1253
      %v1292 = vunpack.c.l.b16 %v1254
      %v1293 = vunpack.c.h.b16 %v1254
      %v1294 = vunpack.c.l.b16 %v1255
      %v1295 = vunpack.c.h.b16 %v1255
      %v1296 = vunpack.c.l.b16 %v1256
      %v1297 = vunpack.c.h.b16 %v1256
      %v1298 = vunpack.c.l.b16 %v1257
      %v1299 = vunpack.c.h.b16 %v1257
      %v1300 = vunpack.c.l.b16 %v1258
      %v1301 = vunpack.c.h.b16 %v1258
      %v1302 = vunpack.c.l.b16 %v1259
      %v1303 = vunpack.c.h.b16 %v1259
      %v1304 = vunpack.c.l.b16 %v1260
      %v1305 = vunpack.c.h.b16 %v1260
      %v1306 = vunpack.c.l.b16 %v1261
      %v1307 = vunpack.c.h.b16 %v1261
      %v1308 = vunpack.c.l.b16 %v1262
      %v1309 = vunpack.c.h.b16 %v1262
      %v1310 = vunpack.c.l.b16 %v1263
      %v1311 = vunpack.c.h.b16 %v1263
      %v1312 = vpack.c.b16 %v1284, %v1280
      %v1313 = vpack.c.b16 %v1285, %v1281
      %v1314 = vpack.c.b16 %v1286, %v1282
      %v1315 = vpack.c.b16 %v1287, %v1283
      %v1316 = vpack.c.b16 %v1292, %v1288
      %v1317 = vpack.c.b16 %v1293, %v1289
      %v1318 = vpack.c.b16 %v1294, %v1290
      %v1319 = vpack.c.b16 %v1295, %v1291
      %v1320 = vpack.c.b16 %v1300, %v1296
      %v1321 = vpack.c.b16 %v1301, %v1297
      %v1322 = vpack.c.b16 %v1302, %v1298
      %v1323 = vpack.c.b16 %v1303, %v1299
      %v1324 = vpack.c.b16 %v1308, %v1304
      %v1325 = vpack.c.b16 %v1309, %v1305
      %v1326 = vpack.c.b16 %v1310, %v1306
      %v1327 = vpack.c.b16 %v1311, %v1307
      %v1345 = vsel %vm55, %v1245, 0
      %v1348 = vsel %vm55, %v1246, 0
      %1350 = vmatprep.subr.bf16.mxu0 %v1313
      %1351 = vmatpush1.bf16.msra.mxu0 %v1312
      %1352 = vmatprep.subr.bf16.mxu0 %v1317
      %1353 = vmatpush1.bf16.msra.mxu0 %v1316
      %1354 = vmatprep.subr.bf16.mxu0 %v1321
      %1355 = vmatpush1.bf16.msra.mxu0 %v1320
      %1356 = vmatprep.subr.bf16.mxu0 %v1325
      %1357 = vmatpush1.bf16.msra.mxu0 %v1324
      %1358 = vmatprep.subr.bf16.mxu0 0
      %1359 = vmatpush1.bf16.msra.mxu0 0
      %1360 = vmatprep.subr.bf16.mxu0 0
      %1361 = vmatpush1.bf16.msra.mxu0 0
      %1362 = vmatprep.subr.bf16.mxu0 0
      %1363 = vmatpush1.bf16.msra.mxu0 0
      %1364 = vmatprep.subr.bf16.mxu0 0
      %1365 = vmatpush1.bf16.msra.mxu0 0
      %1366 = vmatprep.subr.bf16.mxu0 0
      %1367 = vmatpush1.bf16.msra.mxu0 0
      %1368 = vmatprep.subr.bf16.mxu0 0
      %1369 = vmatpush1.bf16.msra.mxu0 0
      %1370 = vmatprep.subr.bf16.mxu0 0
      %1371 = vmatpush1.bf16.msra.mxu0 0
      %1372 = vmatprep.subr.bf16.mxu0 0
      %1373 = vmatpush1.bf16.msra.mxu0 0
      %1374 = vmatprep.subr.bf16.mxu0 0
      %1375 = vmatpush1.bf16.msra.mxu0 0
      %1376 = vmatprep.subr.bf16.mxu0 0
      %1377 = vmatpush1.bf16.msra.mxu0 0
      %1378 = vmatprep.subr.bf16.mxu0 0
      %1379 = vmatpush1.bf16.msra.mxu0 0
      %1380 = vmatprep.subr.bf16.mxu0 0
      %1381 = vmatpush1.bf16.msra.mxu0 0
      %1382 = vmatprep.mubr.bf16.mxu0 0
      %1383 = vmatmul.mubr.bf16.gmra.mrb[0].mxu0 %v1345
      %v1384 = vpop.f32.mrb[0].mxu0
      %v1385 = vadd.f32 0.0, %v1384
      %v1386 = vpop.f32.mrb[0].mxu0
      %v1387 = vadd.f32 0.0, %v1386
      %v1388 = vpop.f32.mrb[0].mxu0
      %v1389 = vadd.f32 0.0, %v1388
      %v1390 = vpop.f32.mrb[0].mxu0
      %v1391 = vadd.f32 0.0, %v1390
      %1392 = vmatprep.mubr.bf16.mxu0 0
      %1393 = vmatmul.mubr.bf16.gmra.mrb[0].mxu0 %v1348
      %v1394 = vpop.f32.mrb[0].mxu0
      %v1395 = vadd.f32 0.0, %v1394
      %v1396 = vpop.f32.mrb[0].mxu0
      %v1397 = vadd.f32 0.0, %v1396
      %v1398 = vpop.f32.mrb[0].mxu0
      %v1399 = vadd.f32 0.0, %v1398
      %v1400 = vpop.f32.mrb[0].mxu0
      %v1401 = vadd.f32 0.0, %v1400
      %1402 = vdwg.mxu0
      %1403 = vmatprep.subr.bf16.mxu0 %v1315
      %1404 = vmatpush1.bf16.msra.mxu0 %v1314
      %1405 = vmatprep.subr.bf16.mxu0 %v1319
      %1406 = vmatpush1.bf16.msra.mxu0 %v1318
      %1407 = vmatprep.subr.bf16.mxu0 %v1323
      %1408 = vmatpush1.bf16.msra.mxu0 %v1322
      %1409 = vmatprep.subr.bf16.mxu0 %v1327
      %1410 = vmatpush1.bf16.msra.mxu0 %v1326
      %1411 = vmatprep.subr.bf16.mxu0 0
      %1412 = vmatpush1.bf16.msra.mxu0 0
      %1413 = vmatprep.subr.bf16.mxu0 0
      %1414 = vmatpush1.bf16.msra.mxu0 0
      %1415 = vmatprep.subr.bf16.mxu0 0
      %1416 = vmatpush1.bf16.msra.mxu0 0
      %1417 = vmatprep.subr.bf16.mxu0 0
      %1418 = vmatpush1.bf16.msra.mxu0 0
      %1419 = vmatprep.subr.bf16.mxu0 0
      %1420 = vmatpush1.bf16.msra.mxu0 0
      %1421 = vmatprep.subr.bf16.mxu0 0
      %1422 = vmatpush1.bf16.msra.mxu0 0
      %1423 = vmatprep.subr.bf16.mxu0 0
      %1424 = vmatpush1.bf16.msra.mxu0 0
      %1425 = vmatprep.subr.bf16.mxu0 0
      %1426 = vmatpush1.bf16.msra.mxu0 0
      %1427 = vmatprep.subr.bf16.mxu0 0
      %1428 = vmatpush1.bf16.msra.mxu0 0
      %1429 = vmatprep.subr.bf16.mxu0 0
      %1430 = vmatpush1.bf16.msra.mxu0 0
      %1431 = vmatprep.subr.bf16.mxu0 0
      %1432 = vmatpush1.bf16.msra.mxu0 0
      %1433 = vmatprep.subr.bf16.mxu0 0
      %1434 = vmatpush1.bf16.msra.mxu0 0
      %1435 = vmatprep.mubr.bf16.mxu0 0
      %1436 = vmatmul.mubr.bf16.gmra.mrb[0].mxu0 %v1345
      %v1437 = vpop.f32.mrb[0].mxu0
      %v1438 = vadd.f32 0.0, %v1437
      %v1439 = vpop.f32.mrb[0].mxu0
      %v1440 = vadd.f32 0.0, %v1439
      %v1441 = vpop.f32.mrb[0].mxu0
      %v1442 = vadd.f32 0.0, %v1441
      %v1443 = vpop.f32.mrb[0].mxu0
      %v1444 = vadd.f32 0.0, %v1443
      %1445 = vmatprep.mubr.bf16.mxu0 0
      %1446 = vmatmul.mubr.bf16.gmra.mrb[0].mxu0 %v1348
      %v1447 = vpop.f32.mrb[0].mxu0
      %v1448 = vadd.f32 0.0, %v1447
      %v1449 = vpop.f32.mrb[0].mxu0
      %v1450 = vadd.f32 0.0, %v1449
      %v1451 = vpop.f32.mrb[0].mxu0
      %v1452 = vadd.f32 0.0, %v1451
      %v1453 = vpop.f32.mrb[0].mxu0
      %v1454 = vadd.f32 0.0, %v1453
      %1455 = vdwg.mxu0
      %v1472 = vunpack.c.l.b16 %v1229
      %v1473 = vunpack.c.h.b16 %v1229
      %v1474 = vunpack.c.l.b16 %v1230
      %v1475 = vunpack.c.h.b16 %v1230
      %v1476 = vunpack.c.l.b16 %v1231
      %v1477 = vunpack.c.h.b16 %v1231
      %v1478 = vunpack.c.l.b16 %v1232
      %v1479 = vunpack.c.h.b16 %v1232
      %v1480 = vunpack.c.l.b16 %v1233
      %v1481 = vunpack.c.h.b16 %v1233
      %v1482 = vunpack.c.l.b16 %v1234
      %v1483 = vunpack.c.h.b16 %v1234
      %v1484 = vunpack.c.l.b16 %v1235
      %v1485 = vunpack.c.h.b16 %v1235
      %v1486 = vunpack.c.l.b16 %v1236
      %v1487 = vunpack.c.h.b16 %v1236
      %v1488 = vunpack.c.l.b16 %v1237
      %v1489 = vunpack.c.h.b16 %v1237
      %v1490 = vunpack.c.l.b16 %v1238
      %v1491 = vunpack.c.h.b16 %v1238
      %v1492 = vunpack.c.l.b16 %v1239
      %v1493 = vunpack.c.h.b16 %v1239
      %v1494 = vunpack.c.l.b16 %v1240
      %v1495 = vunpack.c.h.b16 %v1240
      %v1496 = vunpack.c.l.b16 %v1241
      %v1497 = vunpack.c.h.b16 %v1241
      %v1498 = vunpack.c.l.b16 %v1242
      %v1499 = vunpack.c.h.b16 %v1242
      %v1500 = vunpack.c.l.b16 %v1243
      %v1501 = vunpack.c.h.b16 %v1243
      %v1502 = vunpack.c.l.b16 %v1244
      %v1503 = vunpack.c.h.b16 %v1244
      %v1504 = vpack.c.b16 %v1476, %v1472
      %v1505 = vpack.c.b16 %v1477, %v1473
      %v1506 = vpack.c.b16 %v1478, %v1474
      %v1507 = vpack.c.b16 %v1479, %v1475
      %v1508 = vpack.c.b16 %v1484, %v1480
      %v1509 = vpack.c.b16 %v1485, %v1481
      %v1510 = vpack.c.b16 %v1486, %v1482
      %v1511 = vpack.c.b16 %v1487, %v1483
      %v1512 = vpack.c.b16 %v1492, %v1488
      %v1513 = vpack.c.b16 %v1493, %v1489
      %v1514 = vpack.c.b16 %v1494, %v1490
      %v1515 = vpack.c.b16 %v1495, %v1491
      %v1516 = vpack.c.b16 %v1500, %v1496
      %v1517 = vpack.c.b16 %v1501, %v1497
      %v1518 = vpack.c.b16 %v1502, %v1498
      %v1519 = vpack.c.b16 %v1503, %v1499
      %v1537 = vsel %vm55, %v1227, 0
      %v1540 = vsel %vm55, %v1228, 0
      %1542 = vmatprep.subr.bf16.mxu0 %v1505
      %1543 = vmatpush1.bf16.msra.mxu0 %v1504
      %1544 = vmatprep.subr.bf16.mxu0 %v1509
      %1545 = vmatpush1.bf16.msra.mxu0 %v1508
      %1546 = vmatprep.subr.bf16.mxu0 %v1513
      %1547 = vmatpush1.bf16.msra.mxu0 %v1512
      %1548 = vmatprep.subr.bf16.mxu0 %v1517
      %1549 = vmatpush1.bf16.msra.mxu0 %v1516
      %1550 = vmatprep.subr.bf16.mxu0 0
      %1551 = vmatpush1.bf16.msra.mxu0 0
      %1552 = vmatprep.subr.bf16.mxu0 0
      %1553 = vmatpush1.bf16.msra.mxu0 0
      %1554 = vmatprep.subr.bf16.mxu0 0
      %1555 = vmatpush1.bf16.msra.mxu0 0
      %1556 = vmatprep.subr.bf16.mxu0 0
      %1557 = vmatpush1.bf16.msra.mxu0 0
      %1558 = vmatprep.subr.bf16.mxu0 0
      %1559 = vmatpush1.bf16.msra.mxu0 0
      %1560 = vmatprep.subr.bf16.mxu0 0
      %1561 = vmatpush1.bf16.msra.mxu0 0
      %1562 = vmatprep.subr.bf16.mxu0 0
      %1563 = vmatpush1.bf16.msra.mxu0 0
      %1564 = vmatprep.subr.bf16.mxu0 0
      %1565 = vmatpush1.bf16.msra.mxu0 0
      %1566 = vmatprep.subr.bf16.mxu0 0
      %1567 = vmatpush1.bf16.msra.mxu0 0
      %1568 = vmatprep.subr.bf16.mxu0 0
      %1569 = vmatpush1.bf16.msra.mxu0 0
      %1570 = vmatprep.subr.bf16.mxu0 0
      %1571 = vmatpush1.bf16.msra.mxu0 0
      %1572 = vmatprep.subr.bf16.mxu0 0
      %1573 = vmatpush1.bf16.msra.mxu0 0
      %1574 = vmatprep.mubr.bf16.mxu0 0
      %1575 = vmatmul.mubr.bf16.gmra.mrb[0].mxu0 %v1537
      %v1576 = vpop.f32.mrb[0].mxu0
      %v1577 = vadd.f32 %v1385, %v1576
      %v1578 = vpop.f32.mrb[0].mxu0
      %v1579 = vadd.f32 %v1387, %v1578
      %v1580 = vpop.f32.mrb[0].mxu0
      %v1581 = vadd.f32 %v1389, %v1580
      %v1582 = vpop.f32.mrb[0].mxu0
      %v1583 = vadd.f32 %v1391, %v1582
      %1584 = vmatprep.mubr.bf16.mxu0 0
      %1585 = vmatmul.mubr.bf16.gmra.mrb[0].mxu0 %v1540
      %v1586 = vpop.f32.mrb[0].mxu0
      %v1587 = vadd.f32 %v1395, %v1586
      %v1588 = vpop.f32.mrb[0].mxu0
      %v1589 = vadd.f32 %v1397, %v1588
      %v1590 = vpop.f32.mrb[0].mxu0
      %v1591 = vadd.f32 %v1399, %v1590
      %v1592 = vpop.f32.mrb[0].mxu0
      %v1593 = vadd.f32 %v1401, %v1592
      %1594 = vdwg.mxu0
      %1595 = vmatprep.subr.bf16.mxu0 %v1507
      %1596 = vmatpush1.bf16.msra.mxu0 %v1506
      %1597 = vmatprep.subr.bf16.mxu0 %v1511
      %1598 = vmatpush1.bf16.msra.mxu0 %v1510
      %1599 = vmatprep.subr.bf16.mxu0 %v1515
      %1600 = vmatpush1.bf16.msra.mxu0 %v1514
      %1601 = vmatprep.subr.bf16.mxu0 %v1519
      %1602 = vmatpush1.bf16.msra.mxu0 %v1518
      %1603 = vmatprep.subr.bf16.mxu0 0
      %1604 = vmatpush1.bf16.msra.mxu0 0
      %1605 = vmatprep.subr.bf16.mxu0 0
      %1606 = vmatpush1.bf16.msra.mxu0 0
      %1607 = vmatprep.subr.bf16.mxu0 0
      %1608 = vmatpush1.bf16.msra.mxu0 0
      %1609 = vmatprep.subr.bf16.mxu0 0
      %1610 = vmatpush1.bf16.msra.mxu0 0
      %1611 = vmatprep.subr.bf16.mxu0 0
      %1612 = vmatpush1.bf16.msra.mxu0 0
      %1613 = vmatprep.subr.bf16.mxu0 0
      %1614 = vmatpush1.bf16.msra.mxu0 0
      %1615 = vmatprep.subr.bf16.mxu0 0
      %1616 = vmatpush1.bf16.msra.mxu0 0
      %1617 = vmatprep.subr.bf16.mxu0 0
      %1618 = vmatpush1.bf16.msra.mxu0 0
      %1619 = vmatprep.subr.bf16.mxu0 0
      %1620 = vmatpush1.bf16.msra.mxu0 0
      %1621 = vmatprep.subr.bf16.mxu0 0
      %1622 = vmatpush1.bf16.msra.mxu0 0
      %1623 = vmatprep.subr.bf16.mxu0 0
      %1624 = vmatpush1.bf16.msra.mxu0 0
      %1625 = vmatprep.subr.bf16.mxu0 0
      %1626 = vmatpush1.bf16.msra.mxu0 0
      %1627 = vmatprep.mubr.bf16.mxu0 0
      %1628 = vmatmul.mubr.bf16.gmra.mrb[0].mxu0 %v1537
      %v1629 = vpop.f32.mrb[0].mxu0
      %v1630 = vadd.f32 %v1438, %v1629
      %v1631 = vpop.f32.mrb[0].mxu0
      %v1632 = vadd.f32 %v1440, %v1631
      %v1633 = vpop.f32.mrb[0].mxu0
      %v1634 = vadd.f32 %v1442, %v1633
      %v1635 = vpop.f32.mrb[0].mxu0
      %v1636 = vadd.f32 %v1444, %v1635
      %1637 = vmatprep.mubr.bf16.mxu0 0
      %1638 = vmatmul.mubr.bf16.gmra.mrb[0].mxu0 %v1540
      %v1639 = vpop.f32.mrb[0].mxu0
      %v1640 = vadd.f32 %v1448, %v1639
      %v1641 = vpop.f32.mrb[0].mxu0
      %v1642 = vadd.f32 %v1450, %v1641
      %v1643 = vpop.f32.mrb[0].mxu0
      %v1644 = vadd.f32 %v1452, %v1643
      %v1645 = vpop.f32.mrb[0].mxu0
      %v1646 = vadd.f32 %v1454, %v1645
      %1647 = vdwg.mxu0
      %v1648 = vld [vmem:[#allocation2 + $0x4] sm:$0xff]
      %v1649 = vld [vmem:[#allocation2 + $0xc] sm:$0xff]
      %v1650 = vld [vmem:[#allocation2 + $0x14] sm:$0xff]
      %v1651 = vld [vmem:[#allocation2 + $0x1c] sm:$0xff]
      %v1652 = vpack.c.bf16 %v1649, %v1648
      %v1653 = vpack.c.bf16 %v1651, %v1650
      %s1654 = scalar_lea.vmem %s6, 256
      %v1655 = vld [vmem:[%s1654] sm:$0xff]
      %v1656 = vld [vmem:[%s1654 + $0x8] sm:$0xff]
      %v1657 = vld [vmem:[%s1654 + $0x10] sm:$0xff]
      %v1658 = vld [vmem:[%s1654 + $0x18] sm:$0xff]
      %v1659 = vld [vmem:[%s1654 + $0x20] sm:$0xff]
      %v1660 = vld [vmem:[%s1654 + $0x28] sm:$0xff]
      %v1661 = vld [vmem:[%s1654 + $0x30] sm:$0xff]
      %v1662 = vld [vmem:[%s1654 + $0x38] sm:$0xff]
      %v1663 = vld [vmem:[%s1654 + $0x40] sm:$0xff]
      %v1664 = vld [vmem:[%s1654 + $0x48] sm:$0xff]
      %v1665 = vld [vmem:[%s1654 + $0x50] sm:$0xff]
      %v1666 = vld [vmem:[%s1654 + $0x58] sm:$0xff]
      %v1667 = vld [vmem:[%s1654 + $0x60] sm:$0xff]
      %v1668 = vld [vmem:[%s1654 + $0x68] sm:$0xff]
      %v1669 = vld [vmem:[%s1654 + $0x70] sm:$0xff]
      %v1670 = vld [vmem:[%s1654 + $0x78] sm:$0xff]
      %v1687 = vunpack.c.l.b16 %v1655
      %v1688 = vunpack.c.h.b16 %v1655
      %v1689 = vunpack.c.l.b16 %v1656
      %v1690 = vunpack.c.h.b16 %v1656
      %v1691 = vunpack.c.l.b16 %v1657
      %v1692 = vunpack.c.h.b16 %v1657
      %v1693 = vunpack.c.l.b16 %v1658
      %v1694 = vunpack.c.h.b16 %v1658
      %v1695 = vunpack.c.l.b16 %v1659
      %v1696 = vunpack.c.h.b16 %v1659
      %v1697 = vunpack.c.l.b16 %v1660
      %v1698 = vunpack.c.h.b16 %v1660
      %v1699 = vunpack.c.l.b16 %v1661
      %v1700 = vunpack.c.h.b16 %v1661
      %v1701 = vunpack.c.l.b16 %v1662
      %v1702 = vunpack.c.h.b16 %v1662
      %v1703 = vunpack.c.l.b16 %v1663
      %v1704 = vunpack.c.h.b16 %v1663
      %v1705 = vunpack.c.l.b16 %v1664
      %v1706 = vunpack.c.h.b16 %v1664
      %v1707 = vunpack.c.l.b16 %v1665
      %v1708 = vunpack.c.h.b16 %v1665
      %v1709 = vunpack.c.l.b16 %v1666
      %v1710 = vunpack.c.h.b16 %v1666
      %v1711 = vunpack.c.l.b16 %v1667
      %v1712 = vunpack.c.h.b16 %v1667
      %v1713 = vunpack.c.l.b16 %v1668
      %v1714 = vunpack.c.h.b16 %v1668
      %v1715 = vunpack.c.l.b16 %v1669
      %v1716 = vunpack.c.h.b16 %v1669
      %v1717 = vunpack.c.l.b16 %v1670
      %v1718 = vunpack.c.h.b16 %v1670
      %v1719 = vpack.c.b16 %v1691, %v1687
      %v1720 = vpack.c.b16 %v1692, %v1688
      %v1721 = vpack.c.b16 %v1693, %v1689
      %v1722 = vpack.c.b16 %v1694, %v1690
      %v1723 = vpack.c.b16 %v1699, %v1695
      %v1724 = vpack.c.b16 %v1700, %v1696
      %v1725 = vpack.c.b16 %v1701, %v1697
      %v1726 = vpack.c.b16 %v1702, %v1698
      %v1727 = vpack.c.b16 %v1707, %v1703
      %v1728 = vpack.c.b16 %v1708, %v1704
      %v1729 = vpack.c.b16 %v1709, %v1705
      %v1730 = vpack.c.b16 %v1710, %v1706
      %v1731 = vpack.c.b16 %v1715, %v1711
      %v1732 = vpack.c.b16 %v1716, %v1712
      %v1733 = vpack.c.b16 %v1717, %v1713
      %v1734 = vpack.c.b16 %v1718, %v1714
      %v1752 = vsel %vm55, %v1652, 0
      %v1755 = vsel %vm55, %v1653, 0
      %1757 = vmatprep.subr.bf16.mxu0 %v1720
      %1758 = vmatpush1.bf16.msra.mxu0 %v1719
      %1759 = vmatprep.subr.bf16.mxu0 %v1724
      %1760 = vmatpush1.bf16.msra.mxu0 %v1723
      %1761 = vmatprep.subr.bf16.mxu0 %v1728
      %1762 = vmatpush1.bf16.msra.mxu0 %v1727
      %1763 = vmatprep.subr.bf16.mxu0 %v1732
      %1764 = vmatpush1.bf16.msra.mxu0 %v1731
      %1765 = vmatprep.subr.bf16.mxu0 0
      %1766 = vmatpush1.bf16.msra.mxu0 0
      %1767 = vmatprep.subr.bf16.mxu0 0
      %1768 = vmatpush1.bf16.msra.mxu0 0
      %1769 = vmatprep.subr.bf16.mxu0 0
      %1770 = vmatpush1.bf16.msra.mxu0 0
      %1771 = vmatprep.subr.bf16.mxu0 0
      %1772 = vmatpush1.bf16.msra.mxu0 0
      %1773 = vmatprep.subr.bf16.mxu0 0
      %1774 = vmatpush1.bf16.msra.mxu0 0
      %1775 = vmatprep.subr.bf16.mxu0 0
      %1776 = vmatpush1.bf16.msra.mxu0 0
      %1777 = vmatprep.subr.bf16.mxu0 0
      %1778 = vmatpush1.bf16.msra.mxu0 0
      %1779 = vmatprep.subr.bf16.mxu0 0
      %1780 = vmatpush1.bf16.msra.mxu0 0
      %1781 = vmatprep.subr.bf16.mxu0 0
      %1782 = vmatpush1.bf16.msra.mxu0 0
      %1783 = vmatprep.subr.bf16.mxu0 0
      %1784 = vmatpush1.bf16.msra.mxu0 0
      %1785 = vmatprep.subr.bf16.mxu0 0
      %1786 = vmatpush1.bf16.msra.mxu0 0
      %1787 = vmatprep.subr.bf16.mxu0 0
      %1788 = vmatpush1.bf16.msra.mxu0 0
      %1789 = vmatprep.mubr.bf16.mxu0 0
      %1790 = vmatmul.mubr.bf16.gmra.mrb[0].mxu0 %v1752
      %v1791 = vpop.f32.mrb[0].mxu0
      %v1792 = vadd.f32 0.0, %v1791
      %v1793 = vpop.f32.mrb[0].mxu0
      %v1794 = vadd.f32 0.0, %v1793
      %v1795 = vpop.f32.mrb[0].mxu0
      %v1796 = vadd.f32 0.0, %v1795
      %v1797 = vpop.f32.mrb[0].mxu0
      %v1798 = vadd.f32 0.0, %v1797
      %1799 = vmatprep.mubr.bf16.mxu0 0
      %1800 = vmatmul.mubr.bf16.gmra.mrb[0].mxu0 %v1755
      %v1801 = vpop.f32.mrb[0].mxu0
      %v1802 = vadd.f32 0.0, %v1801
      %v1803 = vpop.f32.mrb[0].mxu0
      %v1804 = vadd.f32 0.0, %v1803
      %v1805 = vpop.f32.mrb[0].mxu0
      %v1806 = vadd.f32 0.0, %v1805
      %v1807 = vpop.f32.mrb[0].mxu0
      %v1808 = vadd.f32 0.0, %v1807
      %1809 = vdwg.mxu0
      %1810 = vmatprep.subr.bf16.mxu0 %v1722
      %1811 = vmatpush1.bf16.msra.mxu0 %v1721
      %1812 = vmatprep.subr.bf16.mxu0 %v1726
      %1813 = vmatpush1.bf16.msra.mxu0 %v1725
      %1814 = vmatprep.subr.bf16.mxu0 %v1730
      %1815 = vmatpush1.bf16.msra.mxu0 %v1729
      %1816 = vmatprep.subr.bf16.mxu0 %v1734
      %1817 = vmatpush1.bf16.msra.mxu0 %v1733
      %1818 = vmatprep.subr.bf16.mxu0 0
      %1819 = vmatpush1.bf16.msra.mxu0 0
      %1820 = vmatprep.subr.bf16.mxu0 0
      %1821 = vmatpush1.bf16.msra.mxu0 0
      %1822 = vmatprep.subr.bf16.mxu0 0
      %1823 = vmatpush1.bf16.msra.mxu0 0
      %1824 = vmatprep.subr.bf16.mxu0 0
      %1825 = vmatpush1.bf16.msra.mxu0 0
      %1826 = vmatprep.subr.bf16.mxu0 0
      %1827 = vmatpush1.bf16.msra.mxu0 0
      %1828 = vmatprep.subr.bf16.mxu0 0
      %1829 = vmatpush1.bf16.msra.mxu0 0
      %1830 = vmatprep.subr.bf16.mxu0 0
      %1831 = vmatpush1.bf16.msra.mxu0 0
      %1832 = vmatprep.subr.bf16.mxu0 0
      %1833 = vmatpush1.bf16.msra.mxu0 0
      %1834 = vmatprep.subr.bf16.mxu0 0
      %1835 = vmatpush1.bf16.msra.mxu0 0
      %1836 = vmatprep.subr.bf16.mxu0 0
      %1837 = vmatpush1.bf16.msra.mxu0 0
      %1838 = vmatprep.subr.bf16.mxu0 0
      %1839 = vmatpush1.bf16.msra.mxu0 0
      %1840 = vmatprep.subr.bf16.mxu0 0
      %1841 = vmatpush1.bf16.msra.mxu0 0
      %1842 = vmatprep.mubr.bf16.mxu0 0
      %1843 = vmatmul.mubr.bf16.gmra.mrb[0].mxu0 %v1752
      %v1844 = vpop.f32.mrb[0].mxu0
      %v1845 = vadd.f32 0.0, %v1844
      %v1846 = vpop.f32.mrb[0].mxu0
      %v1847 = vadd.f32 0.0, %v1846
      %v1848 = vpop.f32.mrb[0].mxu0
      %v1849 = vadd.f32 0.0, %v1848
      %v1850 = vpop.f32.mrb[0].mxu0
      %v1851 = vadd.f32 0.0, %v1850
      %1852 = vmatprep.mubr.bf16.mxu0 0
      %1853 = vmatmul.mubr.bf16.gmra.mrb[0].mxu0 %v1755
      %v1854 = vpop.f32.mrb[0].mxu0
      %v1855 = vadd.f32 0.0, %v1854
      %v1856 = vpop.f32.mrb[0].mxu0
      %v1857 = vadd.f32 0.0, %v1856
      %v1858 = vpop.f32.mrb[0].mxu0
      %v1859 = vadd.f32 0.0, %v1858
      %v1860 = vpop.f32.mrb[0].mxu0
      %v1861 = vadd.f32 0.0, %v1860
      %1862 = vdwg.mxu0
      %v1863 = vadd.f32 %v1577, %v1792
      %v1864 = vadd.f32 %v1579, %v1794
      %v1865 = vadd.f32 %v1630, %v1845
      %v1866 = vadd.f32 %v1632, %v1847
      %v1867 = vadd.f32 %v1581, %v1796
      %v1868 = vadd.f32 %v1583, %v1798
      %v1869 = vadd.f32 %v1634, %v1849
      %v1870 = vadd.f32 %v1636, %v1851
      %v1871 = vadd.f32 %v1587, %v1802
      %v1872 = vadd.f32 %v1589, %v1804
      %v1873 = vadd.f32 %v1640, %v1855
      %v1874 = vadd.f32 %v1642, %v1857
      %v1875 = vadd.f32 %v1591, %v1806
      %v1876 = vadd.f32 %v1593, %v1808
      %v1877 = vadd.f32 %v1644, %v1859
      %v1878 = vadd.f32 %v1646, %v1861
      %v1880 = vlaneseq
      %v1881 = vshrl.u32 %v1880, 7
      %v1882 = vsub.s32 0, %v1881
      %v1883 = vrot.slane %v1222, %v1882
      %v1884 = vlaneseq
      %v1885 = vshrl.u32 %v1884, 7
      %v1886 = vsub.s32 1, %v1885
      %v1887 = vrot.slane %v1222, %v1886
      %v1888 = vlaneseq
      %v1889 = vshrl.u32 %v1888, 7
      %v1890 = vsub.s32 2, %v1889
      %v1891 = vrot.slane %v1222, %v1890
      %v1892 = vlaneseq
      %v1893 = vshrl.u32 %v1892, 7
      %v1894 = vsub.s32 3, %v1893
      %v1895 = vrot.slane %v1222, %v1894
      %v1900 = vadd.f32 %v1863, %v1883
      %v1901 = vadd.f32 %v1864, %v1887
      %v1902 = vadd.f32 %v1865, %v1891
      %v1903 = vadd.f32 %v1866, %v1895
      %v1904 = vadd.f32 %v1867, %v1883
      %v1905 = vadd.f32 %v1868, %v1887
      %v1906 = vadd.f32 %v1869, %v1891
      %v1907 = vadd.f32 %v1870, %v1895
      %v1908 = vadd.f32 %v1871, %v1883
      %v1909 = vadd.f32 %v1872, %v1887
      %v1910 = vadd.f32 %v1873, %v1891
      %v1911 = vadd.f32 %v1874, %v1895
      %v1912 = vadd.f32 %v1875, %v1883
      %v1913 = vadd.f32 %v1876, %v1887
      %v1914 = vadd.f32 %v1877, %v1891
      %v1915 = vadd.f32 %v1878, %v1895
      %v1916 = vxor.u32 %v1900, 2147483648
      %v1917 = vxor.u32 %v1901, 2147483648
      %v1918 = vxor.u32 %v1902, 2147483648
      %v1919 = vxor.u32 %v1903, 2147483648
      %v1920 = vxor.u32 %v1904, 2147483648
      %v1921 = vxor.u32 %v1905, 2147483648
      %v1922 = vxor.u32 %v1906, 2147483648
      %v1923 = vxor.u32 %v1907, 2147483648
      %v1924 = vxor.u32 %v1908, 2147483648
      %v1925 = vxor.u32 %v1909, 2147483648
      %v1926 = vxor.u32 %v1910, 2147483648
      %v1927 = vxor.u32 %v1911, 2147483648
      %v1928 = vxor.u32 %v1912, 2147483648
      %v1929 = vxor.u32 %v1913, 2147483648
      %v1930 = vxor.u32 %v1914, 2147483648
      %v1931 = vxor.u32 %v1915, 2147483648
      %v1932 = vmul.f32 %v1916, 1.442695
      %v1933 = vpow.pop %v1932
      %v1934 = vmul.f32 %v1917, 1.442695
      %v1935 = vpow.pop %v1934
      %v1936 = vmul.f32 %v1918, 1.442695
      %v1937 = vpow.pop %v1936
      %v1938 = vmul.f32 %v1919, 1.442695
      %v1939 = vpow.pop %v1938
      %v1940 = vmul.f32 %v1920, 1.442695
      %v1941 = vpow.pop %v1940
      %v1942 = vmul.f32 %v1921, 1.442695
      %v1943 = vpow.pop %v1942
      %v1944 = vmul.f32 %v1922, 1.442695
      %v1945 = vpow.pop %v1944
      %v1946 = vmul.f32 %v1923, 1.442695
      %v1947 = vpow.pop %v1946
      %v1948 = vmul.f32 %v1924, 1.442695
      %v1949 = vpow.pop %v1948
      %v1950 = vmul.f32 %v1925, 1.442695
      %v1951 = vpow.pop %v1950
      %v1952 = vmul.f32 %v1926, 1.442695
      %v1953 = vpow.pop %v1952
      %v1954 = vmul.f32 %v1927, 1.442695
      %v1955 = vpow.pop %v1954
      %v1956 = vmul.f32 %v1928, 1.442695
      %v1957 = vpow.pop %v1956
      %v1958 = vmul.f32 %v1929, 1.442695
      %v1959 = vpow.pop %v1958
      %v1960 = vmul.f32 %v1930, 1.442695
      %v1961 = vpow.pop %v1960
      %v1962 = vmul.f32 %v1931, 1.442695
      %v1963 = vpow.pop %v1962
      %v1964 = vadd.f32 %v1933, 1.0
      %v1965 = vadd.f32 %v1935, 1.0
      %v1966 = vadd.f32 %v1937, 1.0
      %v1967 = vadd.f32 %v1939, 1.0
      %v1968 = vadd.f32 %v1941, 1.0
      %v1969 = vadd.f32 %v1943, 1.0
      %v1970 = vadd.f32 %v1945, 1.0
      %v1971 = vadd.f32 %v1947, 1.0
      %v1972 = vadd.f32 %v1949, 1.0
      %v1973 = vadd.f32 %v1951, 1.0
      %v1974 = vadd.f32 %v1953, 1.0
      %v1975 = vadd.f32 %v1955, 1.0
      %v1976 = vadd.f32 %v1957, 1.0
      %v1977 = vadd.f32 %v1959, 1.0
      %v1978 = vadd.f32 %v1961, 1.0
      %v1979 = vadd.f32 %v1963, 1.0
      %v1980 = vrcp.pop %v1964
      %v1981 = vmul.f32 1.0, %v1980
      %v1982 = vrcp.pop %v1965
      %v1983 = vmul.f32 1.0, %v1982
      %v1984 = vrcp.pop %v1966
      %v1985 = vmul.f32 1.0, %v1984
      %v1986 = vrcp.pop %v1967
      %v1987 = vmul.f32 1.0, %v1986
      %v1988 = vrcp.pop %v1968
      %v1989 = vmul.f32 1.0, %v1988
      %v1990 = vrcp.pop %v1969
      %v1991 = vmul.f32 1.0, %v1990
      %v1992 = vrcp.pop %v1970
      %v1993 = vmul.f32 1.0, %v1992
      %v1994 = vrcp.pop %v1971
      %v1995 = vmul.f32 1.0, %v1994
      %v1996 = vrcp.pop %v1972
      %v1997 = vmul.f32 1.0, %v1996
      %v1998 = vrcp.pop %v1973
      %v1999 = vmul.f32 1.0, %v1998
      %v2000 = vrcp.pop %v1974
      %v2001 = vmul.f32 1.0, %v2000
      %v2002 = vrcp.pop %v1975
      %v2003 = vmul.f32 1.0, %v2002
      %v2004 = vrcp.pop %v1976
      %v2005 = vmul.f32 1.0, %v2004
      %v2006 = vrcp.pop %v1977
      %v2007 = vmul.f32 1.0, %v2006
      %v2008 = vrcp.pop %v1978
      %v2009 = vmul.f32 1.0, %v2008
      %v2010 = vrcp.pop %v1979
      %v2011 = vmul.f32 1.0, %v2010
      %v2012 = vmul.f32 %v1900, %v1981
      %v2013 = vmul.f32 %v1901, %v1983
      %v2014 = vmul.f32 %v1902, %v1985
      %v2015 = vmul.f32 %v1903, %v1987
      %v2016 = vmul.f32 %v1904, %v1989
      %v2017 = vmul.f32 %v1905, %v1991
      %v2018 = vmul.f32 %v1906, %v1993
      %v2019 = vmul.f32 %v1907, %v1995
      %v2020 = vmul.f32 %v1908, %v1997
      %v2021 = vmul.f32 %v1909, %v1999
      %v2022 = vmul.f32 %v1910, %v2001
      %v2023 = vmul.f32 %v1911, %v2003
      %v2024 = vmul.f32 %v1912, %v2005
      %v2025 = vmul.f32 %v1913, %v2007
      %v2026 = vmul.f32 %v1914, %v2009
      %v2027 = vmul.f32 %v1915, %v2011
      %s2028 = smul.u32 %s1217, 4
      %s2029 = scalar_lea.vmem %s8, %s2028
      %v2030 = vld [vmem:[%s2029] sm:$0xf]
      %v2032 = vlaneseq
      %v2033 = vshrl.u32 %v2032, 7
      %v2034 = vsub.s32 0, %v2033
      %v2035 = vrot.slane %v2030, %v2034
      %v2036 = vlaneseq
      %v2037 = vshrl.u32 %v2036, 7
      %v2038 = vsub.s32 1, %v2037
      %v2039 = vrot.slane %v2030, %v2038
      %v2040 = vlaneseq
      %v2041 = vshrl.u32 %v2040, 7
      %v2042 = vsub.s32 2, %v2041
      %v2043 = vrot.slane %v2030, %v2042
      %v2044 = vlaneseq
      %v2045 = vshrl.u32 %v2044, 7
      %v2046 = vsub.s32 3, %v2045
      %v2047 = vrot.slane %v2030, %v2046
      %v2052 = vadd.f32 %v2012, %v2035
      %v2053 = vadd.f32 %v2013, %v2039
      %v2054 = vadd.f32 %v2014, %v2043
      %v2055 = vadd.f32 %v2015, %v2047
      %v2056 = vadd.f32 %v2016, %v2035
      %v2057 = vadd.f32 %v2017, %v2039
      %v2058 = vadd.f32 %v2018, %v2043
      %v2059 = vadd.f32 %v2019, %v2047
      %v2060 = vadd.f32 %v2020, %v2035
      %v2061 = vadd.f32 %v2021, %v2039
      %v2062 = vadd.f32 %v2022, %v2043
      %v2063 = vadd.f32 %v2023, %v2047
      %v2064 = vadd.f32 %v2024, %v2035
      %v2065 = vadd.f32 %v2025, %v2039
      %v2066 = vadd.f32 %v2026, %v2043
      %v2067 = vadd.f32 %v2027, %v2047
      %vm2084 = vcmask 1041408
      %v2085 = vrot.slane %v2052, 6
      %v2086 = vrot.slane %v2053, 6
      %v2087 = vrot.slane %v2054, 6
      %v2088 = vrot.slane %v2055, 6
      %v2089 = vrot.slane %v2056, 6
      %v2090 = vsel %vm2084, %v2085, %v2089
      %v2091 = vrot.slane %v2057, 6
      %v2092 = vsel %vm2084, %v2086, %v2091
      %v2093 = vrot.slane %v2058, 6
      %v2094 = vsel %vm2084, %v2087, %v2093
      %v2095 = vrot.slane %v2059, 6
      %v2096 = vsel %vm2084, %v2088, %v2095
      %v2097 = vrot.slane %v2060, 6
      %v2098 = vsel %vm2084, %v2089, %v2097
      %v2099 = vrot.slane %v2061, 6
      %v2100 = vsel %vm2084, %v2091, %v2099
      %v2101 = vrot.slane %v2062, 6
      %v2102 = vsel %vm2084, %v2093, %v2101
      %v2103 = vrot.slane %v2063, 6
      %v2104 = vsel %vm2084, %v2095, %v2103
      %v2105 = vrot.slane %v2064, 6
      %v2106 = vsel %vm2084, %v2097, %v2105
      %v2107 = vrot.slane %v2065, 6
      %v2108 = vsel %vm2084, %v2099, %v2107
      %v2109 = vrot.slane %v2066, 6
      %v2110 = vsel %vm2084, %v2101, %v2109
      %v2111 = vrot.slane %v2067, 6
      %v2112 = vsel %vm2084, %v2103, %v2111
      %2133 = vst [vmem:[#allocation3] sm:$0xfc] %v2085
      %2134 = vst [vmem:[#allocation3 + $0x8] sm:$0xfc] %v2086
      %2135 = vst [vmem:[#allocation3 + $0x10] sm:$0xfc] %v2087
      %2136 = vst [vmem:[#allocation3 + $0x18] sm:$0xfc] %v2088
      %2137 = vst [vmem:[#allocation3 + $0x20] sm:$0xff] %v2090
      %2138 = vst [vmem:[#allocation3 + $0x28] sm:$0xff] %v2092
      %2139 = vst [vmem:[#allocation3 + $0x30] sm:$0xff] %v2094
      %2140 = vst [vmem:[#allocation3 + $0x38] sm:$0xff] %v2096
      %2141 = vst [vmem:[#allocation3 + $0x40] sm:$0xff] %v2098
      %2142 = vst [vmem:[#allocation3 + $0x48] sm:$0xff] %v2100
      %2143 = vst [vmem:[#allocation3 + $0x50] sm:$0xff] %v2102
      %2144 = vst [vmem:[#allocation3 + $0x58] sm:$0xff] %v2104
      %2145 = vst [vmem:[#allocation3 + $0x60] sm:$0xff] %v2106
      %2146 = vst [vmem:[#allocation3 + $0x68] sm:$0xff] %v2108
      %2147 = vst [vmem:[#allocation3 + $0x70] sm:$0xff] %v2110
      %2148 = vst [vmem:[#allocation3 + $0x78] sm:$0xff] %v2112
      %2149 = vst [vmem:[#allocation3 + $0x80] sm:$0x3] %v2105
      %2150 = vst [vmem:[#allocation3 + $0x88] sm:$0x3] %v2107
      %2151 = vst [vmem:[#allocation3 + $0x90] sm:$0x3] %v2109
      %2152 = vst [vmem:[#allocation3 + $0x98] sm:$0x3] %v2111
      %v2153 = vld [vmem:[%s10] sm:$0x1]
      %v2154 = vld [vmem:[#allocation3] sm:$0xff]
      %v2155 = vld [vmem:[#allocation3 + $0x8] sm:$0xff]
      %v2156 = vld [vmem:[#allocation3 + $0x10] sm:$0xff]
      %v2157 = vld [vmem:[#allocation3 + $0x18] sm:$0xff]
      %v2158 = vld [vmem:[#allocation3 + $0x20] sm:$0xff]
      %v2159 = vld [vmem:[#allocation3 + $0x28] sm:$0xff]
      %v2160 = vld [vmem:[#allocation3 + $0x30] sm:$0xff]
      %v2161 = vld [vmem:[#allocation3 + $0x38] sm:$0xff]
      %v2162 = vld [vmem:[#allocation3 + $0x40] sm:$0xff]
      %v2163 = vld [vmem:[#allocation3 + $0x48] sm:$0xff]
      %v2164 = vld [vmem:[#allocation3 + $0x50] sm:$0xff]
      %v2165 = vld [vmem:[#allocation3 + $0x58] sm:$0xff]
      %v2166 = vld [vmem:[#allocation3 + $0x60] sm:$0xff]
      %v2167 = vld [vmem:[#allocation3 + $0x68] sm:$0xff]
      %v2168 = vld [vmem:[#allocation3 + $0x70] sm:$0xff]
      %v2169 = vld [vmem:[#allocation3 + $0x78] sm:$0xff]
      %v2170 = vpack.c.bf16 %v2158, %v2154
      %v2171 = vpack.c.bf16 %v2159, %v2155
      %v2172 = vpack.c.bf16 %v2160, %v2156
      %v2173 = vpack.c.bf16 %v2161, %v2157
      %v2174 = vpack.c.bf16 %v2166, %v2162
      %v2175 = vpack.c.bf16 %v2167, %v2163
      %v2176 = vpack.c.bf16 %v2168, %v2164
      %v2177 = vpack.c.bf16 %v2169, %v2165
      %v2178 = vld [vmem:[%s9] sm:$0xf]
      %v2179 = vld [vmem:[%s9 + $0x4] sm:$0xf]
      %v2180 = vld [vmem:[%s9 + $0x8] sm:$0xf]
      %v2181 = vld [vmem:[%s9 + $0xc] sm:$0xf]
      %v2182 = vld [vmem:[%s9 + $0x10] sm:$0xf]
      %v2183 = vld [vmem:[%s9 + $0x14] sm:$0xf]
      %v2184 = vld [vmem:[%s9 + $0x18] sm:$0xf]
      %v2185 = vld [vmem:[%s9 + $0x1c] sm:$0xf]
      %v2186 = vld [vmem:[%s9 + $0x20] sm:$0xf]
      %v2187 = vld [vmem:[%s9 + $0x24] sm:$0xf]
      %v2188 = vld [vmem:[%s9 + $0x28] sm:$0xf]
      %v2189 = vld [vmem:[%s9 + $0x2c] sm:$0xf]
      %v2190 = vld [vmem:[%s9 + $0x30] sm:$0xf]
      %v2191 = vld [vmem:[%s9 + $0x34] sm:$0xf]
      %v2192 = vld [vmem:[%s9 + $0x38] sm:$0xf]
      %v2193 = vld [vmem:[%s9 + $0x3c] sm:$0xf]
      %v2194 = vld [vmem:[%s9 + $0x40] sm:$0xf]
      %v2195 = vld [vmem:[%s9 + $0x44] sm:$0xf]
      %v2196 = vld [vmem:[%s9 + $0x48] sm:$0xf]
      %v2197 = vld [vmem:[%s9 + $0x4c] sm:$0xf]
      %v2198 = vld [vmem:[%s9 + $0x50] sm:$0xf]
      %v2199 = vld [vmem:[%s9 + $0x54] sm:$0xf]
      %v2200 = vld [vmem:[%s9 + $0x58] sm:$0xf]
      %v2201 = vld [vmem:[%s9 + $0x5c] sm:$0xf]
      %v2202 = vld [vmem:[%s9 + $0x60] sm:$0xf]
      %v2203 = vld [vmem:[%s9 + $0x64] sm:$0xf]
      %v2204 = vld [vmem:[%s9 + $0x68] sm:$0xf]
      %v2205 = vld [vmem:[%s9 + $0x6c] sm:$0xf]
      %v2206 = vld [vmem:[%s9 + $0x70] sm:$0xf]
      %v2207 = vld [vmem:[%s9 + $0x74] sm:$0xf]
      %v2208 = vld [vmem:[%s9 + $0x78] sm:$0xf]
      %v2209 = vld [vmem:[%s9 + $0x7c] sm:$0xf]
      %v2210 = vld [vmem:[%s9 + $0x80] sm:$0xf]
      %v2211 = vld [vmem:[%s9 + $0x84] sm:$0xf]
      %v2212 = vld [vmem:[%s9 + $0x88] sm:$0xf]
      %v2213 = vld [vmem:[%s9 + $0x8c] sm:$0xf]
      %v2214 = vld [vmem:[%s9 + $0x90] sm:$0xf]
      %v2215 = vld [vmem:[%s9 + $0x94] sm:$0xf]
      %v2216 = vld [vmem:[%s9 + $0x98] sm:$0xf]
      %v2217 = vld [vmem:[%s9 + $0x9c] sm:$0xf]
      %v2218 = vld [vmem:[%s9 + $0xa0] sm:$0xf]
      %v2219 = vld [vmem:[%s9 + $0xa4] sm:$0xf]
      %v2220 = vld [vmem:[%s9 + $0xa8] sm:$0xf]
      %v2221 = vld [vmem:[%s9 + $0xac] sm:$0xf]
      %v2222 = vld [vmem:[%s9 + $0xb0] sm:$0xf]
      %v2223 = vld [vmem:[%s9 + $0xb4] sm:$0xf]
      %v2224 = vld [vmem:[%s9 + $0xb8] sm:$0xf]
      %v2225 = vld [vmem:[%s9 + $0xbc] sm:$0xf]
      %v2226 = vld [vmem:[%s9 + $0xc0] sm:$0xf]
      %v2227 = vld [vmem:[%s9 + $0xc4] sm:$0xf]
      %v2228 = vld [vmem:[%s9 + $0xc8] sm:$0xf]
      %v2229 = vld [vmem:[%s9 + $0xcc] sm:$0xf]
      %v2230 = vld [vmem:[%s9 + $0xd0] sm:$0xf]
      %v2231 = vld [vmem:[%s9 + $0xd4] sm:$0xf]
      %v2232 = vld [vmem:[%s9 + $0xd8] sm:$0xf]
      %v2233 = vld [vmem:[%s9 + $0xdc] sm:$0xf]
      %v2234 = vld [vmem:[%s9 + $0xe0] sm:$0xf]
      %v2235 = vld [vmem:[%s9 + $0xe4] sm:$0xf]
      %v2236 = vld [vmem:[%s9 + $0xe8] sm:$0xf]
      %v2237 = vld [vmem:[%s9 + $0xec] sm:$0xf]
      %v2238 = vld [vmem:[%s9 + $0xf0] sm:$0xf]
      %v2239 = vld [vmem:[%s9 + $0xf4] sm:$0xf]
      %v2240 = vld [vmem:[%s9 + $0xf8] sm:$0xf]
      %v2241 = vld [vmem:[%s9 + $0xfc] sm:$0xf]
      %v2242 = vld [vmem:[#allocation3] sm:$0xfc]
      %v2243 = vld [vmem:[#allocation3 + $0x8] sm:$0xfc]
      %v2244 = vld [vmem:[#allocation3 + $0x10] sm:$0xfc]
      %v2245 = vld [vmem:[#allocation3 + $0x18] sm:$0xfc]
      %v2246 = vld [vmem:[#allocation3 + $0x80] sm:$0x3]
      %v2247 = vld [vmem:[#allocation3 + $0x88] sm:$0x3]
      %v2248 = vld [vmem:[#allocation3 + $0x90] sm:$0x3]
      %v2249 = vld [vmem:[#allocation3 + $0x98] sm:$0x3]
      %v2250 = vpack.c.bf16 %v2158, %v2242
      %v2251 = vpack.c.bf16 %v2159, %v2243
      %v2252 = vpack.c.bf16 %v2160, %v2244
      %v2253 = vpack.c.bf16 %v2161, %v2245
      %v2254 = vpack.c.bf16 %v2246, %v2246
      %v2255 = vpack.c.bf16 %v2247, %v2247
      %v2256 = vpack.c.bf16 %v2248, %v2248
      %v2257 = vpack.c.bf16 %v2249, %v2249
      %s2258 = scalar_lea.vmem %s9, 256
      %v2259 = vld [vmem:[%s2258] sm:$0xf]
      %v2260 = vld [vmem:[%s2258 + $0x4] sm:$0xf]
      %v2261 = vld [vmem:[%s2258 + $0x8] sm:$0xf]
      %v2262 = vld [vmem:[%s2258 + $0xc] sm:$0xf]
      %v2263 = vld [vmem:[%s2258 + $0x10] sm:$0xf]
      %v2264 = vld [vmem:[%s2258 + $0x14] sm:$0xf]
      %v2265 = vld [vmem:[%s2258 + $0x18] sm:$0xf]
      %v2266 = vld [vmem:[%s2258 + $0x1c] sm:$0xf]
      %v2267 = vld [vmem:[%s2258 + $0x20] sm:$0xf]
      %v2268 = vld [vmem:[%s2258 + $0x24] sm:$0xf]
      %v2269 = vld [vmem:[%s2258 + $0x28] sm:$0xf]
      %v2270 = vld [vmem:[%s2258 + $0x2c] sm:$0xf]
      %v2271 = vld [vmem:[%s2258 + $0x30] sm:$0xf]
      %v2272 = vld [vmem:[%s2258 + $0x34] sm:$0xf]
      %v2273 = vld [vmem:[%s2258 + $0x38] sm:$0xf]
      %v2274 = vld [vmem:[%s2258 + $0x3c] sm:$0xf]
      %v2275 = vld [vmem:[%s2258 + $0x40] sm:$0xf]
      %v2276 = vld [vmem:[%s2258 + $0x44] sm:$0xf]
      %v2277 = vld [vmem:[%s2258 + $0x48] sm:$0xf]
      %v2278 = vld [vmem:[%s2258 + $0x4c] sm:$0xf]
      %v2279 = vld [vmem:[%s2258 + $0x50] sm:$0xf]
      %v2280 = vld [vmem:[%s2258 + $0x54] sm:$0xf]
      %v2281 = vld [vmem:[%s2258 + $0x58] sm:$0xf]
      %v2282 = vld [vmem:[%s2258 + $0x5c] sm:$0xf]
      %v2283 = vld [vmem:[%s2258 + $0x60] sm:$0xf]
      %v2284 = vld [vmem:[%s2258 + $0x64] sm:$0xf]
      %v2285 = vld [vmem:[%s2258 + $0x68] sm:$0xf]
      %v2286 = vld [vmem:[%s2258 + $0x6c] sm:$0xf]
      %v2287 = vld [vmem:[%s2258 + $0x70] sm:$0xf]
      %v2288 = vld [vmem:[%s2258 + $0x74] sm:$0xf]
      %v2289 = vld [vmem:[%s2258 + $0x78] sm:$0xf]
      %v2290 = vld [vmem:[%s2258 + $0x7c] sm:$0xf]
      %v2291 = vld [vmem:[%s2258 + $0x80] sm:$0xf]
      %v2292 = vld [vmem:[%s2258 + $0x84] sm:$0xf]
      %v2293 = vld [vmem:[%s2258 + $0x88] sm:$0xf]
      %v2294 = vld [vmem:[%s2258 + $0x8c] sm:$0xf]
      %v2295 = vld [vmem:[%s2258 + $0x90] sm:$0xf]
      %v2296 = vld [vmem:[%s2258 + $0x94] sm:$0xf]
      %v2297 = vld [vmem:[%s2258 + $0x98] sm:$0xf]
      %v2298 = vld [vmem:[%s2258 + $0x9c] sm:$0xf]
      %v2299 = vld [vmem:[%s2258 + $0xa0] sm:$0xf]
      %v2300 = vld [vmem:[%s2258 + $0xa4] sm:$0xf]
      %v2301 = vld [vmem:[%s2258 + $0xa8] sm:$0xf]
      %v2302 = vld [vmem:[%s2258 + $0xac] sm:$0xf]
      %v2303 = vld [vmem:[%s2258 + $0xb0] sm:$0xf]
      %v2304 = vld [vmem:[%s2258 + $0xb4] sm:$0xf]
      %v2305 = vld [vmem:[%s2258 + $0xb8] sm:$0xf]
      %v2306 = vld [vmem:[%s2258 + $0xbc] sm:$0xf]
      %v2307 = vld [vmem:[%s2258 + $0xc0] sm:$0xf]
      %v2308 = vld [vmem:[%s2258 + $0xc4] sm:$0xf]
      %v2309 = vld [vmem:[%s2258 + $0xc8] sm:$0xf]
      %v2310 = vld [vmem:[%s2258 + $0xcc] sm:$0xf]
      %v2311 = vld [vmem:[%s2258 + $0xd0] sm:$0xf]
      %v2312 = vld [vmem:[%s2258 + $0xd4] sm:$0xf]
      %v2313 = vld [vmem:[%s2258 + $0xd8] sm:$0xf]
      %v2314 = vld [vmem:[%s2258 + $0xdc] sm:$0xf]
      %v2315 = vld [vmem:[%s2258 + $0xe0] sm:$0xf]
      %v2316 = vld [vmem:[%s2258 + $0xe4] sm:$0xf]
      %v2317 = vld [vmem:[%s2258 + $0xe8] sm:$0xf]
      %v2318 = vld [vmem:[%s2258 + $0xec] sm:$0xf]
      %v2319 = vld [vmem:[%s2258 + $0xf0] sm:$0xf]
      %v2320 = vld [vmem:[%s2258 + $0xf4] sm:$0xf]
      %v2321 = vld [vmem:[%s2258 + $0xf8] sm:$0xf]
      %v2322 = vld [vmem:[%s2258 + $0xfc] sm:$0xf]
      %vm2335 = vcmask 1046528
      %v2336 = vrot.slane %v2250, 1
      %v2337 = vrot.slane %v2174, 1
      %v2338 = vsel %vm2335, %v2336, %v2337
      %v2339 = vrot.slane %v2251, 1
      %v2340 = vrot.slane %v2175, 1
      %v2341 = vsel %vm2335, %v2339, %v2340
      %v2342 = vrot.slane %v2252, 1
      %v2343 = vrot.slane %v2176, 1
      %v2344 = vsel %vm2335, %v2342, %v2343
      %v2345 = vrot.slane %v2253, 1
      %v2346 = vrot.slane %v2177, 1
      %v2347 = vsel %vm2335, %v2345, %v2346
      %v2348 = vrot.slane %v2254, 1
      %v2349 = vsel %vm2335, %v2337, %v2348
      %v2350 = vrot.slane %v2255, 1
      %v2351 = vsel %vm2335, %v2340, %v2350
      %v2352 = vrot.slane %v2256, 1
      %v2353 = vsel %vm2335, %v2343, %v2352
      %v2354 = vrot.slane %v2257, 1
      %v2355 = vsel %vm2335, %v2346, %v2354
      %v2428 = vunpack.c.l.b16 %v2259
      %v2429 = vunpack.c.l.b16 %v2260
      %v2430 = vunpack.c.l.b16 %v2261
      %v2431 = vunpack.c.l.b16 %v2262
      %v2432 = vunpack.c.l.b16 %v2263
      %v2433 = vunpack.c.l.b16 %v2264
      %v2434 = vunpack.c.l.b16 %v2265
      %v2435 = vunpack.c.l.b16 %v2266
      %v2436 = vunpack.c.l.b16 %v2267
      %v2437 = vunpack.c.l.b16 %v2268
      %v2438 = vunpack.c.l.b16 %v2269
      %v2439 = vunpack.c.l.b16 %v2270
      %v2440 = vunpack.c.l.b16 %v2271
      %v2441 = vunpack.c.l.b16 %v2272
      %v2442 = vunpack.c.l.b16 %v2273
      %v2443 = vunpack.c.l.b16 %v2274
      %v2444 = vunpack.c.l.b16 %v2275
      %v2445 = vunpack.c.l.b16 %v2276
      %v2446 = vunpack.c.l.b16 %v2277
      %v2447 = vunpack.c.l.b16 %v2278
      %v2448 = vunpack.c.l.b16 %v2279
      %v2449 = vunpack.c.l.b16 %v2280
      %v2450 = vunpack.c.l.b16 %v2281
      %v2451 = vunpack.c.l.b16 %v2282
      %v2452 = vunpack.c.l.b16 %v2283
      %v2453 = vunpack.c.l.b16 %v2284
      %v2454 = vunpack.c.l.b16 %v2285
      %v2455 = vunpack.c.l.b16 %v2286
      %v2456 = vunpack.c.l.b16 %v2287
      %v2457 = vunpack.c.l.b16 %v2288
      %v2458 = vunpack.c.l.b16 %v2289
      %v2459 = vunpack.c.l.b16 %v2290
      %v2460 = vunpack.c.l.b16 %v2291
      %v2461 = vunpack.c.l.b16 %v2292
      %v2462 = vunpack.c.l.b16 %v2293
      %v2463 = vunpack.c.l.b16 %v2294
      %v2464 = vunpack.c.l.b16 %v2295
      %v2465 = vunpack.c.l.b16 %v2296
      %v2466 = vunpack.c.l.b16 %v2297
      %v2467 = vunpack.c.l.b16 %v2298
      %v2468 = vunpack.c.l.b16 %v2299
      %v2469 = vunpack.c.l.b16 %v2300
      %v2470 = vunpack.c.l.b16 %v2301
      %v2471 = vunpack.c.l.b16 %v2302
      %v2472 = vunpack.c.l.b16 %v2303
      %v2473 = vunpack.c.l.b16 %v2304
      %v2474 = vunpack.c.l.b16 %v2305
      %v2475 = vunpack.c.l.b16 %v2306
      %v2476 = vunpack.c.l.b16 %v2307
      %v2477 = vunpack.c.l.b16 %v2308
      %v2478 = vunpack.c.l.b16 %v2309
      %v2479 = vunpack.c.l.b16 %v2310
      %v2480 = vunpack.c.l.b16 %v2311
      %v2481 = vunpack.c.l.b16 %v2312
      %v2482 = vunpack.c.l.b16 %v2313
      %v2483 = vunpack.c.l.b16 %v2314
      %v2484 = vunpack.c.l.b16 %v2315
      %v2485 = vunpack.c.l.b16 %v2316
      %v2486 = vunpack.c.l.b16 %v2317
      %v2487 = vunpack.c.l.b16 %v2318
      %v2488 = vunpack.c.l.b16 %v2319
      %v2489 = vunpack.c.l.b16 %v2320
      %v2490 = vunpack.c.l.b16 %v2321
      %v2491 = vunpack.c.l.b16 %v2322
      %v2492 = vpack.c.b16 %v2429, %v2428
      %v2493 = vpack.c.b16 %v2431, %v2430
      %v2494 = vpack.c.b16 %v2433, %v2432
      %v2495 = vpack.c.b16 %v2435, %v2434
      %v2496 = vpack.c.b16 %v2437, %v2436
      %v2497 = vpack.c.b16 %v2439, %v2438
      %v2498 = vpack.c.b16 %v2441, %v2440
      %v2499 = vpack.c.b16 %v2443, %v2442
      %v2500 = vpack.c.b16 %v2445, %v2444
      %v2501 = vpack.c.b16 %v2447, %v2446
      %v2502 = vpack.c.b16 %v2449, %v2448
      %v2503 = vpack.c.b16 %v2451, %v2450
      %v2504 = vpack.c.b16 %v2453, %v2452
      %v2505 = vpack.c.b16 %v2455, %v2454
      %v2506 = vpack.c.b16 %v2457, %v2456
      %v2507 = vpack.c.b16 %v2459, %v2458
      %v2508 = vpack.c.b16 %v2461, %v2460
      %v2509 = vpack.c.b16 %v2463, %v2462
      %v2510 = vpack.c.b16 %v2465, %v2464
      %v2511 = vpack.c.b16 %v2467, %v2466
      %v2512 = vpack.c.b16 %v2469, %v2468
      %v2513 = vpack.c.b16 %v2471, %v2470
      %v2514 = vpack.c.b16 %v2473, %v2472
      %v2515 = vpack.c.b16 %v2475, %v2474
      %v2516 = vpack.c.b16 %v2477, %v2476
      %v2517 = vpack.c.b16 %v2479, %v2478
      %v2518 = vpack.c.b16 %v2481, %v2480
      %v2519 = vpack.c.b16 %v2483, %v2482
      %v2520 = vpack.c.b16 %v2485, %v2484
      %v2521 = vpack.c.b16 %v2487, %v2486
      %v2522 = vpack.c.b16 %v2489, %v2488
      %v2523 = vpack.c.b16 %v2491, %v2490
      %2556 = vmatprep.subr.bf16.mxu0 0
      %2557 = vmatpush1.bf16.msra.mxu0 %v2492
      %2558 = vmatprep.subr.bf16.mxu0 0
      %2559 = vmatpush1.bf16.msra.mxu0 %v2493
      %2560 = vmatprep.subr.bf16.mxu0 0
      %2561 = vmatpush1.bf16.msra.mxu0 %v2494
      %2562 = vmatprep.subr.bf16.mxu0 0
      %2563 = vmatpush1.bf16.msra.mxu0 %v2495
      %2564 = vmatprep.subr.bf16.mxu0 0
      %2565 = vmatpush1.bf16.msra.mxu0 %v2496
      %2566 = vmatprep.subr.bf16.mxu0 0
      %2567 = vmatpush1.bf16.msra.mxu0 %v2497
      %2568 = vmatprep.subr.bf16.mxu0 0
      %2569 = vmatpush1.bf16.msra.mxu0 %v2498
      %2570 = vmatprep.subr.bf16.mxu0 0
      %2571 = vmatpush1.bf16.msra.mxu0 %v2499
      %2572 = vmatprep.subr.bf16.mxu0 0
      %2573 = vmatpush1.bf16.msra.mxu0 %v2500
      %2574 = vmatprep.subr.bf16.mxu0 0
      %2575 = vmatpush1.bf16.msra.mxu0 %v2501
      %2576 = vmatprep.subr.bf16.mxu0 0
      %2577 = vmatpush1.bf16.msra.mxu0 %v2502
      %2578 = vmatprep.subr.bf16.mxu0 0
      %2579 = vmatpush1.bf16.msra.mxu0 %v2503
      %2580 = vmatprep.subr.bf16.mxu0 0
      %2581 = vmatpush1.bf16.msra.mxu0 %v2504
      %2582 = vmatprep.subr.bf16.mxu0 0
      %2583 = vmatpush1.bf16.msra.mxu0 %v2505
      %2584 = vmatprep.subr.bf16.mxu0 0
      %2585 = vmatpush1.bf16.msra.mxu0 %v2506
      %2586 = vmatprep.subr.bf16.mxu0 0
      %2587 = vmatpush1.bf16.msra.mxu0 %v2507
      %2588 = vmatprep.mubr.bf16.mxu0 %v2341
      %2589 = vmatmul.mubr.bf16.gmra.mrb[0].mxu0 %v2338
      %v2590 = vpop.f32.mrb[0].mxu0
      %v2591 = vadd.f32 0.0, %v2590
      %v2592 = vpop.f32.mrb[0].mxu0
      %v2593 = vpop.f32.mrb[0].mxu0
      %v2594 = vadd.f32 0.0, %v2593
      %v2595 = vpop.f32.mrb[0].mxu0
      %2596 = vmatprep.mubr.bf16.mxu0 %v2351
      %2597 = vmatmul.mubr.bf16.gmra.mrb[0].mxu0 %v2349
      %v2598 = vpop.f32.mrb[0].mxu0
      %v2599 = vadd.f32 0.0, %v2598
      %v2600 = vpop.f32.mrb[0].mxu0
      %v2601 = vpop.f32.mrb[0].mxu0
      %v2602 = vadd.f32 0.0, %v2601
      %v2603 = vpop.f32.mrb[0].mxu0
      %2604 = vdwg.mxu0
      %2605 = vmatprep.subr.bf16.mxu0 0
      %2606 = vmatpush1.bf16.msra.mxu0 %v2508
      %2607 = vmatprep.subr.bf16.mxu0 0
      %2608 = vmatpush1.bf16.msra.mxu0 %v2509
      %2609 = vmatprep.subr.bf16.mxu0 0
      %2610 = vmatpush1.bf16.msra.mxu0 %v2510
      %2611 = vmatprep.subr.bf16.mxu0 0
      %2612 = vmatpush1.bf16.msra.mxu0 %v2511
      %2613 = vmatprep.subr.bf16.mxu0 0
      %2614 = vmatpush1.bf16.msra.mxu0 %v2512
      %2615 = vmatprep.subr.bf16.mxu0 0
      %2616 = vmatpush1.bf16.msra.mxu0 %v2513
      %2617 = vmatprep.subr.bf16.mxu0 0
      %2618 = vmatpush1.bf16.msra.mxu0 %v2514
      %2619 = vmatprep.subr.bf16.mxu0 0
      %2620 = vmatpush1.bf16.msra.mxu0 %v2515
      %2621 = vmatprep.subr.bf16.mxu0 0
      %2622 = vmatpush1.bf16.msra.mxu0 %v2516
      %2623 = vmatprep.subr.bf16.mxu0 0
      %2624 = vmatpush1.bf16.msra.mxu0 %v2517
      %2625 = vmatprep.subr.bf16.mxu0 0
      %2626 = vmatpush1.bf16.msra.mxu0 %v2518
      %2627 = vmatprep.subr.bf16.mxu0 0
      %2628 = vmatpush1.bf16.msra.mxu0 %v2519
      %2629 = vmatprep.subr.bf16.mxu0 0
      %2630 = vmatpush1.bf16.msra.mxu0 %v2520
      %2631 = vmatprep.subr.bf16.mxu0 0
      %2632 = vmatpush1.bf16.msra.mxu0 %v2521
      %2633 = vmatprep.subr.bf16.mxu0 0
      %2634 = vmatpush1.bf16.msra.mxu0 %v2522
      %2635 = vmatprep.subr.bf16.mxu0 0
      %2636 = vmatpush1.bf16.msra.mxu0 %v2523
      %2637 = vmatprep.mubr.bf16.mxu0 %v2347
      %2638 = vmatmul.mubr.bf16.gmra.mrb[0].mxu0 %v2344
      %v2639 = vpop.f32.mrb[0].mxu0
      %v2640 = vadd.f32 %v2591, %v2639
      %v2641 = vpop.f32.mrb[0].mxu0
      %v2642 = vpop.f32.mrb[0].mxu0
      %v2643 = vadd.f32 %v2594, %v2642
      %v2644 = vpop.f32.mrb[0].mxu0
      %2645 = vmatprep.mubr.bf16.mxu0 %v2355
      %2646 = vmatmul.mubr.bf16.gmra.mrb[0].mxu0 %v2353
      %v2647 = vpop.f32.mrb[0].mxu0
      %v2648 = vadd.f32 %v2599, %v2647
      %v2649 = vpop.f32.mrb[0].mxu0
      %v2650 = vpop.f32.mrb[0].mxu0
      %v2651 = vadd.f32 %v2602, %v2650
      %v2652 = vpop.f32.mrb[0].mxu0
      %2653 = vdwg.mxu0
      %v2718 = vunpack.c.l.b16 %v2178
      %v2719 = vunpack.c.l.b16 %v2179
      %v2720 = vunpack.c.l.b16 %v2180
      %v2721 = vunpack.c.l.b16 %v2181
      %v2722 = vunpack.c.l.b16 %v2182
      %v2723 = vunpack.c.l.b16 %v2183
      %v2724 = vunpack.c.l.b16 %v2184
      %v2725 = vunpack.c.l.b16 %v2185
      %v2726 = vunpack.c.l.b16 %v2186
      %v2727 = vunpack.c.l.b16 %v2187
      %v2728 = vunpack.c.l.b16 %v2188
      %v2729 = vunpack.c.l.b16 %v2189
      %v2730 = vunpack.c.l.b16 %v2190
      %v2731 = vunpack.c.l.b16 %v2191
      %v2732 = vunpack.c.l.b16 %v2192
      %v2733 = vunpack.c.l.b16 %v2193
      %v2734 = vunpack.c.l.b16 %v2194
      %v2735 = vunpack.c.l.b16 %v2195
      %v2736 = vunpack.c.l.b16 %v2196
      %v2737 = vunpack.c.l.b16 %v2197
      %v2738 = vunpack.c.l.b16 %v2198
      %v2739 = vunpack.c.l.b16 %v2199
      %v2740 = vunpack.c.l.b16 %v2200
      %v2741 = vunpack.c.l.b16 %v2201
      %v2742 = vunpack.c.l.b16 %v2202
      %v2743 = vunpack.c.l.b16 %v2203
      %v2744 = vunpack.c.l.b16 %v2204
      %v2745 = vunpack.c.l.b16 %v2205
      %v2746 = vunpack.c.l.b16 %v2206
      %v2747 = vunpack.c.l.b16 %v2207
      %v2748 = vunpack.c.l.b16 %v2208
      %v2749 = vunpack.c.l.b16 %v2209
      %v2750 = vunpack.c.l.b16 %v2210
      %v2751 = vunpack.c.l.b16 %v2211
      %v2752 = vunpack.c.l.b16 %v2212
      %v2753 = vunpack.c.l.b16 %v2213
      %v2754 = vunpack.c.l.b16 %v2214
      %v2755 = vunpack.c.l.b16 %v2215
      %v2756 = vunpack.c.l.b16 %v2216
      %v2757 = vunpack.c.l.b16 %v2217
      %v2758 = vunpack.c.l.b16 %v2218
      %v2759 = vunpack.c.l.b16 %v2219
      %v2760 = vunpack.c.l.b16 %v2220
      %v2761 = vunpack.c.l.b16 %v2221
      %v2762 = vunpack.c.l.b16 %v2222
      %v2763 = vunpack.c.l.b16 %v2223
      %v2764 = vunpack.c.l.b16 %v2224
      %v2765 = vunpack.c.l.b16 %v2225
      %v2766 = vunpack.c.l.b16 %v2226
      %v2767 = vunpack.c.l.b16 %v2227
      %v2768 = vunpack.c.l.b16 %v2228
      %v2769 = vunpack.c.l.b16 %v2229
      %v2770 = vunpack.c.l.b16 %v2230
      %v2771 = vunpack.c.l.b16 %v2231
      %v2772 = vunpack.c.l.b16 %v2232
      %v2773 = vunpack.c.l.b16 %v2233
      %v2774 = vunpack.c.l.b16 %v2234
      %v2775 = vunpack.c.l.b16 %v2235
      %v2776 = vunpack.c.l.b16 %v2236
      %v2777 = vunpack.c.l.b16 %v2237
      %v2778 = vunpack.c.l.b16 %v2238
      %v2779 = vunpack.c.l.b16 %v2239
      %v2780 = vunpack.c.l.b16 %v2240
      %v2781 = vunpack.c.l.b16 %v2241
      %v2782 = vpack.c.b16 %v2719, %v2718
      %v2783 = vpack.c.b16 %v2721, %v2720
      %v2784 = vpack.c.b16 %v2723, %v2722
      %v2785 = vpack.c.b16 %v2725, %v2724
      %v2786 = vpack.c.b16 %v2727, %v2726
      %v2787 = vpack.c.b16 %v2729, %v2728
      %v2788 = vpack.c.b16 %v2731, %v2730
      %v2789 = vpack.c.b16 %v2733, %v2732
      %v2790 = vpack.c.b16 %v2735, %v2734
      %v2791 = vpack.c.b16 %v2737, %v2736
      %v2792 = vpack.c.b16 %v2739, %v2738
      %v2793 = vpack.c.b16 %v2741, %v2740
      %v2794 = vpack.c.b16 %v2743, %v2742
      %v2795 = vpack.c.b16 %v2745, %v2744
      %v2796 = vpack.c.b16 %v2747, %v2746
      %v2797 = vpack.c.b16 %v2749, %v2748
      %v2798 = vpack.c.b16 %v2751, %v2750
      %v2799 = vpack.c.b16 %v2753, %v2752
      %v2800 = vpack.c.b16 %v2755, %v2754
      %v2801 = vpack.c.b16 %v2757, %v2756
      %v2802 = vpack.c.b16 %v2759, %v2758
      %v2803 = vpack.c.b16 %v2761, %v2760
      %v2804 = vpack.c.b16 %v2763, %v2762
      %v2805 = vpack.c.b16 %v2765, %v2764
      %v2806 = vpack.c.b16 %v2767, %v2766
      %v2807 = vpack.c.b16 %v2769, %v2768
      %v2808 = vpack.c.b16 %v2771, %v2770
      %v2809 = vpack.c.b16 %v2773, %v2772
      %v2810 = vpack.c.b16 %v2775, %v2774
      %v2811 = vpack.c.b16 %v2777, %v2776
      %v2812 = vpack.c.b16 %v2779, %v2778
      %v2813 = vpack.c.b16 %v2781, %v2780
      %2846 = vmatprep.subr.bf16.mxu0 0
      %2847 = vmatpush1.bf16.msra.mxu0 %v2782
      %2848 = vmatprep.subr.bf16.mxu0 0
      %2849 = vmatpush1.bf16.msra.mxu0 %v2783
      %2850 = vmatprep.subr.bf16.mxu0 0
      %2851 = vmatpush1.bf16.msra.mxu0 %v2784
      %2852 = vmatprep.subr.bf16.mxu0 0
      %2853 = vmatpush1.bf16.msra.mxu0 %v2785
      %2854 = vmatprep.subr.bf16.mxu0 0
      %2855 = vmatpush1.bf16.msra.mxu0 %v2786
      %2856 = vmatprep.subr.bf16.mxu0 0
      %2857 = vmatpush1.bf16.msra.mxu0 %v2787
      %2858 = vmatprep.subr.bf16.mxu0 0
      %2859 = vmatpush1.bf16.msra.mxu0 %v2788
      %2860 = vmatprep.subr.bf16.mxu0 0
      %2861 = vmatpush1.bf16.msra.mxu0 %v2789
      %2862 = vmatprep.subr.bf16.mxu0 0
      %2863 = vmatpush1.bf16.msra.mxu0 %v2790
      %2864 = vmatprep.subr.bf16.mxu0 0
      %2865 = vmatpush1.bf16.msra.mxu0 %v2791
      %2866 = vmatprep.subr.bf16.mxu0 0
      %2867 = vmatpush1.bf16.msra.mxu0 %v2792
      %2868 = vmatprep.subr.bf16.mxu0 0
      %2869 = vmatpush1.bf16.msra.mxu0 %v2793
      %2870 = vmatprep.subr.bf16.mxu0 0
      %2871 = vmatpush1.bf16.msra.mxu0 %v2794
      %2872 = vmatprep.subr.bf16.mxu0 0
      %2873 = vmatpush1.bf16.msra.mxu0 %v2795
      %2874 = vmatprep.subr.bf16.mxu0 0
      %2875 = vmatpush1.bf16.msra.mxu0 %v2796
      %2876 = vmatprep.subr.bf16.mxu0 0
      %2877 = vmatpush1.bf16.msra.mxu0 %v2797
      %2878 = vmatprep.mubr.bf16.mxu0 %v2171
      %2879 = vmatmul.mubr.bf16.gmra.mrb[0].mxu0 %v2170
      %v2880 = vpop.f32.mrb[0].mxu0
      %v2881 = vadd.f32 %v2640, %v2880
      %v2882 = vpop.f32.mrb[0].mxu0
      %v2883 = vpop.f32.mrb[0].mxu0
      %v2884 = vadd.f32 %v2643, %v2883
      %v2885 = vpop.f32.mrb[0].mxu0
      %2886 = vmatprep.mubr.bf16.mxu0 %v2175
      %2887 = vmatmul.mubr.bf16.gmra.mrb[0].mxu0 %v2174
      %v2888 = vpop.f32.mrb[0].mxu0
      %v2889 = vadd.f32 %v2648, %v2888
      %v2890 = vpop.f32.mrb[0].mxu0
      %v2891 = vpop.f32.mrb[0].mxu0
      %v2892 = vadd.f32 %v2651, %v2891
      %v2893 = vpop.f32.mrb[0].mxu0
      %2894 = vdwg.mxu0
      %2895 = vmatprep.subr.bf16.mxu0 0
      %2896 = vmatpush1.bf16.msra.mxu0 %v2798
      %2897 = vmatprep.subr.bf16.mxu0 0
      %2898 = vmatpush1.bf16.msra.mxu0 %v2799
      %2899 = vmatprep.subr.bf16.mxu0 0
      %2900 = vmatpush1.bf16.msra.mxu0 %v2800
      %2901 = vmatprep.subr.bf16.mxu0 0
      %2902 = vmatpush1.bf16.msra.mxu0 %v2801
      %2903 = vmatprep.subr.bf16.mxu0 0
      %2904 = vmatpush1.bf16.msra.mxu0 %v2802
      %2905 = vmatprep.subr.bf16.mxu0 0
      %2906 = vmatpush1.bf16.msra.mxu0 %v2803
      %2907 = vmatprep.subr.bf16.mxu0 0
      %2908 = vmatpush1.bf16.msra.mxu0 %v2804
      %2909 = vmatprep.subr.bf16.mxu0 0
      %2910 = vmatpush1.bf16.msra.mxu0 %v2805
      %2911 = vmatprep.subr.bf16.mxu0 0
      %2912 = vmatpush1.bf16.msra.mxu0 %v2806
      %2913 = vmatprep.subr.bf16.mxu0 0
      %2914 = vmatpush1.bf16.msra.mxu0 %v2807
      %2915 = vmatprep.subr.bf16.mxu0 0
      %2916 = vmatpush1.bf16.msra.mxu0 %v2808
      %2917 = vmatprep.subr.bf16.mxu0 0
      %2918 = vmatpush1.bf16.msra.mxu0 %v2809
      %2919 = vmatprep.subr.bf16.mxu0 0
      %2920 = vmatpush1.bf16.msra.mxu0 %v2810
      %2921 = vmatprep.subr.bf16.mxu0 0
      %2922 = vmatpush1.bf16.msra.mxu0 %v2811
      %2923 = vmatprep.subr.bf16.mxu0 0
      %2924 = vmatpush1.bf16.msra.mxu0 %v2812
      %2925 = vmatprep.subr.bf16.mxu0 0
      %2926 = vmatpush1.bf16.msra.mxu0 %v2813
      %2927 = vmatprep.mubr.bf16.mxu0 %v2173
      %2928 = vmatmul.mubr.bf16.gmra.mrb[0].mxu0 %v2172
      %v2929 = vpop.f32.mrb[0].mxu0
      %v2930 = vadd.f32 %v2881, %v2929
      %v2931 = vpop.f32.mrb[0].mxu0
      %v2932 = vpop.f32.mrb[0].mxu0
      %v2933 = vadd.f32 %v2884, %v2932
      %v2934 = vpop.f32.mrb[0].mxu0
      %2935 = vmatprep.mubr.bf16.mxu0 %v2177
      %2936 = vmatmul.mubr.bf16.gmra.mrb[0].mxu0 %v2176
      %v2937 = vpop.f32.mrb[0].mxu0
      %v2938 = vadd.f32 %v2889, %v2937
      %v2939 = vpop.f32.mrb[0].mxu0
      %v2940 = vpop.f32.mrb[0].mxu0
      %v2941 = vadd.f32 %v2892, %v2940
      %v2942 = vpop.f32.mrb[0].mxu0
      %2943 = vdwg.mxu0
      %v2944 = vld [vmem:[#allocation3] sm:$0xf0]
      %v2945 = vld [vmem:[#allocation3 + $0x8] sm:$0xf0]
      %v2946 = vld [vmem:[#allocation3 + $0x10] sm:$0xf0]
      %v2947 = vld [vmem:[#allocation3 + $0x18] sm:$0xf0]
      %v2948 = vld [vmem:[#allocation3 + $0x80] sm:$0xf]
      %v2949 = vld [vmem:[#allocation3 + $0x88] sm:$0xf]
      %v2950 = vld [vmem:[#allocation3 + $0x90] sm:$0xf]
      %v2951 = vld [vmem:[#allocation3 + $0x98] sm:$0xf]
      %v2952 = vpack.c.bf16 %v2158, %v2944
      %v2953 = vpack.c.bf16 %v2159, %v2945
      %v2954 = vpack.c.bf16 %v2160, %v2946
      %v2955 = vpack.c.bf16 %v2161, %v2947
      %v2956 = vpack.c.bf16 %v2948, %v2948
      %v2957 = vpack.c.bf16 %v2949, %v2949
      %v2958 = vpack.c.bf16 %v2950, %v2950
      %v2959 = vpack.c.bf16 %v2951, %v2951
      %s2960 = scalar_lea.vmem %s9, 512
      %v2961 = vld [vmem:[%s2960] sm:$0xf]
      %v2962 = vld [vmem:[%s2960 + $0x4] sm:$0xf]
      %v2963 = vld [vmem:[%s2960 + $0x8] sm:$0xf]
      %v2964 = vld [vmem:[%s2960 + $0xc] sm:$0xf]
      %v2965 = vld [vmem:[%s2960 + $0x10] sm:$0xf]
      %v2966 = vld [vmem:[%s2960 + $0x14] sm:$0xf]
      %v2967 = vld [vmem:[%s2960 + $0x18] sm:$0xf]
      %v2968 = vld [vmem:[%s2960 + $0x1c] sm:$0xf]
      %v2969 = vld [vmem:[%s2960 + $0x20] sm:$0xf]
      %v2970 = vld [vmem:[%s2960 + $0x24] sm:$0xf]
      %v2971 = vld [vmem:[%s2960 + $0x28] sm:$0xf]
      %v2972 = vld [vmem:[%s2960 + $0x2c] sm:$0xf]
      %v2973 = vld [vmem:[%s2960 + $0x30] sm:$0xf]
      %v2974 = vld [vmem:[%s2960 + $0x34] sm:$0xf]
      %v2975 = vld [vmem:[%s2960 + $0x38] sm:$0xf]
      %v2976 = vld [vmem:[%s2960 + $0x3c] sm:$0xf]
      %v2977 = vld [vmem:[%s2960 + $0x40] sm:$0xf]
      %v2978 = vld [vmem:[%s2960 + $0x44] sm:$0xf]
      %v2979 = vld [vmem:[%s2960 + $0x48] sm:$0xf]
      %v2980 = vld [vmem:[%s2960 + $0x4c] sm:$0xf]
      %v2981 = vld [vmem:[%s2960 + $0x50] sm:$0xf]
      %v2982 = vld [vmem:[%s2960 + $0x54] sm:$0xf]
      %v2983 = vld [vmem:[%s2960 + $0x58] sm:$0xf]
      %v2984 = vld [vmem:[%s2960 + $0x5c] sm:$0xf]
      %v2985 = vld [vmem:[%s2960 + $0x60] sm:$0xf]
      %v2986 = vld [vmem:[%s2960 + $0x64] sm:$0xf]
      %v2987 = vld [vmem:[%s2960 + $0x68] sm:$0xf]
      %v2988 = vld [vmem:[%s2960 + $0x6c] sm:$0xf]
      %v2989 = vld [vmem:[%s2960 + $0x70] sm:$0xf]
      %v2990 = vld [vmem:[%s2960 + $0x74] sm:$0xf]
      %v2991 = vld [vmem:[%s2960 + $0x78] sm:$0xf]
      %v2992 = vld [vmem:[%s2960 + $0x7c] sm:$0xf]
      %v2993 = vld [vmem:[%s2960 + $0x80] sm:$0xf]
      %v2994 = vld [vmem:[%s2960 + $0x84] sm:$0xf]
      %v2995 = vld [vmem:[%s2960 + $0x88] sm:$0xf]
      %v2996 = vld [vmem:[%s2960 + $0x8c] sm:$0xf]
      %v2997 = vld [vmem:[%s2960 + $0x90] sm:$0xf]
      %v2998 = vld [vmem:[%s2960 + $0x94] sm:$0xf]
      %v2999 = vld [vmem:[%s2960 + $0x98] sm:$0xf]
      %v3000 = vld [vmem:[%s2960 + $0x9c] sm:$0xf]
      %v3001 = vld [vmem:[%s2960 + $0xa0] sm:$0xf]
      %v3002 = vld [vmem:[%s2960 + $0xa4] sm:$0xf]
      %v3003 = vld [vmem:[%s2960 + $0xa8] sm:$0xf]
      %v3004 = vld [vmem:[%s2960 + $0xac] sm:$0xf]
      %v3005 = vld [vmem:[%s2960 + $0xb0] sm:$0xf]
      %v3006 = vld [vmem:[%s2960 + $0xb4] sm:$0xf]
      %v3007 = vld [vmem:[%s2960 + $0xb8] sm:$0xf]
      %v3008 = vld [vmem:[%s2960 + $0xbc] sm:$0xf]
      %v3009 = vld [vmem:[%s2960 + $0xc0] sm:$0xf]
      %v3010 = vld [vmem:[%s2960 + $0xc4] sm:$0xf]
      %v3011 = vld [vmem:[%s2960 + $0xc8] sm:$0xf]
      %v3012 = vld [vmem:[%s2960 + $0xcc] sm:$0xf]
      %v3013 = vld [vmem:[%s2960 + $0xd0] sm:$0xf]
      %v3014 = vld [vmem:[%s2960 + $0xd4] sm:$0xf]
      %v3015 = vld [vmem:[%s2960 + $0xd8] sm:$0xf]
      %v3016 = vld [vmem:[%s2960 + $0xdc] sm:$0xf]
      %v3017 = vld [vmem:[%s2960 + $0xe0] sm:$0xf]
      %v3018 = vld [vmem:[%s2960 + $0xe4] sm:$0xf]
      %v3019 = vld [vmem:[%s2960 + $0xe8] sm:$0xf]
      %v3020 = vld [vmem:[%s2960 + $0xec] sm:$0xf]
      %v3021 = vld [vmem:[%s2960 + $0xf0] sm:$0xf]
      %v3022 = vld [vmem:[%s2960 + $0xf4] sm:$0xf]
      %v3023 = vld [vmem:[%s2960 + $0xf8] sm:$0xf]
      %v3024 = vld [vmem:[%s2960 + $0xfc] sm:$0xf]
      %vm3033 = vcmask 1045504
      %v3034 = vrot.slane %v2952, 2
      %v3035 = vrot.slane %v2174, 2
      %v3036 = vsel %vm3033, %v3034, %v3035
      %v3037 = vrot.slane %v2953, 2
      %v3038 = vrot.slane %v2175, 2
      %v3039 = vsel %vm3033, %v3037, %v3038
      %v3040 = vrot.slane %v2954, 2
      %v3041 = vrot.slane %v2176, 2
      %v3042 = vsel %vm3033, %v3040, %v3041
      %v3043 = vrot.slane %v2955, 2
      %v3044 = vrot.slane %v2177, 2
      %v3045 = vsel %vm3033, %v3043, %v3044
      %v3046 = vrot.slane %v2956, 2
      %v3047 = vsel %vm3033, %v3035, %v3046
      %v3048 = vrot.slane %v2957, 2
      %v3049 = vsel %vm3033, %v3038, %v3048
      %v3050 = vrot.slane %v2958, 2
      %v3051 = vsel %vm3033, %v3041, %v3050
      %v3052 = vrot.slane %v2959, 2
      %v3053 = vsel %vm3033, %v3044, %v3052
      %v3126 = vunpack.c.l.b16 %v2961
      %v3127 = vunpack.c.l.b16 %v2962
      %v3128 = vunpack.c.l.b16 %v2963
      %v3129 = vunpack.c.l.b16 %v2964
      %v3130 = vunpack.c.l.b16 %v2965
      %v3131 = vunpack.c.l.b16 %v2966
      %v3132 = vunpack.c.l.b16 %v2967
      %v3133 = vunpack.c.l.b16 %v2968
      %v3134 = vunpack.c.l.b16 %v2969
      %v3135 = vunpack.c.l.b16 %v2970
      %v3136 = vunpack.c.l.b16 %v2971
      %v3137 = vunpack.c.l.b16 %v2972
      %v3138 = vunpack.c.l.b16 %v2973
      %v3139 = vunpack.c.l.b16 %v2974
      %v3140 = vunpack.c.l.b16 %v2975
      %v3141 = vunpack.c.l.b16 %v2976
      %v3142 = vunpack.c.l.b16 %v2977
      %v3143 = vunpack.c.l.b16 %v2978
      %v3144 = vunpack.c.l.b16 %v2979
      %v3145 = vunpack.c.l.b16 %v2980
      %v3146 = vunpack.c.l.b16 %v2981
      %v3147 = vunpack.c.l.b16 %v2982
      %v3148 = vunpack.c.l.b16 %v2983
      %v3149 = vunpack.c.l.b16 %v2984
      %v3150 = vunpack.c.l.b16 %v2985
      %v3151 = vunpack.c.l.b16 %v2986
      %v3152 = vunpack.c.l.b16 %v2987
      %v3153 = vunpack.c.l.b16 %v2988
      %v3154 = vunpack.c.l.b16 %v2989
      %v3155 = vunpack.c.l.b16 %v2990
      %v3156 = vunpack.c.l.b16 %v2991
      %v3157 = vunpack.c.l.b16 %v2992
      %v3158 = vunpack.c.l.b16 %v2993
      %v3159 = vunpack.c.l.b16 %v2994
      %v3160 = vunpack.c.l.b16 %v2995
      %v3161 = vunpack.c.l.b16 %v2996
      %v3162 = vunpack.c.l.b16 %v2997
      %v3163 = vunpack.c.l.b16 %v2998
      %v3164 = vunpack.c.l.b16 %v2999
      %v3165 = vunpack.c.l.b16 %v3000
      %v3166 = vunpack.c.l.b16 %v3001
      %v3167 = vunpack.c.l.b16 %v3002
      %v3168 = vunpack.c.l.b16 %v3003
      %v3169 = vunpack.c.l.b16 %v3004
      %v3170 = vunpack.c.l.b16 %v3005
      %v3171 = vunpack.c.l.b16 %v3006
      %v3172 = vunpack.c.l.b16 %v3007
      %v3173 = vunpack.c.l.b16 %v3008
      %v3174 = vunpack.c.l.b16 %v3009
      %v3175 = vunpack.c.l.b16 %v3010
      %v3176 = vunpack.c.l.b16 %v3011
      %v3177 = vunpack.c.l.b16 %v3012
      %v3178 = vunpack.c.l.b16 %v3013
      %v3179 = vunpack.c.l.b16 %v3014
      %v3180 = vunpack.c.l.b16 %v3015
      %v3181 = vunpack.c.l.b16 %v3016
      %v3182 = vunpack.c.l.b16 %v3017
      %v3183 = vunpack.c.l.b16 %v3018
      %v3184 = vunpack.c.l.b16 %v3019
      %v3185 = vunpack.c.l.b16 %v3020
      %v3186 = vunpack.c.l.b16 %v3021
      %v3187 = vunpack.c.l.b16 %v3022
      %v3188 = vunpack.c.l.b16 %v3023
      %v3189 = vunpack.c.l.b16 %v3024
      %v3190 = vpack.c.b16 %v3127, %v3126
      %v3191 = vpack.c.b16 %v3129, %v3128
      %v3192 = vpack.c.b16 %v3131, %v3130
      %v3193 = vpack.c.b16 %v3133, %v3132
      %v3194 = vpack.c.b16 %v3135, %v3134
      %v3195 = vpack.c.b16 %v3137, %v3136
      %v3196 = vpack.c.b16 %v3139, %v3138
      %v3197 = vpack.c.b16 %v3141, %v3140
      %v3198 = vpack.c.b16 %v3143, %v3142
      %v3199 = vpack.c.b16 %v3145, %v3144
      %v3200 = vpack.c.b16 %v3147, %v3146
      %v3201 = vpack.c.b16 %v3149, %v3148
      %v3202 = vpack.c.b16 %v3151, %v3150
      %v3203 = vpack.c.b16 %v3153, %v3152
      %v3204 = vpack.c.b16 %v3155, %v3154
      %v3205 = vpack.c.b16 %v3157, %v3156
      %v3206 = vpack.c.b16 %v3159, %v3158
      %v3207 = vpack.c.b16 %v3161, %v3160
      %v3208 = vpack.c.b16 %v3163, %v3162
      %v3209 = vpack.c.b16 %v3165, %v3164
      %v3210 = vpack.c.b16 %v3167, %v3166
      %v3211 = vpack.c.b16 %v3169, %v3168
      %v3212 = vpack.c.b16 %v3171, %v3170
      %v3213 = vpack.c.b16 %v3173, %v3172
      %v3214 = vpack.c.b16 %v3175, %v3174
      %v3215 = vpack.c.b16 %v3177, %v3176
      %v3216 = vpack.c.b16 %v3179, %v3178
      %v3217 = vpack.c.b16 %v3181, %v3180
      %v3218 = vpack.c.b16 %v3183, %v3182
      %v3219 = vpack.c.b16 %v3185, %v3184
      %v3220 = vpack.c.b16 %v3187, %v3186
      %v3221 = vpack.c.b16 %v3189, %v3188
      %3254 = vmatprep.subr.bf16.mxu0 0
      %3255 = vmatpush1.bf16.msra.mxu0 %v3190
      %3256 = vmatprep.subr.bf16.mxu0 0
      %3257 = vmatpush1.bf16.msra.mxu0 %v3191
      %3258 = vmatprep.subr.bf16.mxu0 0
      %3259 = vmatpush1.bf16.msra.mxu0 %v3192
      %3260 = vmatprep.subr.bf16.mxu0 0
      %3261 = vmatpush1.bf16.msra.mxu0 %v3193
      %3262 = vmatprep.subr.bf16.mxu0 0
      %3263 = vmatpush1.bf16.msra.mxu0 %v3194
      %3264 = vmatprep.subr.bf16.mxu0 0
      %3265 = vmatpush1.bf16.msra.mxu0 %v3195
      %3266 = vmatprep.subr.bf16.mxu0 0
      %3267 = vmatpush1.bf16.msra.mxu0 %v3196
      %3268 = vmatprep.subr.bf16.mxu0 0
      %3269 = vmatpush1.bf16.msra.mxu0 %v3197
      %3270 = vmatprep.subr.bf16.mxu0 0
      %3271 = vmatpush1.bf16.msra.mxu0 %v3198
      %3272 = vmatprep.subr.bf16.mxu0 0
      %3273 = vmatpush1.bf16.msra.mxu0 %v3199
      %3274 = vmatprep.subr.bf16.mxu0 0
      %3275 = vmatpush1.bf16.msra.mxu0 %v3200
      %3276 = vmatprep.subr.bf16.mxu0 0
      %3277 = vmatpush1.bf16.msra.mxu0 %v3201
      %3278 = vmatprep.subr.bf16.mxu0 0
      %3279 = vmatpush1.bf16.msra.mxu0 %v3202
      %3280 = vmatprep.subr.bf16.mxu0 0
      %3281 = vmatpush1.bf16.msra.mxu0 %v3203
      %3282 = vmatprep.subr.bf16.mxu0 0
      %3283 = vmatpush1.bf16.msra.mxu0 %v3204
      %3284 = vmatprep.subr.bf16.mxu0 0
      %3285 = vmatpush1.bf16.msra.mxu0 %v3205
      %3286 = vmatprep.mubr.bf16.mxu0 %v3039
      %3287 = vmatmul.mubr.bf16.gmra.mrb[0].mxu0 %v3036
      %v3288 = vpop.f32.mrb[0].mxu0
      %v3289 = vadd.f32 0.0, %v3288
      %v3290 = vpop.f32.mrb[0].mxu0
      %v3291 = vpop.f32.mrb[0].mxu0
      %v3292 = vadd.f32 0.0, %v3291
      %v3293 = vpop.f32.mrb[0].mxu0
      %3294 = vmatprep.mubr.bf16.mxu0 %v3049
      %3295 = vmatmul.mubr.bf16.gmra.mrb[0].mxu0 %v3047
      %v3296 = vpop.f32.mrb[0].mxu0
      %v3297 = vadd.f32 0.0, %v3296
      %v3298 = vpop.f32.mrb[0].mxu0
      %v3299 = vpop.f32.mrb[0].mxu0
      %v3300 = vadd.f32 0.0, %v3299
      %v3301 = vpop.f32.mrb[0].mxu0
      %3302 = vdwg.mxu0
      %3303 = vmatprep.subr.bf16.mxu0 0
      %3304 = vmatpush1.bf16.msra.mxu0 %v3206
      %3305 = vmatprep.subr.bf16.mxu0 0
      %3306 = vmatpush1.bf16.msra.mxu0 %v3207
      %3307 = vmatprep.subr.bf16.mxu0 0
      %3308 = vmatpush1.bf16.msra.mxu0 %v3208
      %3309 = vmatprep.subr.bf16.mxu0 0
      %3310 = vmatpush1.bf16.msra.mxu0 %v3209
      %3311 = vmatprep.subr.bf16.mxu0 0
      %3312 = vmatpush1.bf16.msra.mxu0 %v3210
      %3313 = vmatprep.subr.bf16.mxu0 0
      %3314 = vmatpush1.bf16.msra.mxu0 %v3211
      %3315 = vmatprep.subr.bf16.mxu0 0
      %3316 = vmatpush1.bf16.msra.mxu0 %v3212
      %3317 = vmatprep.subr.bf16.mxu0 0
      %3318 = vmatpush1.bf16.msra.mxu0 %v3213
      %3319 = vmatprep.subr.bf16.mxu0 0
      %3320 = vmatpush1.bf16.msra.mxu0 %v3214
      %3321 = vmatprep.subr.bf16.mxu0 0
      %3322 = vmatpush1.bf16.msra.mxu0 %v3215
      %3323 = vmatprep.subr.bf16.mxu0 0
      %3324 = vmatpush1.bf16.msra.mxu0 %v3216
      %3325 = vmatprep.subr.bf16.mxu0 0
      %3326 = vmatpush1.bf16.msra.mxu0 %v3217
      %3327 = vmatprep.subr.bf16.mxu0 0
      %3328 = vmatpush1.bf16.msra.mxu0 %v3218
      %3329 = vmatprep.subr.bf16.mxu0 0
      %3330 = vmatpush1.bf16.msra.mxu0 %v3219
      %3331 = vmatprep.subr.bf16.mxu0 0
      %3332 = vmatpush1.bf16.msra.mxu0 %v3220
      %3333 = vmatprep.subr.bf16.mxu0 0
      %3334 = vmatpush1.bf16.msra.mxu0 %v3221
      %3335 = vmatprep.mubr.bf16.mxu0 %v3045
      %3336 = vmatmul.mubr.bf16.gmra.mrb[0].mxu0 %v3042
      %v3337 = vpop.f32.mrb[0].mxu0
      %v3338 = vadd.f32 %v3289, %v3337
      %v3339 = vpop.f32.mrb[0].mxu0
      %v3340 = vpop.f32.mrb[0].mxu0
      %v3341 = vadd.f32 %v3292, %v3340
      %v3342 = vpop.f32.mrb[0].mxu0
      %3343 = vmatprep.mubr.bf16.mxu0 %v3053
      %3344 = vmatmul.mubr.bf16.gmra.mrb[0].mxu0 %v3051
      %v3345 = vpop.f32.mrb[0].mxu0
      %v3346 = vadd.f32 %v3297, %v3345
      %v3347 = vpop.f32.mrb[0].mxu0
      %v3348 = vpop.f32.mrb[0].mxu0
      %v3349 = vadd.f32 %v3300, %v3348
      %v3350 = vpop.f32.mrb[0].mxu0
      %3351 = vdwg.mxu0
      %v3352 = vadd.f32 %v2930, %v3338
      %v3353 = vadd.f32 %v2933, %v3341
      %v3354 = vadd.f32 %v2938, %v3346
      %v3355 = vadd.f32 %v2941, %v3349
      %v3357 = vlaneseq
      %v3358 = vshrl.u32 %v3357, 7
      %v3359 = vsub.s32 0, %v3358
      %v3360 = vrot.slane %v2153, %v3359
      %v3362 = vadd.f32 %v3352, %v3360
      %v3363 = vadd.f32 %v3353, %v3360
      %v3364 = vadd.f32 %v3354, %v3360
      %v3365 = vadd.f32 %v3355, %v3360
      %s3366 = sld [smem:[#allocation4 + %s1217]]
      %s3367 = sshra.s32 %s1217, 7
      %s3368 = sand.u32 %s1217, 127
      %s3369 = sadd.s32 %s3367, 1
      %s3370 = smul.u32 %s3369, 128
      %s3371 = sshra.s32 %s1217, 7
      %s3372 = sand.u32 %s1217, 127
      %s3373 = sadd.s32 %s3370, %s3372
      %s3374 = sld [smem:[#allocation4 + %s3373]]
      %s3375 = sadd.s32 %s3367, 2
      %s3376 = smul.u32 %s3375, 128
      %s3377 = sadd.s32 %s3376, %s3372
      %s3378 = sld [smem:[#allocation4 + %s3377]]
      %s3379 = smul.u32 %s1212, 32
      %s3380 = scalar_lea.vmem %s11, %s3379
      %v3381 = vld [vmem:[%s3380] sm:$0xff]
      %v3382 = vld [vmem:[%s3380 + $0x8] sm:$0xff]
      %v3383 = vld [vmem:[%s3380 + $0x10] sm:$0xff]
      %v3384 = vld [vmem:[%s3380 + $0x18] sm:$0xff]
      %v3385 = vstv %s3374
      %v3386 = vmul.f32 %v3385, %v3362
      %v3387 = vmul.f32 %v3385, %v3363
      %v3388 = vmul.f32 %v3385, %v3364
      %v3389 = vmul.f32 %v3385, %v3365
      %v3390 = vsub.f32 %v1218, %v3386
      %v3391 = vsub.f32 %v1219, %v3387
      %v3392 = vsub.f32 %v1220, %v3388
      %v3393 = vsub.f32 %v1221, %v3389
      %v3394 = vstv %s3366
      %v3395 = vmul.f32 %v3394, %v3390
      %v3396 = vmul.f32 %v3394, %v3391
      %v3397 = vmul.f32 %v3394, %v3392
      %v3398 = vmul.f32 %v3394, %v3393
      %v3399 = vstv %s3378
      %v3400 = vmul.f32 %v3399, %v3381
      %v3401 = vmul.f32 %v3399, %v3382
      %v3402 = vmul.f32 %v3399, %v3383
      %v3403 = vmul.f32 %v3399, %v3384
      %v3404 = vadd.f32 %v3395, %v3400
      %v3405 = vadd.f32 %v3396, %v3401
      %v3406 = vadd.f32 %v3397, %v3402
      %v3407 = vadd.f32 %v3398, %v3403
      %3408 = vst.msk [vmem:[#allocation2 + $0x2] sm:$0xff] %vm55, %v3404
      %3409 = vst.msk [vmem:[#allocation2 + $0xa] sm:$0xff] %vm55, %v3405
      %3410 = vst.msk [vmem:[#allocation2 + $0x12] sm:$0xff] %vm55, %v3406
      %3411 = vst.msk [vmem:[#allocation2 + $0x1a] sm:$0xff] %vm55, %v3407
    $region58: #{language_model_to_ddpm_forward.1} parent=1 // loop_footer
      %s1216 = sadd.s32 1, %s1212
    $region59: #{language_model_to_ddpm_forward.1} parent=1 // loop_footer_branch
      %1211 = sbr.rel target = $region55
    $region60: #{language_model_to_ddpm_forward.1} parent=1 // loop_exit
      _
    %v3412 = vld [vmem:[#allocation2 + $0x2] sm:$0xff]
    %v3413 = vld [vmem:[#allocation2 + $0xa] sm:$0xff]
    %v3414 = vld [vmem:[#allocation2 + $0x12] sm:$0xff]
    %v3415 = vld [vmem:[#allocation2 + $0x1a] sm:$0xff]
    %v3416 = vmax.f32 %v3412, -1.0
    %v3417 = vmax.f32 %v3413, -1.0
    %v3418 = vmax.f32 %v3414, -1.0
    %v3419 = vmax.f32 %v3415, -1.0
    %v3420 = vmin.f32 %v3416, 1.0
    %v3421 = vmin.f32 %v3417, 1.0
    %v3422 = vmin.f32 %v3418, 1.0
    %v3423 = vmin.f32 %v3419, 1.0
    %v3424 = vadd.f32 %v3420, 1.0
    %v3425 = vadd.f32 %v3421, 1.0
    %v3426 = vadd.f32 %v3422, 1.0
    %v3427 = vadd.f32 %v3423, 1.0
    %v3428 = vmul.f32 %v3424, 0.5
    %v3429 = vmul.f32 %v3425, 0.5
    %v3430 = vmul.f32 %v3426, 0.5
    %v3431 = vmul.f32 %v3427, 0.5
    %3432 = vst.msk [vmem:[%s12] sm:$0xff] %vm55, %v3428
    %3433 = vst.msk [vmem:[%s12 + $0x8] sm:$0xff] %vm55, %v3429
    %3434 = vst.msk [vmem:[%s12 + $0x10] sm:$0xff] %vm55, %v3430
    %3435 = vst.msk [vmem:[%s12 + $0x18] sm:$0xff] %vm55, %v3431
    // Predicated region
    $region61: #{language_model_to_ddpm_forward.1} parent=1 // pred_check
      _
    $region62: #{language_model_to_ddpm_forward.1} parent=1 // pred_check_branch
      %3437 = sbr.rel (0) target = $region64
    $region63: #{language_model_to_ddpm_forward.1} parent=1 // pred_region
      _
    $region64: #{language_model_to_ddpm_forward.1} parent=1 // pred_fallthru
      _
    // Predicated region
    $region65: #{language_model_to_ddpm_forward.1} parent=1 // pred_check
      _
    $region66: #{language_model_to_ddpm_forward.1} parent=1 // pred_check_branch
      %3439 = sbr.rel (0) target = $region68
    $region67: #{language_model_to_ddpm_forward.1} parent=1 // pred_region
      _
    $region68: #{language_model_to_ddpm_forward.1} parent=1 // pred_fallthru
      _
    %3440 = vsyncpa [#allocation5], 1

</llo_original>
